<compile_context>
chip_gen: v5e
topology: v5e:2x2
jax: 0.10.0
libtpu: 0.0.40
codegen_flags: <defaults>
</compile_context>

<pallas_src>
import functools

import jax
import jax.numpy as jnp
from jax import lax
from jax.experimental import pallas as pl
from jax.experimental.pallas import tpu as pltpu


# -----------------------------------------------------------------------------
# Pallas kernels: shared MLP (2 x [1x1 conv (BN-folded) -> bias -> ReLU]) + max
# -----------------------------------------------------------------------------
def _sa_mlp_kernel(x_ref, w1_ref, b1_ref, w2_ref, b2_ref, o_ref):
    # Lane-dense layout: groups on lanes, channels on sublanes.
    #   x_ref : (K, Cin, tg)   sample k of every group in this tile -> x_ref[k]
    #   w1_ref: (C1, Cin)      conv1x1 weight with BN scale folded in
    #   b1_ref: (C1, 1)        folded BN shift (per output channel)
    #   w2_ref: (C2, C1), b2_ref: (C2, 1)
    #   o_ref : (C2, tg)       max over the K samples of each group
    K = x_ref.shape[0]
    w1 = w1_ref[...]
    b1 = b1_ref[...]
    w2 = w2_ref[...]
    b2 = b2_ref[...]

    def body(k, acc):
        xk = x_ref[k]                                            # (Cin, tg)
        h = jnp.dot(w1, xk, preferred_element_type=jnp.float32) + b1
        h = jnp.maximum(h, 0.0)
        h = jnp.dot(w2, h, preferred_element_type=jnp.float32) + b2
        h = jnp.maximum(h, 0.0)
        return jnp.maximum(acc, h)                               # running max over K

    # ReLU outputs are >= 0, so a zero init is an exact identity for the max.
    acc0 = jnp.zeros(o_ref.shape, jnp.float32)
    o_ref[...] = lax.fori_loop(0, K, body, acc0)


def _sa_mlp_all_kernel(x_ref, w1_ref, b1_ref, w2_ref, b2_ref, o_ref):
    # group_all stage: all N points of one batch element on the lane axis.
    #   x_ref : (1, Cin, N)
    #   o_ref : (1, C2, 1)    (PyTorch [B, C, 1] layout, no host transpose)
    x = x_ref[0]                                                 # (Cin, N)
    h = jnp.dot(w1_ref[...], x, preferred_element_type=jnp.float32) + b1_ref[...]
    h = jnp.maximum(h, 0.0)
    h = jnp.dot(w2_ref[...], h, preferred_element_type=jnp.float32) + b2_ref[...]
    h = jnp.maximum(h, 0.0)
    o_ref[0] = jnp.max(h, axis=1, keepdims=True)                 # lane reduce (XLU)


def _pick_group_tile(G):
    """Largest lane-dense tile (multiple of 128) dividing G, preferring >=2 grid
    steps so the v7x megacore can shard the grid across both TensorCores.  For
    the shapes in this module every candidate block is well under the scoped
    VMEM budget on v5e/v6e/v7x."""
    if G % 128 != 0:
        return G                       # full-dim block is always legal
    n128 = G // 128
    for steps in (2, 3, 4):
        if n128 % steps == 0:
            return (n128 // steps) * 128
    return G


def pallas_mlp_max(new_points, layer1, layer2):
    """new_points: [B, S, K, Cin] float32 -> [B, C2, S] (Pallas kernels)."""
    new_points = new_points.astype(jnp.float32)
    B, S, K, Cin = new_points.shape
    (w1, ss1), (w2, ss2) = layer1, layer2
    C1 = w1.shape[1]
    C2 = w2.shape[1]

    # Fold the BN scale into the conv weights; keep only the shift as a bias.
    w1s = (w1 * ss1[0][None, :]).T.astype(jnp.float32)           # (C1, Cin)
    b1 = ss1[1][:, None].astype(jnp.float32)                     # (C1, 1)
    w2s = (w2 * ss2[0][None, :]).T.astype(jnp.float32)           # (C2, C1)
    b2 = ss2[1][:, None].astype(jnp.float32)                     # (C2, 1)
    # Note: matmuls kept in f32 (FLOPs are negligible); bf16 would halve HBM
    # traffic but loosen parity with the f32 reference beyond 2e-3.

    if S == 1:
        # group_all: N points on lanes, reduce over lanes per batch element.
        x = jnp.transpose(new_points[:, 0], (0, 2, 1))           # (B, Cin, N)
        out = pl.pallas_call(
            _sa_mlp_all_kernel,
            out_shape=jax.ShapeDtypeStruct((B, C2, 1), jnp.float32),
            grid=(B,),
            in_specs=[
                pl.BlockSpec((1, Cin, K), lambda b: (b, 0, 0)),
                pl.BlockSpec((C1, Cin), lambda b: (0, 0)),
                pl.BlockSpec((C1, 1), lambda b: (0, 0)),
                pl.BlockSpec((C2, C1), lambda b: (0, 0)),
                pl.BlockSpec((C2, 1), lambda b: (0, 0)),
            ],
            out_specs=pl.BlockSpec((1, C2, 1), lambda b: (b, 0, 0)),
            compiler_params=pltpu.CompilerParams(
                dimension_semantics=("parallel",)),
        )(x, w1s, b1, w2s, b2)
        return out                                               # (B, C2, 1)

    G = B * S
    tg = _pick_group_tile(G)
    # (K, Cin, G): groups on the lane axis, channels on sublanes, samples outer.
    x = jnp.transpose(new_points, (2, 3, 0, 1)).reshape(K, Cin, G)
    out = pl.pallas_call(
        _sa_mlp_kernel,
        out_shape=jax.ShapeDtypeStruct((C2, G), jnp.float32),
        grid=(G // tg,),
        in_specs=[
            pl.BlockSpec((K, Cin, tg), lambda i: (0, 0, i)),
            pl.BlockSpec((C1, Cin), lambda i: (0, 0)),
            pl.BlockSpec((C1, 1), lambda i: (0, 0)),
            pl.BlockSpec((C2, C1), lambda i: (0, 0)),
            pl.BlockSpec((C2, 1), lambda i: (0, 0)),
        ],
        out_specs=pl.BlockSpec((C2, tg), lambda i: (0, i)),
        compiler_params=pltpu.CompilerParams(
            dimension_semantics=("parallel",)),
    )(x, w1s, b1, w2s, b2)                                       # (C2, G)
    return jnp.transpose(out.reshape(C2, B, S), (1, 0, 2))       # (B, C2, S)


def ref_mlp_max(new_points, layer1, layer2):
    """Pure-JAX reference of the kernel path (for correctness checking)."""
    (w1, ss1), (w2, ss2) = layer1, layer2
    h = jnp.maximum(new_points @ w1 * ss1[0] + ss1[1], 0.0)
    h = jnp.maximum(h @ w2 * ss2[0] + ss2[1], 0.0)
    return jnp.transpose(jnp.max(h, axis=2), (0, 2, 1))          # (B, C2, S)


# -----------------------------------------------------------------------------
# Point grouping glue (plain JAX, matches pointnet2 utils used by the module)
# -----------------------------------------------------------------------------
def square_distance(src, dst):
    return jnp.sum((src[:, :, None, :] - dst[:, None, :, :]) ** 2, axis=-1)


def index_points(points, idx):
    B = points.shape[0]
    batch = jnp.arange(B).reshape((B,) + (1,) * (idx.ndim - 1))
    return points[batch, idx]


def farthest_point_sample(xyz, npoint):
    B, N, _ = xyz.shape

    def body(i, carry):
        centroids, distance, farthest = carry
        centroids = centroids.at[:, i].set(farthest)
        centroid = xyz[jnp.arange(B), farthest][:, None, :]      # [B,1,3]
        dist = jnp.sum((xyz - centroid) ** 2, axis=-1)
        distance = jnp.minimum(distance, dist)
        farthest = jnp.argmax(distance, axis=-1).astype(jnp.int32)
        return centroids, distance, farthest

    init = (jnp.zeros((B, npoint), jnp.int32),
            jnp.full((B, N), 1e10, xyz.dtype),
            jnp.zeros((B,), jnp.int32))  # deterministic start point
    centroids, _, _ = lax.fori_loop(0, npoint, body, init)
    return centroids


def query_ball_point(radius, nsample, xyz, new_xyz):
    B, N, _ = xyz.shape
    S = new_xyz.shape[1]
    sqrdists = square_distance(new_xyz, xyz)                     # [B,S,N]
    group_idx = jnp.broadcast_to(jnp.arange(N, dtype=jnp.int32), (B, S, N))
    group_idx = jnp.where(sqrdists > radius ** 2, N, group_idx)
    group_idx = jnp.sort(group_idx, axis=-1)[:, :, :nsample]
    group_first = jnp.broadcast_to(group_idx[:, :, :1], (B, S, nsample))
    group_idx = jnp.where(group_idx == N, group_first, group_idx)
    return group_idx


def sample_and_group(npoint, radius, nsample, xyz, points):
    fps_idx = farthest_point_sample(xyz, npoint)                 # [B,S]
    new_xyz = index_points(xyz, fps_idx)                         # [B,S,3]
    idx = query_ball_point(radius, nsample, xyz, new_xyz)        # [B,S,K]
    grouped_xyz = index_points(xyz, idx)                         # [B,S,K,3]
    grouped_xyz_norm = grouped_xyz - new_xyz[:, :, None, :]
    if points is not None:
        grouped_points = index_points(points, idx)
        new_points = jnp.concatenate([grouped_xyz_norm, grouped_points], axis=-1)
    else:
        new_points = grouped_xyz_norm
    return new_xyz, new_points


def sample_and_group_all(xyz, points):
    B, N, C = xyz.shape
    new_xyz = jnp.zeros((B, 1, C), xyz.dtype)
    grouped_xyz = xyz[:, None, :, :]
    if points is not None:
        new_points = jnp.concatenate([grouped_xyz, points[:, None, :, :]], axis=-1)
    else:
        new_points = grouped_xyz
    return new_xyz, new_points


# -----------------------------------------------------------------------------
# PointNetSetAbstraction / PointNetEncoder forward
# -----------------------------------------------------------------------------
def set_abstraction(xyz, points, layer1, layer2, npoint, radius, nsample,
                    group_all, mlp_fn):
    # xyz: [B,3,N], points: [B,D,N] or None  (PyTorch channel-first layout)
    xyz_t = jnp.transpose(xyz, (0, 2, 1))
    points_t = jnp.transpose(points, (0, 2, 1)) if points is not None else None
    if group_all:
        new_xyz, new_points = sample_and_group_all(xyz_t, points_t)
    else:
        new_xyz, new_points = sample_and_group(npoint, radius, nsample,
                                               xyz_t, points_t)
    new_points_out = mlp_fn(new_points.astype(jnp.float32),
                            layer1, layer2)                      # [B,C2,S]
    new_xyz_out = jnp.transpose(new_xyz, (0, 2, 1))              # [B,3,S]
    return new_xyz_out, new_points_out


def pointnet_encoder_forward(params, l0_xyz, l0_points, hc,
                             mlp_fn=pallas_mlp_max):
    l1_xyz, l1_points = set_abstraction(l0_xyz, l0_points, *params["sa1"],
                                        npoint=256, radius=0.2, nsample=32,
                                        group_all=False, mlp_fn=mlp_fn)
    l2_xyz, l2_points = set_abstraction(l1_xyz, l1_points, *params["sa2"],
                                        npoint=128, radius=0.25, nsample=64,
                                        group_all=False, mlp_fn=mlp_fn)
    l3_xyz, l3_points = set_abstraction(l2_xyz, l2_points, *params["sa3"],
                                        npoint=None, radius=None, nsample=None,
                                        group_all=True, mlp_fn=mlp_fn)
    x = l3_points.reshape(-1, hc * 8)
    return l1_xyz, l1_points, l2_xyz, l2_points, l3_xyz, x


# -----------------------------------------------------------------------------
# Deterministic parameter init (Conv2d 1x1 + BatchNorm2d in eval mode, folded)
# -----------------------------------------------------------------------------
def init_conv_bn(key, cin, cout):
    k = jax.random.split(key, 6)
    w = jax.random.normal(k[0], (cin, cout), jnp.float32) / jnp.sqrt(float(cin))
    b = 0.1 * jax.random.normal(k[1], (cout,), jnp.float32)
    gamma = 1.0 + 0.1 * jax.random.normal(k[2], (cout,), jnp.float32)
    beta = 0.1 * jax.random.normal(k[3], (cout,), jnp.float32)
    mean = 0.1 * jax.random.normal(k[4], (cout,), jnp.float32)
    var = 0.5 + jax.random.uniform(k[5], (cout,), jnp.float32)
    eps = 1e-5
    scale = gamma / jnp.sqrt(var + eps)
    shift = (b - mean) * scale + beta
    return w, jnp.stack([scale, shift], axis=0)


def init_pointnet_encoder(key, hc, in_feature):
    keys = jax.random.split(key, 6)
    return {
        "sa1": (init_conv_bn(keys[0], in_feature, hc),
                init_conv_bn(keys[1], hc, hc * 2)),
        "sa2": (init_conv_bn(keys[2], hc * 2 + 3, hc * 2),
                init_conv_bn(keys[3], hc * 2, hc * 4)),
        "sa3": (init_conv_bn(keys[4], hc * 4 + 3, hc * 4),
                init_conv_bn(keys[5], hc * 4, hc * 8)),
    }


# -----------------------------------------------------------------------------
if __name__ == "__main__":
    hc = 8
    in_feature = 7          # 3 (relative xyz) + 4 per-point features
    B, N = 2, 512

    key = jax.random.PRNGKey(0)
    k_xyz, k_pts, k_par = jax.random.split(key, 3)
    l0_xyz = jax.random.normal(k_xyz, (B, 3, N), jnp.float32)
    l0_points = jax.random.normal(k_pts, (B, in_feature - 3, N), jnp.float32)
    params = init_pointnet_encoder(k_par, hc, in_feature)

    fwd = jax.jit(functools.partial(pointnet_encoder_forward, hc=hc))
    outs = jax.block_until_ready(fwd(params, l0_xyz, l0_points))
    l1_xyz, l1_points, l2_xyz, l2_points, l3_xyz, x = outs

    assert l1_xyz.shape == (B, 3, 256) and l1_points.shape == (B, hc * 2, 256)
    assert l2_xyz.shape == (B, 3, 128) and l2_points.shape == (B, hc * 4, 128)
    assert l3_xyz.shape == (B, 3, 1) and x.shape == (B, hc * 8)

    # Pure-JAX reference (same grouping, jnp MLP) to validate the Pallas kernels.
    ref_fwd = jax.jit(functools.partial(pointnet_encoder_forward, hc=hc,
                                        mlp_fn=ref_mlp_max))
    ref_outs = jax.block_until_ready(ref_fwd(params, l0_xyz, l0_points))
    for got, want in zip(outs, ref_outs):
        assert jnp.allclose(got, want, rtol=2e-3, atol=2e-3), \
            float(jnp.max(jnp.abs(got - want)))

    print("KERNEL_OK")
</pallas_src>

<mosaic_0001>
module attributes {stable_mosaic.version = 11 : i64} {
  func.func @_sa_mlp_kernel(%arg0: i32, %arg1: memref<32x7x256xf32, #tpu.memory_space<vmem>>, %arg2: memref<8x7xf32, #tpu.memory_space<vmem>>, %arg3: memref<8x1xf32, #tpu.memory_space<vmem>>, %arg4: memref<16x8xf32, #tpu.memory_space<vmem>>, %arg5: memref<16x1xf32, #tpu.memory_space<vmem>>, %arg6: memref<16x256xf32, #tpu.memory_space<vmem>>) attributes {dimension_semantics = [#tpu.dimension_semantics<parallel>], iteration_bounds = array<i64: 2>, scalar_prefetch = 0 : i64, scratch_operands = 0 : i64, tpu.core_type = #tpu.core_type<tc>, window_params = [{transform_indices = @transform_0, window_bounds = array<i64: 32, 7, 256>}, {pipeline_mode = #tpu.pipeline_mode<synchronous>, transform_indices = @transform_1, window_bounds = array<i64: 8, 7>}, {pipeline_mode = #tpu.pipeline_mode<synchronous>, transform_indices = @transform_2, window_bounds = array<i64: 8, 1>}, {pipeline_mode = #tpu.pipeline_mode<synchronous>, transform_indices = @transform_3, window_bounds = array<i64: 16, 8>}, {pipeline_mode = #tpu.pipeline_mode<synchronous>, transform_indices = @transform_4, window_bounds = array<i64: 16, 1>}, {transform_indices = @transform_5, window_bounds = array<i64: 16, 256>}]} {
    %c0 = arith.constant 0 : index
    %c0_0 = arith.constant 0 : index
    %0 = vector.load %arg2[%c0, %c0_0] : memref<8x7xf32, #tpu.memory_space<vmem>>, vector<8x7xf32>
    %c0_1 = arith.constant 0 : index
    %c0_2 = arith.constant 0 : index
    %1 = vector.load %arg3[%c0_1, %c0_2] : memref<8x1xf32, #tpu.memory_space<vmem>>, vector<8x1xf32>
    %c0_3 = arith.constant 0 : index
    %c0_4 = arith.constant 0 : index
    %2 = vector.load %arg4[%c0_3, %c0_4] : memref<16x8xf32, #tpu.memory_space<vmem>>, vector<16x8xf32>
    %c0_5 = arith.constant 0 : index
    %c0_6 = arith.constant 0 : index
    %3 = vector.load %arg5[%c0_5, %c0_6] : memref<16x1xf32, #tpu.memory_space<vmem>>, vector<16x1xf32>
    %cst = arith.constant 0.000000e+00 : f32
    %4 = vector.broadcast %cst : f32 to vector<16x256xf32>
    %c0_i32 = arith.constant 0 : i32
    %c32_i32 = arith.constant 32 : i32
    %5 = arith.addi %c0_i32, %c32_i32 : i32
    %c1_i32 = arith.constant 1 : i32
    %6 = scf.for %arg7 = %c0_i32 to %5 step %c1_i32 iter_args(%arg8 = %4) -> (vector<16x256xf32>)  : i32 {
      %8 = arith.index_cast %arg7 : i32 to index
      %c0_10 = arith.constant 0 : index
      %c0_11 = arith.constant 0 : index
      %9 = vector.load %arg1[%8, %c0_10, %c0_11] : memref<32x7x256xf32, #tpu.memory_space<vmem>>, vector<1x7x256xf32>
      %10 = vector.shape_cast %9 : vector<1x7x256xf32> to vector<7x256xf32>
      %cst_12 = arith.constant dense<0.000000e+00> : vector<8x256xf32>
      %11 = tpu.matmul %0, %10, %cst_12 {dimension_numbers = #tpu.dot_dimension_numbers<[1], [0], [0], [1], [0, 0, 1, 1], [], []>} : vector<8x7xf32>, vector<7x256xf32>, vector<8x256xf32> -> vector<8x256xf32>
      %12 = vector.broadcast %1 : vector<8x1xf32> to vector<8x256xf32>
      %13 = arith.addf %11, %12 : vector<8x256xf32>
      %cst_13 = arith.constant 0.000000e+00 : f32
      %14 = vector.broadcast %cst_13 : f32 to vector<8x256xf32>
      %15 = arith.maximumf %13, %14 : vector<8x256xf32>
      %cst_14 = arith.constant dense<0.000000e+00> : vector<16x256xf32>
      %16 = tpu.matmul %2, %15, %cst_14 {dimension_numbers = #tpu.dot_dimension_numbers<[1], [0], [0], [1], [0, 0, 1, 1], [], []>} : vector<16x8xf32>, vector<8x256xf32>, vector<16x256xf32> -> vector<16x256xf32>
      %17 = vector.broadcast %3 : vector<16x1xf32> to vector<16x256xf32>
      %18 = arith.addf %16, %17 : vector<16x256xf32>
      %cst_15 = arith.constant 0.000000e+00 : f32
      %19 = vector.broadcast %cst_15 : f32 to vector<16x256xf32>
      %20 = arith.maximumf %18, %19 : vector<16x256xf32>
      %21 = arith.maximumf %arg8, %20 : vector<16x256xf32>
      scf.yield %21 : vector<16x256xf32>
    }
    %c32_i32_7 = arith.constant 32 : i32
    %c0_8 = arith.constant 0 : index
    %c0_9 = arith.constant 0 : index
    %7 = vector.load %arg6[%c0_8, %c0_9] : memref<16x256xf32, #tpu.memory_space<vmem>>, vector<16x256xf32>
    tpu.vector_store %arg6[%c0_8, %c0_9], %6 {strides = array<i32>} : memref<16x256xf32, #tpu.memory_space<vmem>>, vector<16x256xf32>,
    return
  }
  func.func @transform_0(%arg0: i32) -> (i32, i32, i32) {
    %c0_i32 = arith.constant 0 : i32
    %c0_i32_0 = arith.constant 0 : i32
    %c0_i32_1 = arith.constant 0 : i32
    return %c0_i32, %c0_i32_0, %arg0 : i32, i32, i32
  }
  func.func @transform_1(%arg0: i32) -> (i32, i32) {
    %c0_i32 = arith.constant 0 : i32
    %c0_i32_0 = arith.constant 0 : i32
    %c0_i32_1 = arith.constant 0 : i32
    return %c0_i32, %c0_i32_0 : i32, i32
  }
  func.func @transform_2(%arg0: i32) -> (i32, i32) {
    %c0_i32 = arith.constant 0 : i32
    %c0_i32_0 = arith.constant 0 : i32
    %c0_i32_1 = arith.constant 0 : i32
    return %c0_i32, %c0_i32_0 : i32, i32
  }
  func.func @transform_3(%arg0: i32) -> (i32, i32) {
    %c0_i32 = arith.constant 0 : i32
    %c0_i32_0 = arith.constant 0 : i32
    %c0_i32_1 = arith.constant 0 : i32
    return %c0_i32, %c0_i32_0 : i32, i32
  }
  func.func @transform_4(%arg0: i32) -> (i32, i32) {
    %c0_i32 = arith.constant 0 : i32
    %c0_i32_0 = arith.constant 0 : i32
    %c0_i32_1 = arith.constant 0 : i32
    return %c0_i32, %c0_i32_0 : i32, i32
  }
  func.func @transform_5(%arg0: i32) -> (i32, i32) {
    %c0_i32 = arith.constant 0 : i32
    %c0_i32_0 = arith.constant 0 : i32
    return %c0_i32, %arg0 : i32, i32
  }
}

module attributes {stable_mosaic.version = 11 : i64} {
  func.func @_sa_mlp_kernel(%arg0: i32, %arg1: memref<64x19x128xf32, #tpu.memory_space<vmem>>, %arg2: memref<16x19xf32, #tpu.memory_space<vmem>>, %arg3: memref<16x1xf32, #tpu.memory_space<vmem>>, %arg4: memref<32x16xf32, #tpu.memory_space<vmem>>, %arg5: memref<32x1xf32, #tpu.memory_space<vmem>>, %arg6: memref<32x128xf32, #tpu.memory_space<vmem>>) attributes {dimension_semantics = [#tpu.dimension_semantics<parallel>], iteration_bounds = array<i64: 2>, scalar_prefetch = 0 : i64, scratch_operands = 0 : i64, tpu.core_type = #tpu.core_type<tc>, window_params = [{transform_indices = @transform_0, window_bounds = array<i64: 64, 19, 128>}, {pipeline_mode = #tpu.pipeline_mode<synchronous>, transform_indices = @transform_1, window_bounds = array<i64: 16, 19>}, {pipeline_mode = #tpu.pipeline_mode<synchronous>, transform_indices = @transform_2, window_bounds = array<i64: 16, 1>}, {pipeline_mode = #tpu.pipeline_mode<synchronous>, transform_indices = @transform_3, window_bounds = array<i64: 32, 16>}, {pipeline_mode = #tpu.pipeline_mode<synchronous>, transform_indices = @transform_4, window_bounds = array<i64: 32, 1>}, {transform_indices = @transform_5, window_bounds = array<i64: 32, 128>}]} {
    %c0 = arith.constant 0 : index
    %c0_0 = arith.constant 0 : index
    %0 = vector.load %arg2[%c0, %c0_0] : memref<16x19xf32, #tpu.memory_space<vmem>>, vector<16x19xf32>
    %c0_1 = arith.constant 0 : index
    %c0_2 = arith.constant 0 : index
    %1 = vector.load %arg3[%c0_1, %c0_2] : memref<16x1xf32, #tpu.memory_space<vmem>>, vector<16x1xf32>
    %c0_3 = arith.constant 0 : index
    %c0_4 = arith.constant 0 : index
    %2 = vector.load %arg4[%c0_3, %c0_4] : memref<32x16xf32, #tpu.memory_space<vmem>>, vector<32x16xf32>
    %c0_5 = arith.constant 0 : index
    %c0_6 = arith.constant 0 : index
    %3 = vector.load %arg5[%c0_5, %c0_6] : memref<32x1xf32, #tpu.memory_space<vmem>>, vector<32x1xf32>
    %cst = arith.constant 0.000000e+00 : f32
    %4 = vector.broadcast %cst : f32 to vector<32x128xf32>
    %c0_i32 = arith.constant 0 : i32
    %c64_i32 = arith.constant 64 : i32
    %5 = arith.addi %c0_i32, %c64_i32 : i32
    %c1_i32 = arith.constant 1 : i32
    %6 = scf.for %arg7 = %c0_i32 to %5 step %c1_i32 iter_args(%arg8 = %4) -> (vector<32x128xf32>)  : i32 {
      %8 = arith.index_cast %arg7 : i32 to index
      %c0_10 = arith.constant 0 : index
      %c0_11 = arith.constant 0 : index
      %9 = vector.load %arg1[%8, %c0_10, %c0_11] : memref<64x19x128xf32, #tpu.memory_space<vmem>>, vector<1x19x128xf32>
      %10 = vector.shape_cast %9 : vector<1x19x128xf32> to vector<19x128xf32>
      %cst_12 = arith.constant dense<0.000000e+00> : vector<16x128xf32>
      %11 = tpu.matmul %0, %10, %cst_12 {dimension_numbers = #tpu.dot_dimension_numbers<[1], [0], [0], [1], [0, 0, 1, 1], [], []>} : vector<16x19xf32>, vector<19x128xf32>, vector<16x128xf32> -> vector<16x128xf32>
      %12 = vector.broadcast %1 : vector<16x1xf32> to vector<16x128xf32>
      %13 = arith.addf %11, %12 : vector<16x128xf32>
      %cst_13 = arith.constant 0.000000e+00 : f32
      %14 = vector.broadcast %cst_13 : f32 to vector<16x128xf32>
      %15 = arith.maximumf %13, %14 : vector<16x128xf32>
      %cst_14 = arith.constant dense<0.000000e+00> : vector<32x128xf32>
      %16 = tpu.matmul %2, %15, %cst_14 {dimension_numbers = #tpu.dot_dimension_numbers<[1], [0], [0], [1], [0, 0, 1, 1], [], []>} : vector<32x16xf32>, vector<16x128xf32>, vector<32x128xf32> -> vector<32x128xf32>
      %17 = vector.broadcast %3 : vector<32x1xf32> to vector<32x128xf32>
      %18 = arith.addf %16, %17 : vector<32x128xf32>
      %cst_15 = arith.constant 0.000000e+00 : f32
      %19 = vector.broadcast %cst_15 : f32 to vector<32x128xf32>
      %20 = arith.maximumf %18, %19 : vector<32x128xf32>
      %21 = arith.maximumf %arg8, %20 : vector<32x128xf32>
      scf.yield %21 : vector<32x128xf32>
    }
    %c64_i32_7 = arith.constant 64 : i32
    %c0_8 = arith.constant 0 : index
    %c0_9 = arith.constant 0 : index
    %7 = vector.load %arg6[%c0_8, %c0_9] : memref<32x128xf32, #tpu.memory_space<vmem>>, vector<32x128xf32>
    tpu.vector_store %arg6[%c0_8, %c0_9], %6 {strides = array<i32>} : memref<32x128xf32, #tpu.memory_space<vmem>>, vector<32x128xf32>,
    return
  }
  func.func @transform_0(%arg0: i32) -> (i32, i32, i32) {
    %c0_i32 = arith.constant 0 : i32
    %c0_i32_0 = arith.constant 0 : i32
    %c0_i32_1 = arith.constant 0 : i32
    return %c0_i32, %c0_i32_0, %arg0 : i32, i32, i32
  }
  func.func @transform_1(%arg0: i32) -> (i32, i32) {
    %c0_i32 = arith.constant 0 : i32
    %c0_i32_0 = arith.constant 0 : i32
    %c0_i32_1 = arith.constant 0 : i32
    return %c0_i32, %c0_i32_0 : i32, i32
  }
  func.func @transform_2(%arg0: i32) -> (i32, i32) {
    %c0_i32 = arith.constant 0 : i32
    %c0_i32_0 = arith.constant 0 : i32
    %c0_i32_1 = arith.constant 0 : i32
    return %c0_i32, %c0_i32_0 : i32, i32
  }
  func.func @transform_3(%arg0: i32) -> (i32, i32) {
    %c0_i32 = arith.constant 0 : i32
    %c0_i32_0 = arith.constant 0 : i32
    %c0_i32_1 = arith.constant 0 : i32
    return %c0_i32, %c0_i32_0 : i32, i32
  }
  func.func @transform_4(%arg0: i32) -> (i32, i32) {
    %c0_i32 = arith.constant 0 : i32
    %c0_i32_0 = arith.constant 0 : i32
    %c0_i32_1 = arith.constant 0 : i32
    return %c0_i32, %c0_i32_0 : i32, i32
  }
  func.func @transform_5(%arg0: i32) -> (i32, i32) {
    %c0_i32 = arith.constant 0 : i32
    %c0_i32_0 = arith.constant 0 : i32
    return %c0_i32, %arg0 : i32, i32
  }
}

module attributes {stable_mosaic.version = 11 : i64} {
  func.func @_sa_mlp_all_kernel(%arg0: i32, %arg1: memref<1x35x128xf32, #tpu.memory_space<vmem>>, %arg2: memref<32x35xf32, #tpu.memory_space<vmem>>, %arg3: memref<32x1xf32, #tpu.memory_space<vmem>>, %arg4: memref<64x32xf32, #tpu.memory_space<vmem>>, %arg5: memref<64x1xf32, #tpu.memory_space<vmem>>, %arg6: memref<1x64x1xf32, #tpu.memory_space<vmem>>) attributes {dimension_semantics = [#tpu.dimension_semantics<parallel>], iteration_bounds = array<i64: 2>, scalar_prefetch = 0 : i64, scratch_operands = 0 : i64, tpu.core_type = #tpu.core_type<tc>, window_params = [{transform_indices = @transform_0, window_bounds = array<i64: 1, 35, 128>}, {pipeline_mode = #tpu.pipeline_mode<synchronous>, transform_indices = @transform_1, window_bounds = array<i64: 32, 35>}, {pipeline_mode = #tpu.pipeline_mode<synchronous>, transform_indices = @transform_2, window_bounds = array<i64: 32, 1>}, {pipeline_mode = #tpu.pipeline_mode<synchronous>, transform_indices = @transform_3, window_bounds = array<i64: 64, 32>}, {pipeline_mode = #tpu.pipeline_mode<synchronous>, transform_indices = @transform_4, window_bounds = array<i64: 64, 1>}, {transform_indices = @transform_5, window_bounds = array<i64: 1, 64, 1>}]} {
    %c0 = arith.constant 0 : index
    %c0_0 = arith.constant 0 : index
    %c0_1 = arith.constant 0 : index
    %0 = vector.load %arg1[%c0, %c0_0, %c0_1] : memref<1x35x128xf32, #tpu.memory_space<vmem>>, vector<1x35x128xf32>
    %1 = vector.shape_cast %0 : vector<1x35x128xf32> to vector<35x128xf32>
    %c0_2 = arith.constant 0 : index
    %c0_3 = arith.constant 0 : index
    %2 = vector.load %arg2[%c0_2, %c0_3] : memref<32x35xf32, #tpu.memory_space<vmem>>, vector<32x35xf32>
    %cst = arith.constant dense<0.000000e+00> : vector<32x128xf32>
    %3 = tpu.matmul %2, %1, %cst {dimension_numbers = #tpu.dot_dimension_numbers<[1], [0], [0], [1], [0, 0, 1, 1], [], []>} : vector<32x35xf32>, vector<35x128xf32>, vector<32x128xf32> -> vector<32x128xf32>
    %c0_4 = arith.constant 0 : index
    %c0_5 = arith.constant 0 : index
    %4 = vector.load %arg3[%c0_4, %c0_5] : memref<32x1xf32, #tpu.memory_space<vmem>>, vector<32x1xf32>
    %5 = vector.broadcast %4 : vector<32x1xf32> to vector<32x128xf32>
    %6 = arith.addf %3, %5 : vector<32x128xf32>
    %cst_6 = arith.constant 0.000000e+00 : f32
    %7 = vector.broadcast %cst_6 : f32 to vector<32x128xf32>
    %8 = arith.maximumf %6, %7 : vector<32x128xf32>
    %c0_7 = arith.constant 0 : index
    %c0_8 = arith.constant 0 : index
    %9 = vector.load %arg4[%c0_7, %c0_8] : memref<64x32xf32, #tpu.memory_space<vmem>>, vector<64x32xf32>
    %cst_9 = arith.constant dense<0.000000e+00> : vector<64x128xf32>
    %10 = tpu.matmul %9, %8, %cst_9 {dimension_numbers = #tpu.dot_dimension_numbers<[1], [0], [0], [1], [0, 0, 1, 1], [], []>} : vector<64x32xf32>, vector<32x128xf32>, vector<64x128xf32> -> vector<64x128xf32>
    %c0_10 = arith.constant 0 : index
    %c0_11 = arith.constant 0 : index
    %11 = vector.load %arg5[%c0_10, %c0_11] : memref<64x1xf32, #tpu.memory_space<vmem>>, vector<64x1xf32>
    %12 = vector.broadcast %11 : vector<64x1xf32> to vector<64x128xf32>
    %13 = arith.addf %10, %12 : vector<64x128xf32>
    %cst_12 = arith.constant 0.000000e+00 : f32
    %14 = vector.broadcast %cst_12 : f32 to vector<64x128xf32>
    %15 = arith.maximumf %13, %14 : vector<64x128xf32>
    %cst_13 = arith.constant dense<0xFF800000> : vector<64xf32>
    %16 = vector.multi_reduction <maximumf>, %15, %cst_13 [1] : vector<64x128xf32> to vector<64xf32>
    %17 = vector.shape_cast %16 : vector<64xf32> to vector<64x1xf32>
    %c0_14 = arith.constant 0 : index
    %c0_15 = arith.constant 0 : index
    %c0_16 = arith.constant 0 : index
    %18 = vector.load %arg6[%c0_14, %c0_15, %c0_16] : memref<1x64x1xf32, #tpu.memory_space<vmem>>, vector<1x64x1xf32>
    %19 = vector.shape_cast %18 : vector<1x64x1xf32> to vector<64x1xf32>
    %20 = vector.shape_cast %17 : vector<64x1xf32> to vector<1x64x1xf32>
    tpu.vector_store %arg6[%c0_14, %c0_15, %c0_16], %20 {strides = array<i32>} : memref<1x64x1xf32, #tpu.memory_space<vmem>>, vector<1x64x1xf32>,
    return
  }
  func.func @transform_0(%arg0: i32) -> (i32, i32, i32) {
    %c0_i32 = arith.constant 0 : i32
    %c0_i32_0 = arith.constant 0 : i32
    %c0_i32_1 = arith.constant 0 : i32
    return %arg0, %c0_i32, %c0_i32_0 : i32, i32, i32
  }
  func.func @transform_1(%arg0: i32) -> (i32, i32) {
    %c0_i32 = arith.constant 0 : i32
    %c0_i32_0 = arith.constant 0 : i32
    %c0_i32_1 = arith.constant 0 : i32
    return %c0_i32, %c0_i32_0 : i32, i32
  }
  func.func @transform_2(%arg0: i32) -> (i32, i32) {
    %c0_i32 = arith.constant 0 : i32
    %c0_i32_0 = arith.constant 0 : i32
    %c0_i32_1 = arith.constant 0 : i32
    return %c0_i32, %c0_i32_0 : i32, i32
  }
  func.func @transform_3(%arg0: i32) -> (i32, i32) {
    %c0_i32 = arith.constant 0 : i32
    %c0_i32_0 = arith.constant 0 : i32
    %c0_i32_1 = arith.constant 0 : i32
    return %c0_i32, %c0_i32_0 : i32, i32
  }
  func.func @transform_4(%arg0: i32) -> (i32, i32) {
    %c0_i32 = arith.constant 0 : i32
    %c0_i32_0 = arith.constant 0 : i32
    %c0_i32_1 = arith.constant 0 : i32
    return %c0_i32, %c0_i32_0 : i32, i32
  }
  func.func @transform_5(%arg0: i32) -> (i32, i32, i32) {
    %c0_i32 = arith.constant 0 : i32
    %c0_i32_0 = arith.constant 0 : i32
    %c0_i32_1 = arith.constant 0 : i32
    return %arg0, %c0_i32, %c0_i32_0 : i32, i32, i32
  }
}

</mosaic_0001>

<llo_original>
// kernel: custom-call.16
$region0: #{custom-call.16}
  %s0 = inlined_call_operand.vmem [shape: f32[2,512], index: 0, kind: output, shape index: {}]

// kernel: pointnet_encoder_forward.3
$region0: #{pointnet_encoder_forward.3}
  #allocation0 [shape = 'u32[]', space=smem, size = 0x4, offset = 0x4, fixed_abs, tag = 'smem constant byte address 0x4 - core index']
  #allocation1 [shape = 'u32[72,128]{1,0:T(1,128)}', space=vmem, size = 0x9000, scoped, tag = 'internal scratch']
  %s0 = inlined_call_operand.vmem [shape: f32[32,7,512], index: 0, kind: input, shape index: {}]
  %s1 = inlined_call_operand.vmem [shape: f32[8,7], index: 1, kind: input, shape index: {}]
  %s2 = inlined_call_operand.vmem [shape: f32[8,1], index: 2, kind: input, shape index: {}]
  %s3 = inlined_call_operand.vmem [shape: f32[16,8], index: 3, kind: input, shape index: {}]
  %s4 = inlined_call_operand.vmem [shape: f32[16,1], index: 4, kind: input, shape index: {}]
  %s5 = inlined_call_operand.vmem [shape: f32[16,512], index: 5, kind: output, shape index: {}]
  %s6 = sld [smem:[#allocation0]]
  $region102: #{pointnet_encoder_forward.3} parent=0
    _
  %s8 = ssub.s32 1, %s6
  %s9 = scalar_select 0, %s8, %s6
  $region1: #{pointnet_encoder_forward.3} parent=0
    #allocation2 [shape = 'u8[524288]{0}', space=vmem, size = 0x80000, scoped, tag = 'input window, operand 0']
    #allocation3 [shape = 'u8[32768]{0}', space=vmem, size = 0x8000, scoped, tag = 'output window, operand 0']
    loop: start=0, step=1, limit=4
    $region2: #{pointnet_encoder_forward.3} parent=1 // loop_pre_header
      _
    $region3: #{pointnet_encoder_forward.3} parent=1 // loop_header
      %s11 = sphi 0, %s15
      %p12 = scmp.ge.s32.totalorder %s11, 4
      %s21 = sphi 0, %s23
      %s24 = sphi 0, %s21
      %s25 = sphi 0, %s24
      %s41 = sphi 0, %s25
      %s45 = sphi 0, %s45
      %s47 = sphi 0, %s45
      %s48 = sphi 0, %s47
      %s62 = sphi 0, %s48
      %s66 = sphi 0, %s66
      %s68 = sphi 0, %s66
      %s69 = sphi 0, %s68
      %s83 = sphi 0, %s69
      %s87 = sphi 0, %s87
      %s89 = sphi 0, %s87
      %s90 = sphi 0, %s89
      %s104 = sphi 0, %s90
      %s108 = sphi 0, %s108
      %s110 = sphi 0, %s108
      %s111 = sphi 0, %s110
      %s125 = sphi 0, %s111
      %s131 = sphi 0, %s133
      %s134 = sphi 0, %s131
      %s135 = sphi 0, %s134
      %s151 = sphi 0, %s135
    $region4: #{pointnet_encoder_forward.3} parent=1 // loop_header_branch
      %14 = sbr.rel (%p12) target = $region8
    $region5: #{pointnet_encoder_forward.3} parent=1 // loop_body
      %s16 = ssub.s32 %s11, 1
      %s17 = ssub.s32 %s11, 2
      %s18 = sadd.s32 %s11, 1
      %s19 = ssub.s32 %s11, %s18
      %p20 = scmp.eq.s32.totalorder %s19, 0
      %s22 = sadd.s32 %s21, 1
      %s23 = scalar_select %p20, %s21, %s22
      %p26 = pneg %p20
      %p27 = scmp.eq.s32.totalorder %s11, 1
      %p28 = por %p26, %p27
      %p29 = scmp.ne.s32.totalorder %s21, %s24
      %p30 = scmp.eq.s32.totalorder %s11, 0
      %p31 = por %p29, %p30
      %p32 = scmp.ne.s32.totalorder %s21, %s24
      %p33 = scmp.eq.s32.totalorder %s16, 1
      %p34 = por %p32, %p33
      %p35 = scmp.ne.s32.totalorder %s24, %s25
      %p36 = scmp.eq.s32.totalorder %s16, 0
      %p37 = por %p35, %p36
      %p38 = scmp.ne.s32.totalorder %s24, %s25
      %p39 = scmp.eq.s32.totalorder %s17, 1
      %p40 = por %p38, %p39
      %p42 = scmp.ne.s32.totalorder %s25, %s41
      %p43 = scmp.eq.s32.totalorder %s17, 0
      %p44 = por %p42, %p43
      %s46 = sadd.s32 %s45, 1
      %p49 = scmp.eq.s32.totalorder %s11, 1
      %p50 = scmp.ne.s32.totalorder %s45, %s47
      %p51 = scmp.eq.s32.totalorder %s11, 0
      %p52 = por %p50, %p51
      %p53 = scmp.ne.s32.totalorder %s45, %s47
      %p54 = scmp.eq.s32.totalorder %s16, 1
      %p55 = por %p53, %p54
      %p56 = scmp.ne.s32.totalorder %s47, %s48
      %p57 = scmp.eq.s32.totalorder %s16, 0
      %p58 = por %p56, %p57
      %p59 = scmp.ne.s32.totalorder %s47, %s48
      %p60 = scmp.eq.s32.totalorder %s17, 1
      %p61 = por %p59, %p60
      %p63 = scmp.ne.s32.totalorder %s48, %s62
      %p64 = scmp.eq.s32.totalorder %s17, 0
      %p65 = por %p63, %p64
      %s67 = sadd.s32 %s66, 1
      %p70 = scmp.eq.s32.totalorder %s11, 1
      %p71 = scmp.ne.s32.totalorder %s66, %s68
      %p72 = scmp.eq.s32.totalorder %s11, 0
      %p73 = por %p71, %p72
      %p74 = scmp.ne.s32.totalorder %s66, %s68
      %p75 = scmp.eq.s32.totalorder %s16, 1
      %p76 = por %p74, %p75
      %p77 = scmp.ne.s32.totalorder %s68, %s69
      %p78 = scmp.eq.s32.totalorder %s16, 0
      %p79 = por %p77, %p78
      %p80 = scmp.ne.s32.totalorder %s68, %s69
      %p81 = scmp.eq.s32.totalorder %s17, 1
      %p82 = por %p80, %p81
      %p84 = scmp.ne.s32.totalorder %s69, %s83
      %p85 = scmp.eq.s32.totalorder %s17, 0
      %p86 = por %p84, %p85
      %s88 = sadd.s32 %s87, 1
      %p91 = scmp.eq.s32.totalorder %s11, 1
      %p92 = scmp.ne.s32.totalorder %s87, %s89
      %p93 = scmp.eq.s32.totalorder %s11, 0
      %p94 = por %p92, %p93
      %p95 = scmp.ne.s32.totalorder %s87, %s89
      %p96 = scmp.eq.s32.totalorder %s16, 1
      %p97 = por %p95, %p96
      %p98 = scmp.ne.s32.totalorder %s89, %s90
      %p99 = scmp.eq.s32.totalorder %s16, 0
      %p100 = por %p98, %p99
      %p101 = scmp.ne.s32.totalorder %s89, %s90
      %p102 = scmp.eq.s32.totalorder %s17, 1
      %p103 = por %p101, %p102
      %p105 = scmp.ne.s32.totalorder %s90, %s104
      %p106 = scmp.eq.s32.totalorder %s17, 0
      %p107 = por %p105, %p106
      %s109 = sadd.s32 %s108, 1
      %p112 = scmp.eq.s32.totalorder %s11, 1
      %p113 = scmp.ne.s32.totalorder %s108, %s110
      %p114 = scmp.eq.s32.totalorder %s11, 0
      %p115 = por %p113, %p114
      %p116 = scmp.ne.s32.totalorder %s108, %s110
      %p117 = scmp.eq.s32.totalorder %s16, 1
      %p118 = por %p116, %p117
      %p119 = scmp.ne.s32.totalorder %s110, %s111
      %p120 = scmp.eq.s32.totalorder %s16, 0
      %p121 = por %p119, %p120
      %p122 = scmp.ne.s32.totalorder %s110, %s111
      %p123 = scmp.eq.s32.totalorder %s17, 1
      %p124 = por %p122, %p123
      %p126 = scmp.ne.s32.totalorder %s111, %s125
      %p127 = scmp.eq.s32.totalorder %s17, 0
      %p128 = por %p126, %p127
      %s129 = ssub.s32 %s11, %s18
      %p130 = scmp.eq.s32.totalorder %s129, 0
      %s132 = sadd.s32 %s131, 1
      %s133 = scalar_select %p130, %s131, %s132
      %p136 = pneg %p130
      %p137 = scmp.eq.s32.totalorder %s11, 1
      %p138 = por %p136, %p137
      %p139 = scmp.ne.s32.totalorder %s131, %s134
      %p140 = scmp.eq.s32.totalorder %s11, 0
      %p141 = por %p139, %p140
      %p142 = scmp.ne.s32.totalorder %s131, %s134
      %p143 = scmp.eq.s32.totalorder %s16, 1
      %p144 = por %p142, %p143
      %p145 = scmp.ne.s32.totalorder %s134, %s135
      %p146 = scmp.eq.s32.totalorder %s16, 0
      %p147 = por %p145, %p146
      %p148 = scmp.ne.s32.totalorder %s134, %s135
      %p149 = scmp.eq.s32.totalorder %s17, 1
      %p150 = por %p148, %p149
      %p152 = scmp.ne.s32.totalorder %s135, %s151
      %p153 = scmp.eq.s32.totalorder %s17, 0
      %p154 = por %p152, %p153
      %p155 = scmp.le.s32.totalorder 1, %s11
      %p156 = scmp.lt.s32.totalorder %s11, 3
      %p157 = pnand %p155, %p156
      %p158 = pneg %p157
      // Predicated region
      $region9: #{pointnet_encoder_forward.3} parent=5 // pred_check
        _
      $region10: #{pointnet_encoder_forward.3} parent=5 // pred_check_branch
        %160 = sbr.rel (%p157) target = $region12
      $region11: #{pointnet_encoder_forward.3} parent=5 // pred_region
        %s161 = ssub.s32 %s11, 1
        // Predicated region
        $region13: #{pointnet_encoder_forward.3} parent=11 // pred_check
          %p162 = pneg %p58
        $region14: #{pointnet_encoder_forward.3} parent=11 // pred_check_branch
          %164 = sbr.rel (%p162) target = $region16
        $region15: #{pointnet_encoder_forward.3} parent=11 // pred_region
          _
        $region16: #{pointnet_encoder_forward.3} parent=11 // pred_fallthru
          _
        // Predicated region
        $region17: #{pointnet_encoder_forward.3} parent=11 // pred_check
          %p165 = pneg %p79
        $region18: #{pointnet_encoder_forward.3} parent=11 // pred_check_branch
          %167 = sbr.rel (%p165) target = $region20
        $region19: #{pointnet_encoder_forward.3} parent=11 // pred_region
          _
        $region20: #{pointnet_encoder_forward.3} parent=11 // pred_fallthru
          _
        // Predicated region
        $region21: #{pointnet_encoder_forward.3} parent=11 // pred_check
          %p168 = pneg %p100
        $region22: #{pointnet_encoder_forward.3} parent=11 // pred_check_branch
          %170 = sbr.rel (%p168) target = $region24
        $region23: #{pointnet_encoder_forward.3} parent=11 // pred_region
          _
        $region24: #{pointnet_encoder_forward.3} parent=11 // pred_fallthru
          _
        // Predicated region
        $region25: #{pointnet_encoder_forward.3} parent=11 // pred_check
          %p171 = pneg %p121
        $region26: #{pointnet_encoder_forward.3} parent=11 // pred_check_branch
          %173 = sbr.rel (%p171) target = $region28
        $region27: #{pointnet_encoder_forward.3} parent=11 // pred_region
          _
        $region28: #{pointnet_encoder_forward.3} parent=11 // pred_fallthru
          _
      $region12: #{pointnet_encoder_forward.3} parent=5 // pred_fallthru
        _
      %p174 = scmp.lt.s32.totalorder %s11, 2
      // Predicated region
      $region29: #{pointnet_encoder_forward.3} parent=5 // pred_check
        %p175 = pneg %p174
      $region30: #{pointnet_encoder_forward.3} parent=5 // pred_check_branch
        %177 = sbr.rel (%p175) target = $region32
      $region31: #{pointnet_encoder_forward.3} parent=5 // pred_region
        // Predicated region
        $region33: #{pointnet_encoder_forward.3} parent=31 // pred_check
          %p178 = pneg %p31
        $region34: #{pointnet_encoder_forward.3} parent=31 // pred_check_branch
          %180 = sbr.rel (%p178) target = $region36
        $region35: #{pointnet_encoder_forward.3} parent=31 // pred_region
          %s181 = sand.u32 %s21, 1
          %s182 = sand.u32 %s21, 1
          %s183 = smul.addr %s182, 512
          %s184 = scalar_lea.vmem [#allocation2], %s183
          %s185 = smul.u32 2, %s11
          %s186 = smul.addr %s185, 8
          %s187 = scalar_lea.vmem %s0, %s186
          // Predicated region
          $region37: #{pointnet_encoder_forward.3} parent=35 // pred_check
            _
          $region38: #{pointnet_encoder_forward.3} parent=35 // pred_check_branch
            %189 = sbr.rel (0) target = $region40
          $region39: #{pointnet_encoder_forward.3} parent=35 // pred_region
            // Predicated region
            $region41: #{pointnet_encoder_forward.3} parent=39 // pred_check
              _
            $region42: #{pointnet_encoder_forward.3} parent=39 // pred_check_branch
              %191 = sbr.rel (0) target = $region44
            $region43: #{pointnet_encoder_forward.3} parent=39 // pred_region
              loop: start=0, step=1, limit=1
              $region45: #{pointnet_encoder_forward.3} parent=43 // loop_pre_header
                _
              $region46: #{pointnet_encoder_forward.3} parent=43 // loop_header
                %s193 = sphi 0, %s197
                %p194 = scmp.ge.s32.totalorder %s193, 1
                %s198 = sphi %s187, %s187
                %s199 = sphi %s184, %s184
              $region47: #{pointnet_encoder_forward.3} parent=43 // loop_header_branch
                %196 = sbr.rel (%p194) target = $region51
              $region48: #{pointnet_encoder_forward.3} parent=43 // loop_body
                %v200 = vld [vmem:[%s198] sm:$0xff]
                %201 = vst [vmem:[%s199] sm:$0xff] %v200
                %v202 = vld [vmem:[%s198 + $0x8] sm:$0xff]
                %203 = vst [vmem:[%s199 + $0x8] sm:$0xff] %v202
                %v204 = vld [vmem:[%s198 + $0x20] sm:$0xff]
                %205 = vst [vmem:[%s199 + $0x10] sm:$0xff] %v204
                %v206 = vld [vmem:[%s198 + $0x28] sm:$0xff]
                %207 = vst [vmem:[%s199 + $0x18] sm:$0xff] %v206
                %v208 = vld [vmem:[%s198 + $0x40] sm:$0xff]
                %209 = vst [vmem:[%s199 + $0x20] sm:$0xff] %v208
                %v210 = vld [vmem:[%s198 + $0x48] sm:$0xff]
                %211 = vst [vmem:[%s199 + $0x28] sm:$0xff] %v210
                %v212 = vld [vmem:[%s198 + $0x60] sm:$0xff]
                %213 = vst [vmem:[%s199 + $0x30] sm:$0xff] %v212
                %v214 = vld [vmem:[%s198 + $0x68] sm:$0xff]
                %215 = vst [vmem:[%s199 + $0x38] sm:$0xff] %v214
                %v216 = vld [vmem:[%s198 + $0x80] sm:$0xff]
                %217 = vst [vmem:[%s199 + $0x40] sm:$0xff] %v216
                %v218 = vld [vmem:[%s198 + $0x88] sm:$0xff]
                %219 = vst [vmem:[%s199 + $0x48] sm:$0xff] %v218
                %v220 = vld [vmem:[%s198 + $0xa0] sm:$0xff]
                %221 = vst [vmem:[%s199 + $0x50] sm:$0xff] %v220
                %v222 = vld [vmem:[%s198 + $0xa8] sm:$0xff]
                %223 = vst [vmem:[%s199 + $0x58] sm:$0xff] %v222
                %v224 = vld [vmem:[%s198 + $0xc0] sm:$0xff]
                %225 = vst [vmem:[%s199 + $0x60] sm:$0xff] %v224
                %v226 = vld [vmem:[%s198 + $0xc8] sm:$0xff]
                %227 = vst [vmem:[%s199 + $0x68] sm:$0xff] %v226
                %v228 = vld [vmem:[%s198 + $0xe0] sm:$0xff]
                %229 = vst [vmem:[%s199 + $0x70] sm:$0xff] %v228
                %v230 = vld [vmem:[%s198 + $0xe8] sm:$0xff]
                %231 = vst [vmem:[%s199 + $0x78] sm:$0xff] %v230
                %v232 = vld [vmem:[%s198 + $0x100] sm:$0xff]
                %233 = vst [vmem:[%s199 + $0x80] sm:$0xff] %v232
                %v234 = vld [vmem:[%s198 + $0x108] sm:$0xff]
                %235 = vst [vmem:[%s199 + $0x88] sm:$0xff] %v234
                %v236 = vld [vmem:[%s198 + $0x120] sm:$0xff]
                %237 = vst [vmem:[%s199 + $0x90] sm:$0xff] %v236
                %v238 = vld [vmem:[%s198 + $0x128] sm:$0xff]
                %239 = vst [vmem:[%s199 + $0x98] sm:$0xff] %v238
                %v240 = vld [vmem:[%s198 + $0x140] sm:$0xff]
                %241 = vst [vmem:[%s199 + $0xa0] sm:$0xff] %v240
                %v242 = vld [vmem:[%s198 + $0x148] sm:$0xff]
                %243 = vst [vmem:[%s199 + $0xa8] sm:$0xff] %v242
                %v244 = vld [vmem:[%s198 + $0x160] sm:$0xff]
                %245 = vst [vmem:[%s199 + $0xb0] sm:$0xff] %v244
                %v246 = vld [vmem:[%s198 + $0x168] sm:$0xff]
                %247 = vst [vmem:[%s199 + $0xb8] sm:$0xff] %v246
                %v248 = vld [vmem:[%s198 + $0x180] sm:$0xff]
                %249 = vst [vmem:[%s199 + $0xc0] sm:$0xff] %v248
                %v250 = vld [vmem:[%s198 + $0x188] sm:$0xff]
                %251 = vst [vmem:[%s199 + $0xc8] sm:$0xff] %v250
                %v252 = vld [vmem:[%s198 + $0x1a0] sm:$0xff]
                %253 = vst [vmem:[%s199 + $0xd0] sm:$0xff] %v252
                %v254 = vld [vmem:[%s198 + $0x1a8] sm:$0xff]
                %255 = vst [vmem:[%s199 + $0xd8] sm:$0xff] %v254
                %v256 = vld [vmem:[%s198 + $0x1c0] sm:$0xff]
                %257 = vst [vmem:[%s199 + $0xe0] sm:$0xff] %v256
                %v258 = vld [vmem:[%s198 + $0x1c8] sm:$0xff]
                %259 = vst [vmem:[%s199 + $0xe8] sm:$0xff] %v258
                %v260 = vld [vmem:[%s198 + $0x1e0] sm:$0xff]
                %261 = vst [vmem:[%s199 + $0xf0] sm:$0xff] %v260
                %v262 = vld [vmem:[%s198 + $0x1e8] sm:$0xff]
                %263 = vst [vmem:[%s199 + $0xf8] sm:$0xff] %v262
                %v264 = vld [vmem:[%s198 + $0x200] sm:$0xff]
                %265 = vst [vmem:[%s199 + $0x100] sm:$0xff] %v264
                %v266 = vld [vmem:[%s198 + $0x208] sm:$0xff]
                %267 = vst [vmem:[%s199 + $0x108] sm:$0xff] %v266
                %v268 = vld [vmem:[%s198 + $0x220] sm:$0xff]
                %269 = vst [vmem:[%s199 + $0x110] sm:$0xff] %v268
                %v270 = vld [vmem:[%s198 + $0x228] sm:$0xff]
                %271 = vst [vmem:[%s199 + $0x118] sm:$0xff] %v270
                %v272 = vld [vmem:[%s198 + $0x240] sm:$0xff]
                %273 = vst [vmem:[%s199 + $0x120] sm:$0xff] %v272
                %v274 = vld [vmem:[%s198 + $0x248] sm:$0xff]
                %275 = vst [vmem:[%s199 + $0x128] sm:$0xff] %v274
                %v276 = vld [vmem:[%s198 + $0x260] sm:$0xff]
                %277 = vst [vmem:[%s199 + $0x130] sm:$0xff] %v276
                %v278 = vld [vmem:[%s198 + $0x268] sm:$0xff]
                %279 = vst [vmem:[%s199 + $0x138] sm:$0xff] %v278
                %v280 = vld [vmem:[%s198 + $0x280] sm:$0xff]
                %281 = vst [vmem:[%s199 + $0x140] sm:$0xff] %v280
                %v282 = vld [vmem:[%s198 + $0x288] sm:$0xff]
                %283 = vst [vmem:[%s199 + $0x148] sm:$0xff] %v282
                %v284 = vld [vmem:[%s198 + $0x2a0] sm:$0xff]
                %285 = vst [vmem:[%s199 + $0x150] sm:$0xff] %v284
                %v286 = vld [vmem:[%s198 + $0x2a8] sm:$0xff]
                %287 = vst [vmem:[%s199 + $0x158] sm:$0xff] %v286
                %v288 = vld [vmem:[%s198 + $0x2c0] sm:$0xff]
                %289 = vst [vmem:[%s199 + $0x160] sm:$0xff] %v288
                %v290 = vld [vmem:[%s198 + $0x2c8] sm:$0xff]
                %291 = vst [vmem:[%s199 + $0x168] sm:$0xff] %v290
                %v292 = vld [vmem:[%s198 + $0x2e0] sm:$0xff]
                %293 = vst [vmem:[%s199 + $0x170] sm:$0xff] %v292
                %v294 = vld [vmem:[%s198 + $0x2e8] sm:$0xff]
                %295 = vst [vmem:[%s199 + $0x178] sm:$0xff] %v294
                %v296 = vld [vmem:[%s198 + $0x300] sm:$0xff]
                %297 = vst [vmem:[%s199 + $0x180] sm:$0xff] %v296
                %v298 = vld [vmem:[%s198 + $0x308] sm:$0xff]
                %299 = vst [vmem:[%s199 + $0x188] sm:$0xff] %v298
                %v300 = vld [vmem:[%s198 + $0x320] sm:$0xff]
                %301 = vst [vmem:[%s199 + $0x190] sm:$0xff] %v300
                %v302 = vld [vmem:[%s198 + $0x328] sm:$0xff]
                %303 = vst [vmem:[%s199 + $0x198] sm:$0xff] %v302
                %v304 = vld [vmem:[%s198 + $0x340] sm:$0xff]
                %305 = vst [vmem:[%s199 + $0x1a0] sm:$0xff] %v304
                %v306 = vld [vmem:[%s198 + $0x348] sm:$0xff]
                %307 = vst [vmem:[%s199 + $0x1a8] sm:$0xff] %v306
                %v308 = vld [vmem:[%s198 + $0x360] sm:$0xff]
                %309 = vst [vmem:[%s199 + $0x1b0] sm:$0xff] %v308
                %v310 = vld [vmem:[%s198 + $0x368] sm:$0xff]
                %311 = vst [vmem:[%s199 + $0x1b8] sm:$0xff] %v310
                %v312 = vld [vmem:[%s198 + $0x380] sm:$0xff]
                %313 = vst [vmem:[%s199 + $0x1c0] sm:$0xff] %v312
                %v314 = vld [vmem:[%s198 + $0x388] sm:$0xff]
                %315 = vst [vmem:[%s199 + $0x1c8] sm:$0xff] %v314
                %v316 = vld [vmem:[%s198 + $0x3a0] sm:$0xff]
                %317 = vst [vmem:[%s199 + $0x1d0] sm:$0xff] %v316
                %v318 = vld [vmem:[%s198 + $0x3a8] sm:$0xff]
                %319 = vst [vmem:[%s199 + $0x1d8] sm:$0xff] %v318
                %v320 = vld [vmem:[%s198 + $0x3c0] sm:$0xff]
                %321 = vst [vmem:[%s199 + $0x1e0] sm:$0xff] %v320
                %v322 = vld [vmem:[%s198 + $0x3c8] sm:$0xff]
                %323 = vst [vmem:[%s199 + $0x1e8] sm:$0xff] %v322
                %v324 = vld [vmem:[%s198 + $0x3e0] sm:$0xff]
                %325 = vst [vmem:[%s199 + $0x1f0] sm:$0xff] %v324
                %v326 = vld [vmem:[%s198 + $0x3e8] sm:$0xff]
                %327 = vst [vmem:[%s199 + $0x1f8] sm:$0xff] %v326
              $region49: #{pointnet_encoder_forward.3} parent=43 // loop_footer
                %s197 = sadd.s32 1, %s193
              $region50: #{pointnet_encoder_forward.3} parent=43 // loop_footer_branch
                %192 = sbr.rel target = $region46
              $region51: #{pointnet_encoder_forward.3} parent=43 // loop_exit
                _
            $region44: #{pointnet_encoder_forward.3} parent=39 // pred_fallthru
              _
            // Predicated region
            $region52: #{pointnet_encoder_forward.3} parent=39 // pred_check
              _
            $region53: #{pointnet_encoder_forward.3} parent=39 // pred_check_branch
              %329 = sbr.rel target = $region55
            $region54: #{pointnet_encoder_forward.3} parent=39 // pred_region
              _
            $region55: #{pointnet_encoder_forward.3} parent=39 // pred_fallthru
              _
          $region40: #{pointnet_encoder_forward.3} parent=35 // pred_fallthru
            _
          %330 = vnop
        $region36: #{pointnet_encoder_forward.3} parent=31 // pred_fallthru
          _
      $region32: #{pointnet_encoder_forward.3} parent=5 // pred_fallthru
        _
      %p331 = scmp.le.s32.totalorder 1, %s11
      %p332 = scmp.lt.s32.totalorder %s11, 3
      %p333 = pnand %p331, %p332
      %p334 = pneg %p333
      // Predicated region
      $region56: #{pointnet_encoder_forward.3} parent=5 // pred_check
        _
      $region57: #{pointnet_encoder_forward.3} parent=5 // pred_check_branch
        %336 = sbr.rel (%p333) target = $region59
      $region58: #{pointnet_encoder_forward.3} parent=5 // pred_region
        %s337 = ssub.s32 %s11, 1
        %s338 = sand.u32 %s24, 1
        %s339 = sand.u32 %s24, 1
        %s340 = smul.addr %s339, 512
        %s341 = scalar_lea.vmem [#allocation2], %s340
        // Predicated region
        $region60: #{pointnet_encoder_forward.3} parent=58 // pred_check
          %p342 = pneg %p37
        $region61: #{pointnet_encoder_forward.3} parent=58 // pred_check_branch
          %344 = sbr.rel (%p342) target = $region63
        $region62: #{pointnet_encoder_forward.3} parent=58 // pred_region
          _
        $region63: #{pointnet_encoder_forward.3} parent=58 // pred_fallthru
          _
        %s345 = sand.u32 %s24, 1
        %s346 = sand.u32 %s24, 1
        %s347 = smul.addr %s346, 512
        %s348 = scalar_lea.vmem [#allocation2], %s347
        %p349 = pneg %p37
        %p350 = pneg %p34
        %p351 = pneg %p58
        %p352 = pneg %p55
        %p353 = pneg %p79
        %p354 = pneg %p76
        %p355 = pneg %p100
        %p356 = pneg %p97
        %p357 = pneg %p121
        %p358 = pneg %p118
        %p359 = pneg %p147
        %p360 = pneg %p144
        %s361 = sand.u32 %s134, 1
        %s362 = sand.u32 %s134, 1
        %s363 = smul.addr %s362, 32
        %s364 = scalar_lea.vmem [#allocation3], %s363
        %s365 = smul.u32 2, %s16
        %s366 = smul.u32 2, %s16
        %v367 = vld [vmem:[%s1] sm:$0xff]
        %v368 = vld [vmem:[%s2] sm:$0xff]
        %v369 = vld [vmem:[%s3] sm:$0xff]
        %v370 = vld [vmem:[%s3 + $0x8] sm:$0xff]
        %v371 = vld [vmem:[%s4] sm:$0xff]
        %v372 = vld [vmem:[%s4 + $0x8] sm:$0xff]
        loop: start=0, step=1, limit=32
        $region64: #{pointnet_encoder_forward.3} parent=58 // loop_pre_header
          _
        $region65: #{pointnet_encoder_forward.3} parent=58 // loop_header
          %s374 = sphi 0, %s378
          %p375 = scmp.ge.s32.totalorder %s374, 32
          %v379 = vphi 0.0, %v513
          %v380 = vphi 0.0, %v514
          %v381 = vphi 0.0, %v515
          %v382 = vphi 0.0, %v516
        $region66: #{pointnet_encoder_forward.3} parent=58 // loop_header_branch
          %377 = sbr.rel (%p375) target = $region70
        $region67: #{pointnet_encoder_forward.3} parent=58 // loop_body
          %s383 = smul.u32 %s374, 2
          %s384 = smul.addr %s383, 8
          %s385 = scalar_lea.vmem %s341, %s384 [#allocation2]
          %v386 = vld [vmem:[%s385] sm:$0x7f]
          %v387 = vld [vmem:[%s385 + $0x8] sm:$0x7f]
          %389 = vset.pattern.permute.xlu0 0
          %390 = vperm.xlu0 %389, %v368
          %v391 = vpop.permute.xlu0 %390
          %vm393 = vcmask 56320
          %v395 = vsel %vm393, %v367, 0
          %vm397 = vcmask 1046528
          %v399 = vsel %vm397, %v386, 0
          %v402 = vsel %vm397, %v387, 0
          %404 = vmatpush.msra.mxu0 0.0
          %405 = vmatpush.msra.mxu0 0.0
          %406 = vmatpush.msra.mxu0 0.0
          %407 = vmatpush.msra.mxu0 0.0
          %408 = vmatpush.msra.mxu0 0.0
          %409 = vmatpush.msra.mxu0 0.0
          %410 = vmatpush.msra.mxu0 0.0
          %411 = vmatpush.msra.mxu0 0.0
          %412 = vmatpush.msra.mxu0 0.0
          %413 = vmatpush.msra.mxu0 0.0
          %414 = vmatpush.msra.mxu0 0.0
          %415 = vmatpush.msra.mxu0 0.0
          %416 = vmatpush.msra.mxu0 0.0
          %417 = vmatpush.msra.mxu0 0.0
          %418 = vmatpush.msra.mxu0 0.0
          %419 = vmatpush.msra.mxu0 %v399
          %420 = vmatmul.f32.gmra.mxu0 %v395
          %v421 = vpop.f32.mrf.mxu0
          %v422 = vadd.f32 %v391, %v421
          %423 = vdwg.mxu0
          %424 = vmatpush.msra.mxu0 0.0
          %425 = vmatpush.msra.mxu0 0.0
          %426 = vmatpush.msra.mxu0 0.0
          %427 = vmatpush.msra.mxu0 0.0
          %428 = vmatpush.msra.mxu0 0.0
          %429 = vmatpush.msra.mxu0 0.0
          %430 = vmatpush.msra.mxu0 0.0
          %431 = vmatpush.msra.mxu0 0.0
          %432 = vmatpush.msra.mxu0 0.0
          %433 = vmatpush.msra.mxu0 0.0
          %434 = vmatpush.msra.mxu0 0.0
          %435 = vmatpush.msra.mxu0 0.0
          %436 = vmatpush.msra.mxu0 0.0
          %437 = vmatpush.msra.mxu0 0.0
          %438 = vmatpush.msra.mxu0 0.0
          %439 = vmatpush.msra.mxu0 %v402
          %440 = vmatmul.f32.gmra.mxu0 %v395
          %v441 = vpop.f32.mrf.mxu0
          %v442 = vadd.f32 %v391, %v441
          %443 = vdwg.mxu0
          %v444 = vmax.f32 %v422, 0.0
          %v445 = vmax.f32 %v442, 0.0
          %447 = vset.pattern.permute.xlu0 0
          %448 = vperm.xlu0 %447, %v371
          %v449 = vpop.permute.xlu0 %448
          %452 = vset.pattern.permute.xlu0 0
          %453 = vperm.xlu0 %452, %v372
          %v454 = vpop.permute.xlu0 %453
          %vm456 = vcmask 64512
          %v458 = vsel %vm456, %v369, 0
          %v461 = vsel %vm456, %v370, 0
          %463 = vmatpush.msra.mxu0 0.0
          %464 = vmatpush.msra.mxu0 0.0
          %465 = vmatpush.msra.mxu0 0.0
          %466 = vmatpush.msra.mxu0 0.0
          %467 = vmatpush.msra.mxu0 0.0
          %468 = vmatpush.msra.mxu0 0.0
          %469 = vmatpush.msra.mxu0 0.0
          %470 = vmatpush.msra.mxu0 0.0
          %471 = vmatpush.msra.mxu0 0.0
          %472 = vmatpush.msra.mxu0 0.0
          %473 = vmatpush.msra.mxu0 0.0
          %474 = vmatpush.msra.mxu0 0.0
          %475 = vmatpush.msra.mxu0 0.0
          %476 = vmatpush.msra.mxu0 0.0
          %477 = vmatpush.msra.mxu0 0.0
          %478 = vmatpush.msra.mxu0 %v444
          %479 = vmatmul.f32.gmra.mxu0 %v458
          %v480 = vpop.f32.mrf.mxu0
          %v481 = vadd.f32 %v449, %v480
          %482 = vmatmul.f32.gmra.mxu0 %v461
          %v483 = vpop.f32.mrf.mxu0
          %v484 = vadd.f32 %v454, %v483
          %485 = vdwg.mxu0
          %486 = vmatpush.msra.mxu0 0.0
          %487 = vmatpush.msra.mxu0 0.0
          %488 = vmatpush.msra.mxu0 0.0
          %489 = vmatpush.msra.mxu0 0.0
          %490 = vmatpush.msra.mxu0 0.0
          %491 = vmatpush.msra.mxu0 0.0
          %492 = vmatpush.msra.mxu0 0.0
          %493 = vmatpush.msra.mxu0 0.0
          %494 = vmatpush.msra.mxu0 0.0
          %495 = vmatpush.msra.mxu0 0.0
          %496 = vmatpush.msra.mxu0 0.0
          %497 = vmatpush.msra.mxu0 0.0
          %498 = vmatpush.msra.mxu0 0.0
          %499 = vmatpush.msra.mxu0 0.0
          %500 = vmatpush.msra.mxu0 0.0
          %501 = vmatpush.msra.mxu0 %v445
          %502 = vmatmul.f32.gmra.mxu0 %v458
          %v503 = vpop.f32.mrf.mxu0
          %v504 = vadd.f32 %v449, %v503
          %505 = vmatmul.f32.gmra.mxu0 %v461
          %v506 = vpop.f32.mrf.mxu0
          %v507 = vadd.f32 %v454, %v506
          %508 = vdwg.mxu0
          %v509 = vmax.f32 %v481, 0.0
          %v510 = vmax.f32 %v504, 0.0
          %v511 = vmax.f32 %v484, 0.0
          %v512 = vmax.f32 %v507, 0.0
          %v513 = vmax.f32 %v379, %v509
          %v514 = vmax.f32 %v380, %v510
          %v515 = vmax.f32 %v381, %v511
          %v516 = vmax.f32 %v382, %v512
        $region68: #{pointnet_encoder_forward.3} parent=58 // loop_footer
          %s378 = sadd.s32 1, %s374
        $region69: #{pointnet_encoder_forward.3} parent=58 // loop_footer_branch
          %373 = sbr.rel target = $region65
        $region70: #{pointnet_encoder_forward.3} parent=58 // loop_exit
          _
        %517 = vst [vmem:[%s364] sm:$0xff] %v379
        %518 = vst [vmem:[%s364 + $0x8] sm:$0xff] %v380
        %519 = vst [vmem:[%s364 + $0x10] sm:$0xff] %v381
        %520 = vst [vmem:[%s364 + $0x18] sm:$0xff] %v382
        %s521 = sand.u32 %s134, 1
        %s522 = sand.u32 %s134, 1
        %s523 = smul.addr %s522, 32
        %s524 = scalar_lea.vmem [#allocation3], %s523
        // Predicated region
        $region71: #{pointnet_encoder_forward.3} parent=58 // pred_check
          %p525 = pneg %p144
        $region72: #{pointnet_encoder_forward.3} parent=58 // pred_check_branch
          %527 = sbr.rel (%p525) target = $region74
        $region73: #{pointnet_encoder_forward.3} parent=58 // pred_region
          %s528 = smul.u32 2, %s16
          %s529 = smul.addr %s528, 8
          %s530 = scalar_lea.vmem %s5, %s529
          // Predicated region
          $region75: #{pointnet_encoder_forward.3} parent=73 // pred_check
            _
          $region76: #{pointnet_encoder_forward.3} parent=73 // pred_check_branch
            %532 = sbr.rel (0) target = $region78
          $region77: #{pointnet_encoder_forward.3} parent=73 // pred_region
            // Predicated region
            $region79: #{pointnet_encoder_forward.3} parent=77 // pred_check
              _
            $region80: #{pointnet_encoder_forward.3} parent=77 // pred_check_branch
              %534 = sbr.rel (0) target = $region82
            $region81: #{pointnet_encoder_forward.3} parent=77 // pred_region
              loop: start=0, step=1, limit=1
              $region83: #{pointnet_encoder_forward.3} parent=81 // loop_pre_header
                _
              $region84: #{pointnet_encoder_forward.3} parent=81 // loop_header
                %s536 = sphi 0, %s540
                %p537 = scmp.ge.s32.totalorder %s536, 1
                %s541 = sphi %s524, %s524
                %s542 = sphi %s530, %s530
              $region85: #{pointnet_encoder_forward.3} parent=81 // loop_header_branch
                %539 = sbr.rel (%p537) target = $region89
              $region86: #{pointnet_encoder_forward.3} parent=81 // loop_body
                %v543 = vld [vmem:[%s541] sm:$0xff]
                %544 = vst [vmem:[%s542] sm:$0xff] %v543
                %v545 = vld [vmem:[%s541 + $0x8] sm:$0xff]
                %546 = vst [vmem:[%s542 + $0x8] sm:$0xff] %v545
                %v547 = vld [vmem:[%s541 + $0x10] sm:$0xff]
                %548 = vst [vmem:[%s542 + $0x20] sm:$0xff] %v547
                %v549 = vld [vmem:[%s541 + $0x18] sm:$0xff]
                %550 = vst [vmem:[%s542 + $0x28] sm:$0xff] %v549
              $region87: #{pointnet_encoder_forward.3} parent=81 // loop_footer
                %s540 = sadd.s32 1, %s536
              $region88: #{pointnet_encoder_forward.3} parent=81 // loop_footer_branch
                %535 = sbr.rel target = $region84
              $region89: #{pointnet_encoder_forward.3} parent=81 // loop_exit
                _
            $region82: #{pointnet_encoder_forward.3} parent=77 // pred_fallthru
              _
            // Predicated region
            $region90: #{pointnet_encoder_forward.3} parent=77 // pred_check
              _
            $region91: #{pointnet_encoder_forward.3} parent=77 // pred_check_branch
              %552 = sbr.rel target = $region93
            $region92: #{pointnet_encoder_forward.3} parent=77 // pred_region
              _
            $region93: #{pointnet_encoder_forward.3} parent=77 // pred_fallthru
              _
          $region78: #{pointnet_encoder_forward.3} parent=73 // pred_fallthru
            _
          %553 = vnop
        $region74: #{pointnet_encoder_forward.3} parent=58 // pred_fallthru
          _
      $region59: #{pointnet_encoder_forward.3} parent=5 // pred_fallthru
        _
      %p554 = scmp.le.s32.totalorder 2, %s11
      // Predicated region
      $region94: #{pointnet_encoder_forward.3} parent=5 // pred_check
        %p555 = pneg %p554
      $region95: #{pointnet_encoder_forward.3} parent=5 // pred_check_branch
        %557 = sbr.rel (%p555) target = $region97
      $region96: #{pointnet_encoder_forward.3} parent=5 // pred_region
        %s558 = ssub.s32 %s11, 2
        // Predicated region
        $region98: #{pointnet_encoder_forward.3} parent=96 // pred_check
          %p559 = pneg %p150
        $region99: #{pointnet_encoder_forward.3} parent=96 // pred_check_branch
          %561 = sbr.rel (%p559) target = $region101
        $region100: #{pointnet_encoder_forward.3} parent=96 // pred_region
          %s562 = sand.u32 %s135, 1
          %s563 = sand.u32 %s135, 1
          %s564 = smul.addr %s563, 32
          %s565 = scalar_lea.vmem [#allocation3], %s564
        $region101: #{pointnet_encoder_forward.3} parent=96 // pred_fallthru
          _
      $region97: #{pointnet_encoder_forward.3} parent=5 // pred_fallthru
        _
    $region6: #{pointnet_encoder_forward.3} parent=1 // loop_footer
      %s15 = sadd.s32 1, %s11
    $region7: #{pointnet_encoder_forward.3} parent=1 // loop_footer_branch
      %10 = sbr.rel target = $region3
    $region8: #{pointnet_encoder_forward.3} parent=1 // loop_exit
      _

// kernel: custom-call.17
$region0: #{custom-call.17}
  %s0 = inlined_call_operand.vmem [shape: f32[2,256], index: 0, kind: output, shape index: {}]

// kernel: pointnet_encoder_forward.4
$region0: #{pointnet_encoder_forward.4}
  #allocation0 [shape = 'u32[]', space=smem, size = 0x4, offset = 0x4, fixed_abs, tag = 'smem constant byte address 0x4 - core index']
  #allocation1 [shape = 'u32[72,128]{1,0:T(1,128)}', space=vmem, size = 0x9000, scoped, tag = 'internal scratch']
  %s0 = inlined_call_operand.vmem [shape: f32[64,19,256], index: 0, kind: input, shape index: {}]
  %s1 = inlined_call_operand.vmem [shape: f32[16,19], index: 1, kind: input, shape index: {}]
  %s2 = inlined_call_operand.vmem [shape: f32[16,1], index: 2, kind: input, shape index: {}]
  %s3 = inlined_call_operand.vmem [shape: f32[32,16], index: 3, kind: input, shape index: {}]
  %s4 = inlined_call_operand.vmem [shape: f32[32,1], index: 4, kind: input, shape index: {}]
  %s5 = inlined_call_operand.vmem [shape: f32[32,256], index: 5, kind: output, shape index: {}]
  %s6 = sld [smem:[#allocation0]]
  $region132: #{pointnet_encoder_forward.4} parent=0
    _
  %s8 = ssub.s32 1, %s6
  %s9 = scalar_select 0, %s8, %s6
  $region1: #{pointnet_encoder_forward.4} parent=0
    #allocation2 [shape = 'u8[1572864]{0}', space=vmem, size = 0x180000, scoped, tag = 'input window, operand 0']
    #allocation3 [shape = 'u8[32768]{0}', space=vmem, size = 0x8000, scoped, tag = 'output window, operand 0']
    loop: start=0, step=1, limit=4
    $region2: #{pointnet_encoder_forward.4} parent=1 // loop_pre_header
      _
    $region3: #{pointnet_encoder_forward.4} parent=1 // loop_header
      %s11 = sphi 0, %s15
      %p12 = scmp.ge.s32.totalorder %s11, 4
      %s21 = sphi 0, %s23
      %s24 = sphi 0, %s21
      %s25 = sphi 0, %s24
      %s41 = sphi 0, %s25
      %s45 = sphi 0, %s45
      %s47 = sphi 0, %s45
      %s48 = sphi 0, %s47
      %s62 = sphi 0, %s48
      %s66 = sphi 0, %s66
      %s68 = sphi 0, %s66
      %s69 = sphi 0, %s68
      %s83 = sphi 0, %s69
      %s87 = sphi 0, %s87
      %s89 = sphi 0, %s87
      %s90 = sphi 0, %s89
      %s104 = sphi 0, %s90
      %s108 = sphi 0, %s108
      %s110 = sphi 0, %s108
      %s111 = sphi 0, %s110
      %s125 = sphi 0, %s111
      %s131 = sphi 0, %s133
      %s134 = sphi 0, %s131
      %s135 = sphi 0, %s134
      %s151 = sphi 0, %s135
    $region4: #{pointnet_encoder_forward.4} parent=1 // loop_header_branch
      %14 = sbr.rel (%p12) target = $region8
    $region5: #{pointnet_encoder_forward.4} parent=1 // loop_body
      %s16 = ssub.s32 %s11, 1
      %s17 = ssub.s32 %s11, 2
      %s18 = sadd.s32 %s11, 1
      %s19 = ssub.s32 %s11, %s18
      %p20 = scmp.eq.s32.totalorder %s19, 0
      %s22 = sadd.s32 %s21, 1
      %s23 = scalar_select %p20, %s21, %s22
      %p26 = pneg %p20
      %p27 = scmp.eq.s32.totalorder %s11, 1
      %p28 = por %p26, %p27
      %p29 = scmp.ne.s32.totalorder %s21, %s24
      %p30 = scmp.eq.s32.totalorder %s11, 0
      %p31 = por %p29, %p30
      %p32 = scmp.ne.s32.totalorder %s21, %s24
      %p33 = scmp.eq.s32.totalorder %s16, 1
      %p34 = por %p32, %p33
      %p35 = scmp.ne.s32.totalorder %s24, %s25
      %p36 = scmp.eq.s32.totalorder %s16, 0
      %p37 = por %p35, %p36
      %p38 = scmp.ne.s32.totalorder %s24, %s25
      %p39 = scmp.eq.s32.totalorder %s17, 1
      %p40 = por %p38, %p39
      %p42 = scmp.ne.s32.totalorder %s25, %s41
      %p43 = scmp.eq.s32.totalorder %s17, 0
      %p44 = por %p42, %p43
      %s46 = sadd.s32 %s45, 1
      %p49 = scmp.eq.s32.totalorder %s11, 1
      %p50 = scmp.ne.s32.totalorder %s45, %s47
      %p51 = scmp.eq.s32.totalorder %s11, 0
      %p52 = por %p50, %p51
      %p53 = scmp.ne.s32.totalorder %s45, %s47
      %p54 = scmp.eq.s32.totalorder %s16, 1
      %p55 = por %p53, %p54
      %p56 = scmp.ne.s32.totalorder %s47, %s48
      %p57 = scmp.eq.s32.totalorder %s16, 0
      %p58 = por %p56, %p57
      %p59 = scmp.ne.s32.totalorder %s47, %s48
      %p60 = scmp.eq.s32.totalorder %s17, 1
      %p61 = por %p59, %p60
      %p63 = scmp.ne.s32.totalorder %s48, %s62
      %p64 = scmp.eq.s32.totalorder %s17, 0
      %p65 = por %p63, %p64
      %s67 = sadd.s32 %s66, 1
      %p70 = scmp.eq.s32.totalorder %s11, 1
      %p71 = scmp.ne.s32.totalorder %s66, %s68
      %p72 = scmp.eq.s32.totalorder %s11, 0
      %p73 = por %p71, %p72
      %p74 = scmp.ne.s32.totalorder %s66, %s68
      %p75 = scmp.eq.s32.totalorder %s16, 1
      %p76 = por %p74, %p75
      %p77 = scmp.ne.s32.totalorder %s68, %s69
      %p78 = scmp.eq.s32.totalorder %s16, 0
      %p79 = por %p77, %p78
      %p80 = scmp.ne.s32.totalorder %s68, %s69
      %p81 = scmp.eq.s32.totalorder %s17, 1
      %p82 = por %p80, %p81
      %p84 = scmp.ne.s32.totalorder %s69, %s83
      %p85 = scmp.eq.s32.totalorder %s17, 0
      %p86 = por %p84, %p85
      %s88 = sadd.s32 %s87, 1
      %p91 = scmp.eq.s32.totalorder %s11, 1
      %p92 = scmp.ne.s32.totalorder %s87, %s89
      %p93 = scmp.eq.s32.totalorder %s11, 0
      %p94 = por %p92, %p93
      %p95 = scmp.ne.s32.totalorder %s87, %s89
      %p96 = scmp.eq.s32.totalorder %s16, 1
      %p97 = por %p95, %p96
      %p98 = scmp.ne.s32.totalorder %s89, %s90
      %p99 = scmp.eq.s32.totalorder %s16, 0
      %p100 = por %p98, %p99
      %p101 = scmp.ne.s32.totalorder %s89, %s90
      %p102 = scmp.eq.s32.totalorder %s17, 1
      %p103 = por %p101, %p102
      %p105 = scmp.ne.s32.totalorder %s90, %s104
      %p106 = scmp.eq.s32.totalorder %s17, 0
      %p107 = por %p105, %p106
      %s109 = sadd.s32 %s108, 1
      %p112 = scmp.eq.s32.totalorder %s11, 1
      %p113 = scmp.ne.s32.totalorder %s108, %s110
      %p114 = scmp.eq.s32.totalorder %s11, 0
      %p115 = por %p113, %p114
      %p116 = scmp.ne.s32.totalorder %s108, %s110
      %p117 = scmp.eq.s32.totalorder %s16, 1
      %p118 = por %p116, %p117
      %p119 = scmp.ne.s32.totalorder %s110, %s111
      %p120 = scmp.eq.s32.totalorder %s16, 0
      %p121 = por %p119, %p120
      %p122 = scmp.ne.s32.totalorder %s110, %s111
      %p123 = scmp.eq.s32.totalorder %s17, 1
      %p124 = por %p122, %p123
      %p126 = scmp.ne.s32.totalorder %s111, %s125
      %p127 = scmp.eq.s32.totalorder %s17, 0
      %p128 = por %p126, %p127
      %s129 = ssub.s32 %s11, %s18
      %p130 = scmp.eq.s32.totalorder %s129, 0
      %s132 = sadd.s32 %s131, 1
      %s133 = scalar_select %p130, %s131, %s132
      %p136 = pneg %p130
      %p137 = scmp.eq.s32.totalorder %s11, 1
      %p138 = por %p136, %p137
      %p139 = scmp.ne.s32.totalorder %s131, %s134
      %p140 = scmp.eq.s32.totalorder %s11, 0
      %p141 = por %p139, %p140
      %p142 = scmp.ne.s32.totalorder %s131, %s134
      %p143 = scmp.eq.s32.totalorder %s16, 1
      %p144 = por %p142, %p143
      %p145 = scmp.ne.s32.totalorder %s134, %s135
      %p146 = scmp.eq.s32.totalorder %s16, 0
      %p147 = por %p145, %p146
      %p148 = scmp.ne.s32.totalorder %s134, %s135
      %p149 = scmp.eq.s32.totalorder %s17, 1
      %p150 = por %p148, %p149
      %p152 = scmp.ne.s32.totalorder %s135, %s151
      %p153 = scmp.eq.s32.totalorder %s17, 0
      %p154 = por %p152, %p153
      %p155 = scmp.le.s32.totalorder 1, %s11
      %p156 = scmp.lt.s32.totalorder %s11, 3
      %p157 = pnand %p155, %p156
      %p158 = pneg %p157
      // Predicated region
      $region9: #{pointnet_encoder_forward.4} parent=5 // pred_check
        _
      $region10: #{pointnet_encoder_forward.4} parent=5 // pred_check_branch
        %160 = sbr.rel (%p157) target = $region12
      $region11: #{pointnet_encoder_forward.4} parent=5 // pred_region
        %s161 = ssub.s32 %s11, 1
        // Predicated region
        $region13: #{pointnet_encoder_forward.4} parent=11 // pred_check
          %p162 = pneg %p58
        $region14: #{pointnet_encoder_forward.4} parent=11 // pred_check_branch
          %164 = sbr.rel (%p162) target = $region16
        $region15: #{pointnet_encoder_forward.4} parent=11 // pred_region
          _
        $region16: #{pointnet_encoder_forward.4} parent=11 // pred_fallthru
          _
        // Predicated region
        $region17: #{pointnet_encoder_forward.4} parent=11 // pred_check
          %p165 = pneg %p79
        $region18: #{pointnet_encoder_forward.4} parent=11 // pred_check_branch
          %167 = sbr.rel (%p165) target = $region20
        $region19: #{pointnet_encoder_forward.4} parent=11 // pred_region
          _
        $region20: #{pointnet_encoder_forward.4} parent=11 // pred_fallthru
          _
        // Predicated region
        $region21: #{pointnet_encoder_forward.4} parent=11 // pred_check
          %p168 = pneg %p100
        $region22: #{pointnet_encoder_forward.4} parent=11 // pred_check_branch
          %170 = sbr.rel (%p168) target = $region24
        $region23: #{pointnet_encoder_forward.4} parent=11 // pred_region
          _
        $region24: #{pointnet_encoder_forward.4} parent=11 // pred_fallthru
          _
        // Predicated region
        $region25: #{pointnet_encoder_forward.4} parent=11 // pred_check
          %p171 = pneg %p121
        $region26: #{pointnet_encoder_forward.4} parent=11 // pred_check_branch
          %173 = sbr.rel (%p171) target = $region28
        $region27: #{pointnet_encoder_forward.4} parent=11 // pred_region
          _
        $region28: #{pointnet_encoder_forward.4} parent=11 // pred_fallthru
          _
      $region12: #{pointnet_encoder_forward.4} parent=5 // pred_fallthru
        _
      %p174 = scmp.lt.s32.totalorder %s11, 2
      // Predicated region
      $region29: #{pointnet_encoder_forward.4} parent=5 // pred_check
        %p175 = pneg %p174
      $region30: #{pointnet_encoder_forward.4} parent=5 // pred_check_branch
        %177 = sbr.rel (%p175) target = $region32
      $region31: #{pointnet_encoder_forward.4} parent=5 // pred_region
        // Predicated region
        $region33: #{pointnet_encoder_forward.4} parent=31 // pred_check
          %p178 = pneg %p31
        $region34: #{pointnet_encoder_forward.4} parent=31 // pred_check_branch
          %180 = sbr.rel (%p178) target = $region36
        $region35: #{pointnet_encoder_forward.4} parent=31 // pred_region
          %s181 = sand.u32 %s21, 1
          %s182 = sand.u32 %s21, 1
          %s183 = smul.addr %s182, 1536
          %s184 = scalar_lea.vmem [#allocation2], %s183
          %s185 = smul.addr %s11, 8
          %s186 = scalar_lea.vmem %s0, %s185
          // Predicated region
          $region37: #{pointnet_encoder_forward.4} parent=35 // pred_check
            _
          $region38: #{pointnet_encoder_forward.4} parent=35 // pred_check_branch
            %188 = sbr.rel (0) target = $region40
          $region39: #{pointnet_encoder_forward.4} parent=35 // pred_region
            // Predicated region
            $region41: #{pointnet_encoder_forward.4} parent=39 // pred_check
              _
            $region42: #{pointnet_encoder_forward.4} parent=39 // pred_check_branch
              %190 = sbr.rel (0) target = $region44
            $region43: #{pointnet_encoder_forward.4} parent=39 // pred_region
              // Predicated region
              $region56: #{pointnet_encoder_forward.4} parent=43 // pred_check
                _
              $region57: #{pointnet_encoder_forward.4} parent=43 // pred_check_branch
                %588 = sbr.rel (0) target = $region59
              $region58: #{pointnet_encoder_forward.4} parent=43 // pred_region
                loop: start=0, step=1, limit=1
                $region60: #{pointnet_encoder_forward.4} parent=58 // loop_pre_header
                  _
                $region61: #{pointnet_encoder_forward.4} parent=58 // loop_header
                  %s590 = sphi 0, %s594
                  %p591 = scmp.ge.s32.totalorder %s590, 1
                  %s595 = sphi %s186, %s186
                  %s596 = sphi %s184, %s184
                $region62: #{pointnet_encoder_forward.4} parent=58 // loop_header_branch
                  %593 = sbr.rel (%p591) target = $region66
                $region63: #{pointnet_encoder_forward.4} parent=58 // loop_body
                  %v597 = vld [vmem:[%s595] sm:$0xff]
                  %598 = vst [vmem:[%s596] sm:$0xff] %v597
                  %v599 = vld [vmem:[%s595 + $0x10] sm:$0xff]
                  %600 = vst [vmem:[%s596 + $0x8] sm:$0xff] %v599
                  %v601 = vld [vmem:[%s595 + $0x20] sm:$0xff]
                  %602 = vst [vmem:[%s596 + $0x10] sm:$0xff] %v601
                  %v603 = vld [vmem:[%s595 + $0x30] sm:$0xff]
                  %604 = vst [vmem:[%s596 + $0x18] sm:$0xff] %v603
                  %v605 = vld [vmem:[%s595 + $0x40] sm:$0xff]
                  %606 = vst [vmem:[%s596 + $0x20] sm:$0xff] %v605
                  %v607 = vld [vmem:[%s595 + $0x50] sm:$0xff]
                  %608 = vst [vmem:[%s596 + $0x28] sm:$0xff] %v607
                  %v609 = vld [vmem:[%s595 + $0x60] sm:$0xff]
                  %610 = vst [vmem:[%s596 + $0x30] sm:$0xff] %v609
                  %v611 = vld [vmem:[%s595 + $0x70] sm:$0xff]
                  %612 = vst [vmem:[%s596 + $0x38] sm:$0xff] %v611
                  %v613 = vld [vmem:[%s595 + $0x80] sm:$0xff]
                  %614 = vst [vmem:[%s596 + $0x40] sm:$0xff] %v613
                  %v615 = vld [vmem:[%s595 + $0x90] sm:$0xff]
                  %616 = vst [vmem:[%s596 + $0x48] sm:$0xff] %v615
                  %v617 = vld [vmem:[%s595 + $0xa0] sm:$0xff]
                  %618 = vst [vmem:[%s596 + $0x50] sm:$0xff] %v617
                  %v619 = vld [vmem:[%s595 + $0xb0] sm:$0xff]
                  %620 = vst [vmem:[%s596 + $0x58] sm:$0xff] %v619
                  %v621 = vld [vmem:[%s595 + $0xc0] sm:$0xff]
                  %622 = vst [vmem:[%s596 + $0x60] sm:$0xff] %v621
                  %v623 = vld [vmem:[%s595 + $0xd0] sm:$0xff]
                  %624 = vst [vmem:[%s596 + $0x68] sm:$0xff] %v623
                  %v625 = vld [vmem:[%s595 + $0xe0] sm:$0xff]
                  %626 = vst [vmem:[%s596 + $0x70] sm:$0xff] %v625
                  %v627 = vld [vmem:[%s595 + $0xf0] sm:$0xff]
                  %628 = vst [vmem:[%s596 + $0x78] sm:$0xff] %v627
                  %v629 = vld [vmem:[%s595 + $0x100] sm:$0xff]
                  %630 = vst [vmem:[%s596 + $0x80] sm:$0xff] %v629
                  %v631 = vld [vmem:[%s595 + $0x110] sm:$0xff]
                  %632 = vst [vmem:[%s596 + $0x88] sm:$0xff] %v631
                  %v633 = vld [vmem:[%s595 + $0x120] sm:$0xff]
                  %634 = vst [vmem:[%s596 + $0x90] sm:$0xff] %v633
                  %v635 = vld [vmem:[%s595 + $0x130] sm:$0xff]
                  %636 = vst [vmem:[%s596 + $0x98] sm:$0xff] %v635
                  %v637 = vld [vmem:[%s595 + $0x140] sm:$0xff]
                  %638 = vst [vmem:[%s596 + $0xa0] sm:$0xff] %v637
                  %v639 = vld [vmem:[%s595 + $0x150] sm:$0xff]
                  %640 = vst [vmem:[%s596 + $0xa8] sm:$0xff] %v639
                  %v641 = vld [vmem:[%s595 + $0x160] sm:$0xff]
                  %642 = vst [vmem:[%s596 + $0xb0] sm:$0xff] %v641
                  %v643 = vld [vmem:[%s595 + $0x170] sm:$0xff]
                  %644 = vst [vmem:[%s596 + $0xb8] sm:$0xff] %v643
                  %v645 = vld [vmem:[%s595 + $0x180] sm:$0xff]
                  %646 = vst [vmem:[%s596 + $0xc0] sm:$0xff] %v645
                  %v647 = vld [vmem:[%s595 + $0x190] sm:$0xff]
                  %648 = vst [vmem:[%s596 + $0xc8] sm:$0xff] %v647
                  %v649 = vld [vmem:[%s595 + $0x1a0] sm:$0xff]
                  %650 = vst [vmem:[%s596 + $0xd0] sm:$0xff] %v649
                  %v651 = vld [vmem:[%s595 + $0x1b0] sm:$0xff]
                  %652 = vst [vmem:[%s596 + $0xd8] sm:$0xff] %v651
                  %v653 = vld [vmem:[%s595 + $0x1c0] sm:$0xff]
                  %654 = vst [vmem:[%s596 + $0xe0] sm:$0xff] %v653
                  %v655 = vld [vmem:[%s595 + $0x1d0] sm:$0xff]
                  %656 = vst [vmem:[%s596 + $0xe8] sm:$0xff] %v655
                  %v657 = vld [vmem:[%s595 + $0x1e0] sm:$0xff]
                  %658 = vst [vmem:[%s596 + $0xf0] sm:$0xff] %v657
                  %v659 = vld [vmem:[%s595 + $0x1f0] sm:$0xff]
                  %660 = vst [vmem:[%s596 + $0xf8] sm:$0xff] %v659
                  %v661 = vld [vmem:[%s595 + $0x200] sm:$0xff]
                  %662 = vst [vmem:[%s596 + $0x100] sm:$0xff] %v661
                  %v663 = vld [vmem:[%s595 + $0x210] sm:$0xff]
                  %664 = vst [vmem:[%s596 + $0x108] sm:$0xff] %v663
                  %v665 = vld [vmem:[%s595 + $0x220] sm:$0xff]
                  %666 = vst [vmem:[%s596 + $0x110] sm:$0xff] %v665
                  %v667 = vld [vmem:[%s595 + $0x230] sm:$0xff]
                  %668 = vst [vmem:[%s596 + $0x118] sm:$0xff] %v667
                  %v669 = vld [vmem:[%s595 + $0x240] sm:$0xff]
                  %670 = vst [vmem:[%s596 + $0x120] sm:$0xff] %v669
                  %v671 = vld [vmem:[%s595 + $0x250] sm:$0xff]
                  %672 = vst [vmem:[%s596 + $0x128] sm:$0xff] %v671
                  %v673 = vld [vmem:[%s595 + $0x260] sm:$0xff]
                  %674 = vst [vmem:[%s596 + $0x130] sm:$0xff] %v673
                  %v675 = vld [vmem:[%s595 + $0x270] sm:$0xff]
                  %676 = vst [vmem:[%s596 + $0x138] sm:$0xff] %v675
                  %v677 = vld [vmem:[%s595 + $0x280] sm:$0xff]
                  %678 = vst [vmem:[%s596 + $0x140] sm:$0xff] %v677
                  %v679 = vld [vmem:[%s595 + $0x290] sm:$0xff]
                  %680 = vst [vmem:[%s596 + $0x148] sm:$0xff] %v679
                  %v681 = vld [vmem:[%s595 + $0x2a0] sm:$0xff]
                  %682 = vst [vmem:[%s596 + $0x150] sm:$0xff] %v681
                  %v683 = vld [vmem:[%s595 + $0x2b0] sm:$0xff]
                  %684 = vst [vmem:[%s596 + $0x158] sm:$0xff] %v683
                  %v685 = vld [vmem:[%s595 + $0x2c0] sm:$0xff]
                  %686 = vst [vmem:[%s596 + $0x160] sm:$0xff] %v685
                  %v687 = vld [vmem:[%s595 + $0x2d0] sm:$0xff]
                  %688 = vst [vmem:[%s596 + $0x168] sm:$0xff] %v687
                  %v689 = vld [vmem:[%s595 + $0x2e0] sm:$0xff]
                  %690 = vst [vmem:[%s596 + $0x170] sm:$0xff] %v689
                  %v691 = vld [vmem:[%s595 + $0x2f0] sm:$0xff]
                  %692 = vst [vmem:[%s596 + $0x178] sm:$0xff] %v691
                  %v693 = vld [vmem:[%s595 + $0x300] sm:$0xff]
                  %694 = vst [vmem:[%s596 + $0x180] sm:$0xff] %v693
                  %v695 = vld [vmem:[%s595 + $0x310] sm:$0xff]
                  %696 = vst [vmem:[%s596 + $0x188] sm:$0xff] %v695
                  %v697 = vld [vmem:[%s595 + $0x320] sm:$0xff]
                  %698 = vst [vmem:[%s596 + $0x190] sm:$0xff] %v697
                  %v699 = vld [vmem:[%s595 + $0x330] sm:$0xff]
                  %700 = vst [vmem:[%s596 + $0x198] sm:$0xff] %v699
                  %v701 = vld [vmem:[%s595 + $0x340] sm:$0xff]
                  %702 = vst [vmem:[%s596 + $0x1a0] sm:$0xff] %v701
                  %v703 = vld [vmem:[%s595 + $0x350] sm:$0xff]
                  %704 = vst [vmem:[%s596 + $0x1a8] sm:$0xff] %v703
                  %v705 = vld [vmem:[%s595 + $0x360] sm:$0xff]
                  %706 = vst [vmem:[%s596 + $0x1b0] sm:$0xff] %v705
                  %v707 = vld [vmem:[%s595 + $0x370] sm:$0xff]
                  %708 = vst [vmem:[%s596 + $0x1b8] sm:$0xff] %v707
                  %v709 = vld [vmem:[%s595 + $0x380] sm:$0xff]
                  %710 = vst [vmem:[%s596 + $0x1c0] sm:$0xff] %v709
                  %v711 = vld [vmem:[%s595 + $0x390] sm:$0xff]
                  %712 = vst [vmem:[%s596 + $0x1c8] sm:$0xff] %v711
                  %v713 = vld [vmem:[%s595 + $0x3a0] sm:$0xff]
                  %714 = vst [vmem:[%s596 + $0x1d0] sm:$0xff] %v713
                  %v715 = vld [vmem:[%s595 + $0x3b0] sm:$0xff]
                  %716 = vst [vmem:[%s596 + $0x1d8] sm:$0xff] %v715
                  %v717 = vld [vmem:[%s595 + $0x3c0] sm:$0xff]
                  %718 = vst [vmem:[%s596 + $0x1e0] sm:$0xff] %v717
                  %v719 = vld [vmem:[%s595 + $0x3d0] sm:$0xff]
                  %720 = vst [vmem:[%s596 + $0x1e8] sm:$0xff] %v719
                  %v721 = vld [vmem:[%s595 + $0x3e0] sm:$0xff]
                  %722 = vst [vmem:[%s596 + $0x1f0] sm:$0xff] %v721
                  %v723 = vld [vmem:[%s595 + $0x3f0] sm:$0xff]
                  %724 = vst [vmem:[%s596 + $0x1f8] sm:$0xff] %v723
                  %v725 = vld [vmem:[%s595 + $0x400] sm:$0xff]
                  %726 = vst [vmem:[%s596 + $0x200] sm:$0xff] %v725
                  %v727 = vld [vmem:[%s595 + $0x410] sm:$0xff]
                  %728 = vst [vmem:[%s596 + $0x208] sm:$0xff] %v727
                  %v729 = vld [vmem:[%s595 + $0x420] sm:$0xff]
                  %730 = vst [vmem:[%s596 + $0x210] sm:$0xff] %v729
                  %v731 = vld [vmem:[%s595 + $0x430] sm:$0xff]
                  %732 = vst [vmem:[%s596 + $0x218] sm:$0xff] %v731
                  %v733 = vld [vmem:[%s595 + $0x440] sm:$0xff]
                  %734 = vst [vmem:[%s596 + $0x220] sm:$0xff] %v733
                  %v735 = vld [vmem:[%s595 + $0x450] sm:$0xff]
                  %736 = vst [vmem:[%s596 + $0x228] sm:$0xff] %v735
                  %v737 = vld [vmem:[%s595 + $0x460] sm:$0xff]
                  %738 = vst [vmem:[%s596 + $0x230] sm:$0xff] %v737
                  %v739 = vld [vmem:[%s595 + $0x470] sm:$0xff]
                  %740 = vst [vmem:[%s596 + $0x238] sm:$0xff] %v739
                  %v741 = vld [vmem:[%s595 + $0x480] sm:$0xff]
                  %742 = vst [vmem:[%s596 + $0x240] sm:$0xff] %v741
                  %v743 = vld [vmem:[%s595 + $0x490] sm:$0xff]
                  %744 = vst [vmem:[%s596 + $0x248] sm:$0xff] %v743
                  %v745 = vld [vmem:[%s595 + $0x4a0] sm:$0xff]
                  %746 = vst [vmem:[%s596 + $0x250] sm:$0xff] %v745
                  %v747 = vld [vmem:[%s595 + $0x4b0] sm:$0xff]
                  %748 = vst [vmem:[%s596 + $0x258] sm:$0xff] %v747
                  %v749 = vld [vmem:[%s595 + $0x4c0] sm:$0xff]
                  %750 = vst [vmem:[%s596 + $0x260] sm:$0xff] %v749
                  %v751 = vld [vmem:[%s595 + $0x4d0] sm:$0xff]
                  %752 = vst [vmem:[%s596 + $0x268] sm:$0xff] %v751
                  %v753 = vld [vmem:[%s595 + $0x4e0] sm:$0xff]
                  %754 = vst [vmem:[%s596 + $0x270] sm:$0xff] %v753
                  %v755 = vld [vmem:[%s595 + $0x4f0] sm:$0xff]
                  %756 = vst [vmem:[%s596 + $0x278] sm:$0xff] %v755
                  %v757 = vld [vmem:[%s595 + $0x500] sm:$0xff]
                  %758 = vst [vmem:[%s596 + $0x280] sm:$0xff] %v757
                  %v759 = vld [vmem:[%s595 + $0x510] sm:$0xff]
                  %760 = vst [vmem:[%s596 + $0x288] sm:$0xff] %v759
                  %v761 = vld [vmem:[%s595 + $0x520] sm:$0xff]
                  %762 = vst [vmem:[%s596 + $0x290] sm:$0xff] %v761
                  %v763 = vld [vmem:[%s595 + $0x530] sm:$0xff]
                  %764 = vst [vmem:[%s596 + $0x298] sm:$0xff] %v763
                  %v765 = vld [vmem:[%s595 + $0x540] sm:$0xff]
                  %766 = vst [vmem:[%s596 + $0x2a0] sm:$0xff] %v765
                  %v767 = vld [vmem:[%s595 + $0x550] sm:$0xff]
                  %768 = vst [vmem:[%s596 + $0x2a8] sm:$0xff] %v767
                  %v769 = vld [vmem:[%s595 + $0x560] sm:$0xff]
                  %770 = vst [vmem:[%s596 + $0x2b0] sm:$0xff] %v769
                  %v771 = vld [vmem:[%s595 + $0x570] sm:$0xff]
                  %772 = vst [vmem:[%s596 + $0x2b8] sm:$0xff] %v771
                  %v773 = vld [vmem:[%s595 + $0x580] sm:$0xff]
                  %774 = vst [vmem:[%s596 + $0x2c0] sm:$0xff] %v773
                  %v775 = vld [vmem:[%s595 + $0x590] sm:$0xff]
                  %776 = vst [vmem:[%s596 + $0x2c8] sm:$0xff] %v775
                  %v777 = vld [vmem:[%s595 + $0x5a0] sm:$0xff]
                  %778 = vst [vmem:[%s596 + $0x2d0] sm:$0xff] %v777
                  %v779 = vld [vmem:[%s595 + $0x5b0] sm:$0xff]
                  %780 = vst [vmem:[%s596 + $0x2d8] sm:$0xff] %v779
                  %v781 = vld [vmem:[%s595 + $0x5c0] sm:$0xff]
                  %782 = vst [vmem:[%s596 + $0x2e0] sm:$0xff] %v781
                  %v783 = vld [vmem:[%s595 + $0x5d0] sm:$0xff]
                  %784 = vst [vmem:[%s596 + $0x2e8] sm:$0xff] %v783
                  %v785 = vld [vmem:[%s595 + $0x5e0] sm:$0xff]
                  %786 = vst [vmem:[%s596 + $0x2f0] sm:$0xff] %v785
                  %v787 = vld [vmem:[%s595 + $0x5f0] sm:$0xff]
                  %788 = vst [vmem:[%s596 + $0x2f8] sm:$0xff] %v787
                  %v789 = vld [vmem:[%s595 + $0x600] sm:$0xff]
                  %790 = vst [vmem:[%s596 + $0x300] sm:$0xff] %v789
                  %v791 = vld [vmem:[%s595 + $0x610] sm:$0xff]
                  %792 = vst [vmem:[%s596 + $0x308] sm:$0xff] %v791
                  %v793 = vld [vmem:[%s595 + $0x620] sm:$0xff]
                  %794 = vst [vmem:[%s596 + $0x310] sm:$0xff] %v793
                  %v795 = vld [vmem:[%s595 + $0x630] sm:$0xff]
                  %796 = vst [vmem:[%s596 + $0x318] sm:$0xff] %v795
                  %v797 = vld [vmem:[%s595 + $0x640] sm:$0xff]
                  %798 = vst [vmem:[%s596 + $0x320] sm:$0xff] %v797
                  %v799 = vld [vmem:[%s595 + $0x650] sm:$0xff]
                  %800 = vst [vmem:[%s596 + $0x328] sm:$0xff] %v799
                  %v801 = vld [vmem:[%s595 + $0x660] sm:$0xff]
                  %802 = vst [vmem:[%s596 + $0x330] sm:$0xff] %v801
                  %v803 = vld [vmem:[%s595 + $0x670] sm:$0xff]
                  %804 = vst [vmem:[%s596 + $0x338] sm:$0xff] %v803
                  %v805 = vld [vmem:[%s595 + $0x680] sm:$0xff]
                  %806 = vst [vmem:[%s596 + $0x340] sm:$0xff] %v805
                  %v807 = vld [vmem:[%s595 + $0x690] sm:$0xff]
                  %808 = vst [vmem:[%s596 + $0x348] sm:$0xff] %v807
                  %v809 = vld [vmem:[%s595 + $0x6a0] sm:$0xff]
                  %810 = vst [vmem:[%s596 + $0x350] sm:$0xff] %v809
                  %v811 = vld [vmem:[%s595 + $0x6b0] sm:$0xff]
                  %812 = vst [vmem:[%s596 + $0x358] sm:$0xff] %v811
                  %v813 = vld [vmem:[%s595 + $0x6c0] sm:$0xff]
                  %814 = vst [vmem:[%s596 + $0x360] sm:$0xff] %v813
                  %v815 = vld [vmem:[%s595 + $0x6d0] sm:$0xff]
                  %816 = vst [vmem:[%s596 + $0x368] sm:$0xff] %v815
                  %v817 = vld [vmem:[%s595 + $0x6e0] sm:$0xff]
                  %818 = vst [vmem:[%s596 + $0x370] sm:$0xff] %v817
                  %v819 = vld [vmem:[%s595 + $0x6f0] sm:$0xff]
                  %820 = vst [vmem:[%s596 + $0x378] sm:$0xff] %v819
                  %v821 = vld [vmem:[%s595 + $0x700] sm:$0xff]
                  %822 = vst [vmem:[%s596 + $0x380] sm:$0xff] %v821
                  %v823 = vld [vmem:[%s595 + $0x710] sm:$0xff]
                  %824 = vst [vmem:[%s596 + $0x388] sm:$0xff] %v823
                  %v825 = vld [vmem:[%s595 + $0x720] sm:$0xff]
                  %826 = vst [vmem:[%s596 + $0x390] sm:$0xff] %v825
                  %v827 = vld [vmem:[%s595 + $0x730] sm:$0xff]
                  %828 = vst [vmem:[%s596 + $0x398] sm:$0xff] %v827
                  %v829 = vld [vmem:[%s595 + $0x740] sm:$0xff]
                  %830 = vst [vmem:[%s596 + $0x3a0] sm:$0xff] %v829
                  %v831 = vld [vmem:[%s595 + $0x750] sm:$0xff]
                  %832 = vst [vmem:[%s596 + $0x3a8] sm:$0xff] %v831
                  %v833 = vld [vmem:[%s595 + $0x760] sm:$0xff]
                  %834 = vst [vmem:[%s596 + $0x3b0] sm:$0xff] %v833
                  %v835 = vld [vmem:[%s595 + $0x770] sm:$0xff]
                  %836 = vst [vmem:[%s596 + $0x3b8] sm:$0xff] %v835
                  %v837 = vld [vmem:[%s595 + $0x780] sm:$0xff]
                  %838 = vst [vmem:[%s596 + $0x3c0] sm:$0xff] %v837
                  %v839 = vld [vmem:[%s595 + $0x790] sm:$0xff]
                  %840 = vst [vmem:[%s596 + $0x3c8] sm:$0xff] %v839
                  %v841 = vld [vmem:[%s595 + $0x7a0] sm:$0xff]
                  %842 = vst [vmem:[%s596 + $0x3d0] sm:$0xff] %v841
                  %v843 = vld [vmem:[%s595 + $0x7b0] sm:$0xff]
                  %844 = vst [vmem:[%s596 + $0x3d8] sm:$0xff] %v843
                  %v845 = vld [vmem:[%s595 + $0x7c0] sm:$0xff]
                  %846 = vst [vmem:[%s596 + $0x3e0] sm:$0xff] %v845
                  %v847 = vld [vmem:[%s595 + $0x7d0] sm:$0xff]
                  %848 = vst [vmem:[%s596 + $0x3e8] sm:$0xff] %v847
                  %v849 = vld [vmem:[%s595 + $0x7e0] sm:$0xff]
                  %850 = vst [vmem:[%s596 + $0x3f0] sm:$0xff] %v849
                  %v851 = vld [vmem:[%s595 + $0x7f0] sm:$0xff]
                  %852 = vst [vmem:[%s596 + $0x3f8] sm:$0xff] %v851
                  %v853 = vld [vmem:[%s595 + $0x800] sm:$0xff]
                  %854 = vst [vmem:[%s596 + $0x400] sm:$0xff] %v853
                  %v855 = vld [vmem:[%s595 + $0x810] sm:$0xff]
                  %856 = vst [vmem:[%s596 + $0x408] sm:$0xff] %v855
                  %v857 = vld [vmem:[%s595 + $0x820] sm:$0xff]
                  %858 = vst [vmem:[%s596 + $0x410] sm:$0xff] %v857
                  %v859 = vld [vmem:[%s595 + $0x830] sm:$0xff]
                  %860 = vst [vmem:[%s596 + $0x418] sm:$0xff] %v859
                  %v861 = vld [vmem:[%s595 + $0x840] sm:$0xff]
                  %862 = vst [vmem:[%s596 + $0x420] sm:$0xff] %v861
                  %v863 = vld [vmem:[%s595 + $0x850] sm:$0xff]
                  %864 = vst [vmem:[%s596 + $0x428] sm:$0xff] %v863
                  %v865 = vld [vmem:[%s595 + $0x860] sm:$0xff]
                  %866 = vst [vmem:[%s596 + $0x430] sm:$0xff] %v865
                  %v867 = vld [vmem:[%s595 + $0x870] sm:$0xff]
                  %868 = vst [vmem:[%s596 + $0x438] sm:$0xff] %v867
                  %v869 = vld [vmem:[%s595 + $0x880] sm:$0xff]
                  %870 = vst [vmem:[%s596 + $0x440] sm:$0xff] %v869
                  %v871 = vld [vmem:[%s595 + $0x890] sm:$0xff]
                  %872 = vst [vmem:[%s596 + $0x448] sm:$0xff] %v871
                  %v873 = vld [vmem:[%s595 + $0x8a0] sm:$0xff]
                  %874 = vst [vmem:[%s596 + $0x450] sm:$0xff] %v873
                  %v875 = vld [vmem:[%s595 + $0x8b0] sm:$0xff]
                  %876 = vst [vmem:[%s596 + $0x458] sm:$0xff] %v875
                  %v877 = vld [vmem:[%s595 + $0x8c0] sm:$0xff]
                  %878 = vst [vmem:[%s596 + $0x460] sm:$0xff] %v877
                  %v879 = vld [vmem:[%s595 + $0x8d0] sm:$0xff]
                  %880 = vst [vmem:[%s596 + $0x468] sm:$0xff] %v879
                  %v881 = vld [vmem:[%s595 + $0x8e0] sm:$0xff]
                  %882 = vst [vmem:[%s596 + $0x470] sm:$0xff] %v881
                  %v883 = vld [vmem:[%s595 + $0x8f0] sm:$0xff]
                  %884 = vst [vmem:[%s596 + $0x478] sm:$0xff] %v883
                  %v885 = vld [vmem:[%s595 + $0x900] sm:$0xff]
                  %886 = vst [vmem:[%s596 + $0x480] sm:$0xff] %v885
                  %v887 = vld [vmem:[%s595 + $0x910] sm:$0xff]
                  %888 = vst [vmem:[%s596 + $0x488] sm:$0xff] %v887
                  %v889 = vld [vmem:[%s595 + $0x920] sm:$0xff]
                  %890 = vst [vmem:[%s596 + $0x490] sm:$0xff] %v889
                  %v891 = vld [vmem:[%s595 + $0x930] sm:$0xff]
                  %892 = vst [vmem:[%s596 + $0x498] sm:$0xff] %v891
                  %v893 = vld [vmem:[%s595 + $0x940] sm:$0xff]
                  %894 = vst [vmem:[%s596 + $0x4a0] sm:$0xff] %v893
                  %v895 = vld [vmem:[%s595 + $0x950] sm:$0xff]
                  %896 = vst [vmem:[%s596 + $0x4a8] sm:$0xff] %v895
                  %v897 = vld [vmem:[%s595 + $0x960] sm:$0xff]
                  %898 = vst [vmem:[%s596 + $0x4b0] sm:$0xff] %v897
                  %v899 = vld [vmem:[%s595 + $0x970] sm:$0xff]
                  %900 = vst [vmem:[%s596 + $0x4b8] sm:$0xff] %v899
                  %v901 = vld [vmem:[%s595 + $0x980] sm:$0xff]
                  %902 = vst [vmem:[%s596 + $0x4c0] sm:$0xff] %v901
                  %v903 = vld [vmem:[%s595 + $0x990] sm:$0xff]
                  %904 = vst [vmem:[%s596 + $0x4c8] sm:$0xff] %v903
                  %v905 = vld [vmem:[%s595 + $0x9a0] sm:$0xff]
                  %906 = vst [vmem:[%s596 + $0x4d0] sm:$0xff] %v905
                  %v907 = vld [vmem:[%s595 + $0x9b0] sm:$0xff]
                  %908 = vst [vmem:[%s596 + $0x4d8] sm:$0xff] %v907
                  %v909 = vld [vmem:[%s595 + $0x9c0] sm:$0xff]
                  %910 = vst [vmem:[%s596 + $0x4e0] sm:$0xff] %v909
                  %v911 = vld [vmem:[%s595 + $0x9d0] sm:$0xff]
                  %912 = vst [vmem:[%s596 + $0x4e8] sm:$0xff] %v911
                  %v913 = vld [vmem:[%s595 + $0x9e0] sm:$0xff]
                  %914 = vst [vmem:[%s596 + $0x4f0] sm:$0xff] %v913
                  %v915 = vld [vmem:[%s595 + $0x9f0] sm:$0xff]
                  %916 = vst [vmem:[%s596 + $0x4f8] sm:$0xff] %v915
                  %v917 = vld [vmem:[%s595 + $0xa00] sm:$0xff]
                  %918 = vst [vmem:[%s596 + $0x500] sm:$0xff] %v917
                  %v919 = vld [vmem:[%s595 + $0xa10] sm:$0xff]
                  %920 = vst [vmem:[%s596 + $0x508] sm:$0xff] %v919
                  %v921 = vld [vmem:[%s595 + $0xa20] sm:$0xff]
                  %922 = vst [vmem:[%s596 + $0x510] sm:$0xff] %v921
                  %v923 = vld [vmem:[%s595 + $0xa30] sm:$0xff]
                  %924 = vst [vmem:[%s596 + $0x518] sm:$0xff] %v923
                  %v925 = vld [vmem:[%s595 + $0xa40] sm:$0xff]
                  %926 = vst [vmem:[%s596 + $0x520] sm:$0xff] %v925
                  %v927 = vld [vmem:[%s595 + $0xa50] sm:$0xff]
                  %928 = vst [vmem:[%s596 + $0x528] sm:$0xff] %v927
                  %v929 = vld [vmem:[%s595 + $0xa60] sm:$0xff]
                  %930 = vst [vmem:[%s596 + $0x530] sm:$0xff] %v929
                  %v931 = vld [vmem:[%s595 + $0xa70] sm:$0xff]
                  %932 = vst [vmem:[%s596 + $0x538] sm:$0xff] %v931
                  %v933 = vld [vmem:[%s595 + $0xa80] sm:$0xff]
                  %934 = vst [vmem:[%s596 + $0x540] sm:$0xff] %v933
                  %v935 = vld [vmem:[%s595 + $0xa90] sm:$0xff]
                  %936 = vst [vmem:[%s596 + $0x548] sm:$0xff] %v935
                  %v937 = vld [vmem:[%s595 + $0xaa0] sm:$0xff]
                  %938 = vst [vmem:[%s596 + $0x550] sm:$0xff] %v937
                  %v939 = vld [vmem:[%s595 + $0xab0] sm:$0xff]
                  %940 = vst [vmem:[%s596 + $0x558] sm:$0xff] %v939
                  %v941 = vld [vmem:[%s595 + $0xac0] sm:$0xff]
                  %942 = vst [vmem:[%s596 + $0x560] sm:$0xff] %v941
                  %v943 = vld [vmem:[%s595 + $0xad0] sm:$0xff]
                  %944 = vst [vmem:[%s596 + $0x568] sm:$0xff] %v943
                  %v945 = vld [vmem:[%s595 + $0xae0] sm:$0xff]
                  %946 = vst [vmem:[%s596 + $0x570] sm:$0xff] %v945
                  %v947 = vld [vmem:[%s595 + $0xaf0] sm:$0xff]
                  %948 = vst [vmem:[%s596 + $0x578] sm:$0xff] %v947
                  %v949 = vld [vmem:[%s595 + $0xb00] sm:$0xff]
                  %950 = vst [vmem:[%s596 + $0x580] sm:$0xff] %v949
                  %v951 = vld [vmem:[%s595 + $0xb10] sm:$0xff]
                  %952 = vst [vmem:[%s596 + $0x588] sm:$0xff] %v951
                  %v953 = vld [vmem:[%s595 + $0xb20] sm:$0xff]
                  %954 = vst [vmem:[%s596 + $0x590] sm:$0xff] %v953
                  %v955 = vld [vmem:[%s595 + $0xb30] sm:$0xff]
                  %956 = vst [vmem:[%s596 + $0x598] sm:$0xff] %v955
                  %v957 = vld [vmem:[%s595 + $0xb40] sm:$0xff]
                  %958 = vst [vmem:[%s596 + $0x5a0] sm:$0xff] %v957
                  %v959 = vld [vmem:[%s595 + $0xb50] sm:$0xff]
                  %960 = vst [vmem:[%s596 + $0x5a8] sm:$0xff] %v959
                  %v961 = vld [vmem:[%s595 + $0xb60] sm:$0xff]
                  %962 = vst [vmem:[%s596 + $0x5b0] sm:$0xff] %v961
                  %v963 = vld [vmem:[%s595 + $0xb70] sm:$0xff]
                  %964 = vst [vmem:[%s596 + $0x5b8] sm:$0xff] %v963
                  %v965 = vld [vmem:[%s595 + $0xb80] sm:$0xff]
                  %966 = vst [vmem:[%s596 + $0x5c0] sm:$0xff] %v965
                  %v967 = vld [vmem:[%s595 + $0xb90] sm:$0xff]
                  %968 = vst [vmem:[%s596 + $0x5c8] sm:$0xff] %v967
                  %v969 = vld [vmem:[%s595 + $0xba0] sm:$0xff]
                  %970 = vst [vmem:[%s596 + $0x5d0] sm:$0xff] %v969
                  %v971 = vld [vmem:[%s595 + $0xbb0] sm:$0xff]
                  %972 = vst [vmem:[%s596 + $0x5d8] sm:$0xff] %v971
                  %v973 = vld [vmem:[%s595 + $0xbc0] sm:$0xff]
                  %974 = vst [vmem:[%s596 + $0x5e0] sm:$0xff] %v973
                  %v975 = vld [vmem:[%s595 + $0xbd0] sm:$0xff]
                  %976 = vst [vmem:[%s596 + $0x5e8] sm:$0xff] %v975
                  %v977 = vld [vmem:[%s595 + $0xbe0] sm:$0xff]
                  %978 = vst [vmem:[%s596 + $0x5f0] sm:$0xff] %v977
                  %v979 = vld [vmem:[%s595 + $0xbf0] sm:$0xff]
                  %980 = vst [vmem:[%s596 + $0x5f8] sm:$0xff] %v979
                $region64: #{pointnet_encoder_forward.4} parent=58 // loop_footer
                  %s594 = sadd.s32 1, %s590
                $region65: #{pointnet_encoder_forward.4} parent=58 // loop_footer_branch
                  %589 = sbr.rel target = $region61
                $region66: #{pointnet_encoder_forward.4} parent=58 // loop_exit
                  _
              $region59: #{pointnet_encoder_forward.4} parent=43 // pred_fallthru
                _
              // Predicated region
              $region67: #{pointnet_encoder_forward.4} parent=43 // pred_check
                _
              $region68: #{pointnet_encoder_forward.4} parent=43 // pred_check_branch
                %982 = sbr.rel target = $region70
              $region69: #{pointnet_encoder_forward.4} parent=43 // pred_region
                _
              $region70: #{pointnet_encoder_forward.4} parent=43 // pred_fallthru
                _
            $region44: #{pointnet_encoder_forward.4} parent=39 // pred_fallthru
              _
            // Predicated region
            $region45: #{pointnet_encoder_forward.4} parent=39 // pred_check
              _
            $region46: #{pointnet_encoder_forward.4} parent=39 // pred_check_branch
              %192 = sbr.rel target = $region48
            $region47: #{pointnet_encoder_forward.4} parent=39 // pred_region
              %s194 = ssub.s32 256, 1
              loop: start=0, step=1, limit=1
              $region49: #{pointnet_encoder_forward.4} parent=47 // loop_pre_header
                _
              $region50: #{pointnet_encoder_forward.4} parent=47 // loop_header
                %s196 = sphi 0, %s200
                %p197 = scmp.ge.s32.totalorder %s196, 1
                %s201 = sphi %s186, %s186
                %s202 = sphi %s184, %s184
              $region51: #{pointnet_encoder_forward.4} parent=47 // loop_header_branch
                %199 = sbr.rel (%p197) target = $region55
              $region52: #{pointnet_encoder_forward.4} parent=47 // loop_body
                %v203 = vld [vmem:[%s201] sm:%s194]
                %204 = vst [vmem:[%s202] sm:%s194] %v203
                %v205 = vld [vmem:[%s201 + $0x10] sm:%s194]
                %206 = vst [vmem:[%s202 + $0x8] sm:%s194] %v205
                %v207 = vld [vmem:[%s201 + $0x20] sm:%s194]
                %208 = vst [vmem:[%s202 + $0x10] sm:%s194] %v207
                %v209 = vld [vmem:[%s201 + $0x30] sm:%s194]
                %210 = vst [vmem:[%s202 + $0x18] sm:%s194] %v209
                %v211 = vld [vmem:[%s201 + $0x40] sm:%s194]
                %212 = vst [vmem:[%s202 + $0x20] sm:%s194] %v211
                %v213 = vld [vmem:[%s201 + $0x50] sm:%s194]
                %214 = vst [vmem:[%s202 + $0x28] sm:%s194] %v213
                %v215 = vld [vmem:[%s201 + $0x60] sm:%s194]
                %216 = vst [vmem:[%s202 + $0x30] sm:%s194] %v215
                %v217 = vld [vmem:[%s201 + $0x70] sm:%s194]
                %218 = vst [vmem:[%s202 + $0x38] sm:%s194] %v217
                %v219 = vld [vmem:[%s201 + $0x80] sm:%s194]
                %220 = vst [vmem:[%s202 + $0x40] sm:%s194] %v219
                %v221 = vld [vmem:[%s201 + $0x90] sm:%s194]
                %222 = vst [vmem:[%s202 + $0x48] sm:%s194] %v221
                %v223 = vld [vmem:[%s201 + $0xa0] sm:%s194]
                %224 = vst [vmem:[%s202 + $0x50] sm:%s194] %v223
                %v225 = vld [vmem:[%s201 + $0xb0] sm:%s194]
                %226 = vst [vmem:[%s202 + $0x58] sm:%s194] %v225
                %v227 = vld [vmem:[%s201 + $0xc0] sm:%s194]
                %228 = vst [vmem:[%s202 + $0x60] sm:%s194] %v227
                %v229 = vld [vmem:[%s201 + $0xd0] sm:%s194]
                %230 = vst [vmem:[%s202 + $0x68] sm:%s194] %v229
                %v231 = vld [vmem:[%s201 + $0xe0] sm:%s194]
                %232 = vst [vmem:[%s202 + $0x70] sm:%s194] %v231
                %v233 = vld [vmem:[%s201 + $0xf0] sm:%s194]
                %234 = vst [vmem:[%s202 + $0x78] sm:%s194] %v233
                %v235 = vld [vmem:[%s201 + $0x100] sm:%s194]
                %236 = vst [vmem:[%s202 + $0x80] sm:%s194] %v235
                %v237 = vld [vmem:[%s201 + $0x110] sm:%s194]
                %238 = vst [vmem:[%s202 + $0x88] sm:%s194] %v237
                %v239 = vld [vmem:[%s201 + $0x120] sm:%s194]
                %240 = vst [vmem:[%s202 + $0x90] sm:%s194] %v239
                %v241 = vld [vmem:[%s201 + $0x130] sm:%s194]
                %242 = vst [vmem:[%s202 + $0x98] sm:%s194] %v241
                %v243 = vld [vmem:[%s201 + $0x140] sm:%s194]
                %244 = vst [vmem:[%s202 + $0xa0] sm:%s194] %v243
                %v245 = vld [vmem:[%s201 + $0x150] sm:%s194]
                %246 = vst [vmem:[%s202 + $0xa8] sm:%s194] %v245
                %v247 = vld [vmem:[%s201 + $0x160] sm:%s194]
                %248 = vst [vmem:[%s202 + $0xb0] sm:%s194] %v247
                %v249 = vld [vmem:[%s201 + $0x170] sm:%s194]
                %250 = vst [vmem:[%s202 + $0xb8] sm:%s194] %v249
                %v251 = vld [vmem:[%s201 + $0x180] sm:%s194]
                %252 = vst [vmem:[%s202 + $0xc0] sm:%s194] %v251
                %v253 = vld [vmem:[%s201 + $0x190] sm:%s194]
                %254 = vst [vmem:[%s202 + $0xc8] sm:%s194] %v253
                %v255 = vld [vmem:[%s201 + $0x1a0] sm:%s194]
                %256 = vst [vmem:[%s202 + $0xd0] sm:%s194] %v255
                %v257 = vld [vmem:[%s201 + $0x1b0] sm:%s194]
                %258 = vst [vmem:[%s202 + $0xd8] sm:%s194] %v257
                %v259 = vld [vmem:[%s201 + $0x1c0] sm:%s194]
                %260 = vst [vmem:[%s202 + $0xe0] sm:%s194] %v259
                %v261 = vld [vmem:[%s201 + $0x1d0] sm:%s194]
                %262 = vst [vmem:[%s202 + $0xe8] sm:%s194] %v261
                %v263 = vld [vmem:[%s201 + $0x1e0] sm:%s194]
                %264 = vst [vmem:[%s202 + $0xf0] sm:%s194] %v263
                %v265 = vld [vmem:[%s201 + $0x1f0] sm:%s194]
                %266 = vst [vmem:[%s202 + $0xf8] sm:%s194] %v265
                %v267 = vld [vmem:[%s201 + $0x200] sm:%s194]
                %268 = vst [vmem:[%s202 + $0x100] sm:%s194] %v267
                %v269 = vld [vmem:[%s201 + $0x210] sm:%s194]
                %270 = vst [vmem:[%s202 + $0x108] sm:%s194] %v269
                %v271 = vld [vmem:[%s201 + $0x220] sm:%s194]
                %272 = vst [vmem:[%s202 + $0x110] sm:%s194] %v271
                %v273 = vld [vmem:[%s201 + $0x230] sm:%s194]
                %274 = vst [vmem:[%s202 + $0x118] sm:%s194] %v273
                %v275 = vld [vmem:[%s201 + $0x240] sm:%s194]
                %276 = vst [vmem:[%s202 + $0x120] sm:%s194] %v275
                %v277 = vld [vmem:[%s201 + $0x250] sm:%s194]
                %278 = vst [vmem:[%s202 + $0x128] sm:%s194] %v277
                %v279 = vld [vmem:[%s201 + $0x260] sm:%s194]
                %280 = vst [vmem:[%s202 + $0x130] sm:%s194] %v279
                %v281 = vld [vmem:[%s201 + $0x270] sm:%s194]
                %282 = vst [vmem:[%s202 + $0x138] sm:%s194] %v281
                %v283 = vld [vmem:[%s201 + $0x280] sm:%s194]
                %284 = vst [vmem:[%s202 + $0x140] sm:%s194] %v283
                %v285 = vld [vmem:[%s201 + $0x290] sm:%s194]
                %286 = vst [vmem:[%s202 + $0x148] sm:%s194] %v285
                %v287 = vld [vmem:[%s201 + $0x2a0] sm:%s194]
                %288 = vst [vmem:[%s202 + $0x150] sm:%s194] %v287
                %v289 = vld [vmem:[%s201 + $0x2b0] sm:%s194]
                %290 = vst [vmem:[%s202 + $0x158] sm:%s194] %v289
                %v291 = vld [vmem:[%s201 + $0x2c0] sm:%s194]
                %292 = vst [vmem:[%s202 + $0x160] sm:%s194] %v291
                %v293 = vld [vmem:[%s201 + $0x2d0] sm:%s194]
                %294 = vst [vmem:[%s202 + $0x168] sm:%s194] %v293
                %v295 = vld [vmem:[%s201 + $0x2e0] sm:%s194]
                %296 = vst [vmem:[%s202 + $0x170] sm:%s194] %v295
                %v297 = vld [vmem:[%s201 + $0x2f0] sm:%s194]
                %298 = vst [vmem:[%s202 + $0x178] sm:%s194] %v297
                %v299 = vld [vmem:[%s201 + $0x300] sm:%s194]
                %300 = vst [vmem:[%s202 + $0x180] sm:%s194] %v299
                %v301 = vld [vmem:[%s201 + $0x310] sm:%s194]
                %302 = vst [vmem:[%s202 + $0x188] sm:%s194] %v301
                %v303 = vld [vmem:[%s201 + $0x320] sm:%s194]
                %304 = vst [vmem:[%s202 + $0x190] sm:%s194] %v303
                %v305 = vld [vmem:[%s201 + $0x330] sm:%s194]
                %306 = vst [vmem:[%s202 + $0x198] sm:%s194] %v305
                %v307 = vld [vmem:[%s201 + $0x340] sm:%s194]
                %308 = vst [vmem:[%s202 + $0x1a0] sm:%s194] %v307
                %v309 = vld [vmem:[%s201 + $0x350] sm:%s194]
                %310 = vst [vmem:[%s202 + $0x1a8] sm:%s194] %v309
                %v311 = vld [vmem:[%s201 + $0x360] sm:%s194]
                %312 = vst [vmem:[%s202 + $0x1b0] sm:%s194] %v311
                %v313 = vld [vmem:[%s201 + $0x370] sm:%s194]
                %314 = vst [vmem:[%s202 + $0x1b8] sm:%s194] %v313
                %v315 = vld [vmem:[%s201 + $0x380] sm:%s194]
                %316 = vst [vmem:[%s202 + $0x1c0] sm:%s194] %v315
                %v317 = vld [vmem:[%s201 + $0x390] sm:%s194]
                %318 = vst [vmem:[%s202 + $0x1c8] sm:%s194] %v317
                %v319 = vld [vmem:[%s201 + $0x3a0] sm:%s194]
                %320 = vst [vmem:[%s202 + $0x1d0] sm:%s194] %v319
                %v321 = vld [vmem:[%s201 + $0x3b0] sm:%s194]
                %322 = vst [vmem:[%s202 + $0x1d8] sm:%s194] %v321
                %v323 = vld [vmem:[%s201 + $0x3c0] sm:%s194]
                %324 = vst [vmem:[%s202 + $0x1e0] sm:%s194] %v323
                %v325 = vld [vmem:[%s201 + $0x3d0] sm:%s194]
                %326 = vst [vmem:[%s202 + $0x1e8] sm:%s194] %v325
                %v327 = vld [vmem:[%s201 + $0x3e0] sm:%s194]
                %328 = vst [vmem:[%s202 + $0x1f0] sm:%s194] %v327
                %v329 = vld [vmem:[%s201 + $0x3f0] sm:%s194]
                %330 = vst [vmem:[%s202 + $0x1f8] sm:%s194] %v329
                %v331 = vld [vmem:[%s201 + $0x400] sm:%s194]
                %332 = vst [vmem:[%s202 + $0x200] sm:%s194] %v331
                %v333 = vld [vmem:[%s201 + $0x410] sm:%s194]
                %334 = vst [vmem:[%s202 + $0x208] sm:%s194] %v333
                %v335 = vld [vmem:[%s201 + $0x420] sm:%s194]
                %336 = vst [vmem:[%s202 + $0x210] sm:%s194] %v335
                %v337 = vld [vmem:[%s201 + $0x430] sm:%s194]
                %338 = vst [vmem:[%s202 + $0x218] sm:%s194] %v337
                %v339 = vld [vmem:[%s201 + $0x440] sm:%s194]
                %340 = vst [vmem:[%s202 + $0x220] sm:%s194] %v339
                %v341 = vld [vmem:[%s201 + $0x450] sm:%s194]
                %342 = vst [vmem:[%s202 + $0x228] sm:%s194] %v341
                %v343 = vld [vmem:[%s201 + $0x460] sm:%s194]
                %344 = vst [vmem:[%s202 + $0x230] sm:%s194] %v343
                %v345 = vld [vmem:[%s201 + $0x470] sm:%s194]
                %346 = vst [vmem:[%s202 + $0x238] sm:%s194] %v345
                %v347 = vld [vmem:[%s201 + $0x480] sm:%s194]
                %348 = vst [vmem:[%s202 + $0x240] sm:%s194] %v347
                %v349 = vld [vmem:[%s201 + $0x490] sm:%s194]
                %350 = vst [vmem:[%s202 + $0x248] sm:%s194] %v349
                %v351 = vld [vmem:[%s201 + $0x4a0] sm:%s194]
                %352 = vst [vmem:[%s202 + $0x250] sm:%s194] %v351
                %v353 = vld [vmem:[%s201 + $0x4b0] sm:%s194]
                %354 = vst [vmem:[%s202 + $0x258] sm:%s194] %v353
                %v355 = vld [vmem:[%s201 + $0x4c0] sm:%s194]
                %356 = vst [vmem:[%s202 + $0x260] sm:%s194] %v355
                %v357 = vld [vmem:[%s201 + $0x4d0] sm:%s194]
                %358 = vst [vmem:[%s202 + $0x268] sm:%s194] %v357
                %v359 = vld [vmem:[%s201 + $0x4e0] sm:%s194]
                %360 = vst [vmem:[%s202 + $0x270] sm:%s194] %v359
                %v361 = vld [vmem:[%s201 + $0x4f0] sm:%s194]
                %362 = vst [vmem:[%s202 + $0x278] sm:%s194] %v361
                %v363 = vld [vmem:[%s201 + $0x500] sm:%s194]
                %364 = vst [vmem:[%s202 + $0x280] sm:%s194] %v363
                %v365 = vld [vmem:[%s201 + $0x510] sm:%s194]
                %366 = vst [vmem:[%s202 + $0x288] sm:%s194] %v365
                %v367 = vld [vmem:[%s201 + $0x520] sm:%s194]
                %368 = vst [vmem:[%s202 + $0x290] sm:%s194] %v367
                %v369 = vld [vmem:[%s201 + $0x530] sm:%s194]
                %370 = vst [vmem:[%s202 + $0x298] sm:%s194] %v369
                %v371 = vld [vmem:[%s201 + $0x540] sm:%s194]
                %372 = vst [vmem:[%s202 + $0x2a0] sm:%s194] %v371
                %v373 = vld [vmem:[%s201 + $0x550] sm:%s194]
                %374 = vst [vmem:[%s202 + $0x2a8] sm:%s194] %v373
                %v375 = vld [vmem:[%s201 + $0x560] sm:%s194]
                %376 = vst [vmem:[%s202 + $0x2b0] sm:%s194] %v375
                %v377 = vld [vmem:[%s201 + $0x570] sm:%s194]
                %378 = vst [vmem:[%s202 + $0x2b8] sm:%s194] %v377
                %v379 = vld [vmem:[%s201 + $0x580] sm:%s194]
                %380 = vst [vmem:[%s202 + $0x2c0] sm:%s194] %v379
                %v381 = vld [vmem:[%s201 + $0x590] sm:%s194]
                %382 = vst [vmem:[%s202 + $0x2c8] sm:%s194] %v381
                %v383 = vld [vmem:[%s201 + $0x5a0] sm:%s194]
                %384 = vst [vmem:[%s202 + $0x2d0] sm:%s194] %v383
                %v385 = vld [vmem:[%s201 + $0x5b0] sm:%s194]
                %386 = vst [vmem:[%s202 + $0x2d8] sm:%s194] %v385
                %v387 = vld [vmem:[%s201 + $0x5c0] sm:%s194]
                %388 = vst [vmem:[%s202 + $0x2e0] sm:%s194] %v387
                %v389 = vld [vmem:[%s201 + $0x5d0] sm:%s194]
                %390 = vst [vmem:[%s202 + $0x2e8] sm:%s194] %v389
                %v391 = vld [vmem:[%s201 + $0x5e0] sm:%s194]
                %392 = vst [vmem:[%s202 + $0x2f0] sm:%s194] %v391
                %v393 = vld [vmem:[%s201 + $0x5f0] sm:%s194]
                %394 = vst [vmem:[%s202 + $0x2f8] sm:%s194] %v393
                %v395 = vld [vmem:[%s201 + $0x600] sm:%s194]
                %396 = vst [vmem:[%s202 + $0x300] sm:%s194] %v395
                %v397 = vld [vmem:[%s201 + $0x610] sm:%s194]
                %398 = vst [vmem:[%s202 + $0x308] sm:%s194] %v397
                %v399 = vld [vmem:[%s201 + $0x620] sm:%s194]
                %400 = vst [vmem:[%s202 + $0x310] sm:%s194] %v399
                %v401 = vld [vmem:[%s201 + $0x630] sm:%s194]
                %402 = vst [vmem:[%s202 + $0x318] sm:%s194] %v401
                %v403 = vld [vmem:[%s201 + $0x640] sm:%s194]
                %404 = vst [vmem:[%s202 + $0x320] sm:%s194] %v403
                %v405 = vld [vmem:[%s201 + $0x650] sm:%s194]
                %406 = vst [vmem:[%s202 + $0x328] sm:%s194] %v405
                %v407 = vld [vmem:[%s201 + $0x660] sm:%s194]
                %408 = vst [vmem:[%s202 + $0x330] sm:%s194] %v407
                %v409 = vld [vmem:[%s201 + $0x670] sm:%s194]
                %410 = vst [vmem:[%s202 + $0x338] sm:%s194] %v409
                %v411 = vld [vmem:[%s201 + $0x680] sm:%s194]
                %412 = vst [vmem:[%s202 + $0x340] sm:%s194] %v411
                %v413 = vld [vmem:[%s201 + $0x690] sm:%s194]
                %414 = vst [vmem:[%s202 + $0x348] sm:%s194] %v413
                %v415 = vld [vmem:[%s201 + $0x6a0] sm:%s194]
                %416 = vst [vmem:[%s202 + $0x350] sm:%s194] %v415
                %v417 = vld [vmem:[%s201 + $0x6b0] sm:%s194]
                %418 = vst [vmem:[%s202 + $0x358] sm:%s194] %v417
                %v419 = vld [vmem:[%s201 + $0x6c0] sm:%s194]
                %420 = vst [vmem:[%s202 + $0x360] sm:%s194] %v419
                %v421 = vld [vmem:[%s201 + $0x6d0] sm:%s194]
                %422 = vst [vmem:[%s202 + $0x368] sm:%s194] %v421
                %v423 = vld [vmem:[%s201 + $0x6e0] sm:%s194]
                %424 = vst [vmem:[%s202 + $0x370] sm:%s194] %v423
                %v425 = vld [vmem:[%s201 + $0x6f0] sm:%s194]
                %426 = vst [vmem:[%s202 + $0x378] sm:%s194] %v425
                %v427 = vld [vmem:[%s201 + $0x700] sm:%s194]
                %428 = vst [vmem:[%s202 + $0x380] sm:%s194] %v427
                %v429 = vld [vmem:[%s201 + $0x710] sm:%s194]
                %430 = vst [vmem:[%s202 + $0x388] sm:%s194] %v429
                %v431 = vld [vmem:[%s201 + $0x720] sm:%s194]
                %432 = vst [vmem:[%s202 + $0x390] sm:%s194] %v431
                %v433 = vld [vmem:[%s201 + $0x730] sm:%s194]
                %434 = vst [vmem:[%s202 + $0x398] sm:%s194] %v433
                %v435 = vld [vmem:[%s201 + $0x740] sm:%s194]
                %436 = vst [vmem:[%s202 + $0x3a0] sm:%s194] %v435
                %v437 = vld [vmem:[%s201 + $0x750] sm:%s194]
                %438 = vst [vmem:[%s202 + $0x3a8] sm:%s194] %v437
                %v439 = vld [vmem:[%s201 + $0x760] sm:%s194]
                %440 = vst [vmem:[%s202 + $0x3b0] sm:%s194] %v439
                %v441 = vld [vmem:[%s201 + $0x770] sm:%s194]
                %442 = vst [vmem:[%s202 + $0x3b8] sm:%s194] %v441
                %v443 = vld [vmem:[%s201 + $0x780] sm:%s194]
                %444 = vst [vmem:[%s202 + $0x3c0] sm:%s194] %v443
                %v445 = vld [vmem:[%s201 + $0x790] sm:%s194]
                %446 = vst [vmem:[%s202 + $0x3c8] sm:%s194] %v445
                %v447 = vld [vmem:[%s201 + $0x7a0] sm:%s194]
                %448 = vst [vmem:[%s202 + $0x3d0] sm:%s194] %v447
                %v449 = vld [vmem:[%s201 + $0x7b0] sm:%s194]
                %450 = vst [vmem:[%s202 + $0x3d8] sm:%s194] %v449
                %v451 = vld [vmem:[%s201 + $0x7c0] sm:%s194]
                %452 = vst [vmem:[%s202 + $0x3e0] sm:%s194] %v451
                %v453 = vld [vmem:[%s201 + $0x7d0] sm:%s194]
                %454 = vst [vmem:[%s202 + $0x3e8] sm:%s194] %v453
                %v455 = vld [vmem:[%s201 + $0x7e0] sm:%s194]
                %456 = vst [vmem:[%s202 + $0x3f0] sm:%s194] %v455
                %v457 = vld [vmem:[%s201 + $0x7f0] sm:%s194]
                %458 = vst [vmem:[%s202 + $0x3f8] sm:%s194] %v457
                %v459 = vld [vmem:[%s201 + $0x800] sm:%s194]
                %460 = vst [vmem:[%s202 + $0x400] sm:%s194] %v459
                %v461 = vld [vmem:[%s201 + $0x810] sm:%s194]
                %462 = vst [vmem:[%s202 + $0x408] sm:%s194] %v461
                %v463 = vld [vmem:[%s201 + $0x820] sm:%s194]
                %464 = vst [vmem:[%s202 + $0x410] sm:%s194] %v463
                %v465 = vld [vmem:[%s201 + $0x830] sm:%s194]
                %466 = vst [vmem:[%s202 + $0x418] sm:%s194] %v465
                %v467 = vld [vmem:[%s201 + $0x840] sm:%s194]
                %468 = vst [vmem:[%s202 + $0x420] sm:%s194] %v467
                %v469 = vld [vmem:[%s201 + $0x850] sm:%s194]
                %470 = vst [vmem:[%s202 + $0x428] sm:%s194] %v469
                %v471 = vld [vmem:[%s201 + $0x860] sm:%s194]
                %472 = vst [vmem:[%s202 + $0x430] sm:%s194] %v471
                %v473 = vld [vmem:[%s201 + $0x870] sm:%s194]
                %474 = vst [vmem:[%s202 + $0x438] sm:%s194] %v473
                %v475 = vld [vmem:[%s201 + $0x880] sm:%s194]
                %476 = vst [vmem:[%s202 + $0x440] sm:%s194] %v475
                %v477 = vld [vmem:[%s201 + $0x890] sm:%s194]
                %478 = vst [vmem:[%s202 + $0x448] sm:%s194] %v477
                %v479 = vld [vmem:[%s201 + $0x8a0] sm:%s194]
                %480 = vst [vmem:[%s202 + $0x450] sm:%s194] %v479
                %v481 = vld [vmem:[%s201 + $0x8b0] sm:%s194]
                %482 = vst [vmem:[%s202 + $0x458] sm:%s194] %v481
                %v483 = vld [vmem:[%s201 + $0x8c0] sm:%s194]
                %484 = vst [vmem:[%s202 + $0x460] sm:%s194] %v483
                %v485 = vld [vmem:[%s201 + $0x8d0] sm:%s194]
                %486 = vst [vmem:[%s202 + $0x468] sm:%s194] %v485
                %v487 = vld [vmem:[%s201 + $0x8e0] sm:%s194]
                %488 = vst [vmem:[%s202 + $0x470] sm:%s194] %v487
                %v489 = vld [vmem:[%s201 + $0x8f0] sm:%s194]
                %490 = vst [vmem:[%s202 + $0x478] sm:%s194] %v489
                %v491 = vld [vmem:[%s201 + $0x900] sm:%s194]
                %492 = vst [vmem:[%s202 + $0x480] sm:%s194] %v491
                %v493 = vld [vmem:[%s201 + $0x910] sm:%s194]
                %494 = vst [vmem:[%s202 + $0x488] sm:%s194] %v493
                %v495 = vld [vmem:[%s201 + $0x920] sm:%s194]
                %496 = vst [vmem:[%s202 + $0x490] sm:%s194] %v495
                %v497 = vld [vmem:[%s201 + $0x930] sm:%s194]
                %498 = vst [vmem:[%s202 + $0x498] sm:%s194] %v497
                %v499 = vld [vmem:[%s201 + $0x940] sm:%s194]
                %500 = vst [vmem:[%s202 + $0x4a0] sm:%s194] %v499
                %v501 = vld [vmem:[%s201 + $0x950] sm:%s194]
                %502 = vst [vmem:[%s202 + $0x4a8] sm:%s194] %v501
                %v503 = vld [vmem:[%s201 + $0x960] sm:%s194]
                %504 = vst [vmem:[%s202 + $0x4b0] sm:%s194] %v503
                %v505 = vld [vmem:[%s201 + $0x970] sm:%s194]
                %506 = vst [vmem:[%s202 + $0x4b8] sm:%s194] %v505
                %v507 = vld [vmem:[%s201 + $0x980] sm:%s194]
                %508 = vst [vmem:[%s202 + $0x4c0] sm:%s194] %v507
                %v509 = vld [vmem:[%s201 + $0x990] sm:%s194]
                %510 = vst [vmem:[%s202 + $0x4c8] sm:%s194] %v509
                %v511 = vld [vmem:[%s201 + $0x9a0] sm:%s194]
                %512 = vst [vmem:[%s202 + $0x4d0] sm:%s194] %v511
                %v513 = vld [vmem:[%s201 + $0x9b0] sm:%s194]
                %514 = vst [vmem:[%s202 + $0x4d8] sm:%s194] %v513
                %v515 = vld [vmem:[%s201 + $0x9c0] sm:%s194]
                %516 = vst [vmem:[%s202 + $0x4e0] sm:%s194] %v515
                %v517 = vld [vmem:[%s201 + $0x9d0] sm:%s194]
                %518 = vst [vmem:[%s202 + $0x4e8] sm:%s194] %v517
                %v519 = vld [vmem:[%s201 + $0x9e0] sm:%s194]
                %520 = vst [vmem:[%s202 + $0x4f0] sm:%s194] %v519
                %v521 = vld [vmem:[%s201 + $0x9f0] sm:%s194]
                %522 = vst [vmem:[%s202 + $0x4f8] sm:%s194] %v521
                %v523 = vld [vmem:[%s201 + $0xa00] sm:%s194]
                %524 = vst [vmem:[%s202 + $0x500] sm:%s194] %v523
                %v525 = vld [vmem:[%s201 + $0xa10] sm:%s194]
                %526 = vst [vmem:[%s202 + $0x508] sm:%s194] %v525
                %v527 = vld [vmem:[%s201 + $0xa20] sm:%s194]
                %528 = vst [vmem:[%s202 + $0x510] sm:%s194] %v527
                %v529 = vld [vmem:[%s201 + $0xa30] sm:%s194]
                %530 = vst [vmem:[%s202 + $0x518] sm:%s194] %v529
                %v531 = vld [vmem:[%s201 + $0xa40] sm:%s194]
                %532 = vst [vmem:[%s202 + $0x520] sm:%s194] %v531
                %v533 = vld [vmem:[%s201 + $0xa50] sm:%s194]
                %534 = vst [vmem:[%s202 + $0x528] sm:%s194] %v533
                %v535 = vld [vmem:[%s201 + $0xa60] sm:%s194]
                %536 = vst [vmem:[%s202 + $0x530] sm:%s194] %v535
                %v537 = vld [vmem:[%s201 + $0xa70] sm:%s194]
                %538 = vst [vmem:[%s202 + $0x538] sm:%s194] %v537
                %v539 = vld [vmem:[%s201 + $0xa80] sm:%s194]
                %540 = vst [vmem:[%s202 + $0x540] sm:%s194] %v539
                %v541 = vld [vmem:[%s201 + $0xa90] sm:%s194]
                %542 = vst [vmem:[%s202 + $0x548] sm:%s194] %v541
                %v543 = vld [vmem:[%s201 + $0xaa0] sm:%s194]
                %544 = vst [vmem:[%s202 + $0x550] sm:%s194] %v543
                %v545 = vld [vmem:[%s201 + $0xab0] sm:%s194]
                %546 = vst [vmem:[%s202 + $0x558] sm:%s194] %v545
                %v547 = vld [vmem:[%s201 + $0xac0] sm:%s194]
                %548 = vst [vmem:[%s202 + $0x560] sm:%s194] %v547
                %v549 = vld [vmem:[%s201 + $0xad0] sm:%s194]
                %550 = vst [vmem:[%s202 + $0x568] sm:%s194] %v549
                %v551 = vld [vmem:[%s201 + $0xae0] sm:%s194]
                %552 = vst [vmem:[%s202 + $0x570] sm:%s194] %v551
                %v553 = vld [vmem:[%s201 + $0xaf0] sm:%s194]
                %554 = vst [vmem:[%s202 + $0x578] sm:%s194] %v553
                %v555 = vld [vmem:[%s201 + $0xb00] sm:%s194]
                %556 = vst [vmem:[%s202 + $0x580] sm:%s194] %v555
                %v557 = vld [vmem:[%s201 + $0xb10] sm:%s194]
                %558 = vst [vmem:[%s202 + $0x588] sm:%s194] %v557
                %v559 = vld [vmem:[%s201 + $0xb20] sm:%s194]
                %560 = vst [vmem:[%s202 + $0x590] sm:%s194] %v559
                %v561 = vld [vmem:[%s201 + $0xb30] sm:%s194]
                %562 = vst [vmem:[%s202 + $0x598] sm:%s194] %v561
                %v563 = vld [vmem:[%s201 + $0xb40] sm:%s194]
                %564 = vst [vmem:[%s202 + $0x5a0] sm:%s194] %v563
                %v565 = vld [vmem:[%s201 + $0xb50] sm:%s194]
                %566 = vst [vmem:[%s202 + $0x5a8] sm:%s194] %v565
                %v567 = vld [vmem:[%s201 + $0xb60] sm:%s194]
                %568 = vst [vmem:[%s202 + $0x5b0] sm:%s194] %v567
                %v569 = vld [vmem:[%s201 + $0xb70] sm:%s194]
                %570 = vst [vmem:[%s202 + $0x5b8] sm:%s194] %v569
                %v571 = vld [vmem:[%s201 + $0xb80] sm:%s194]
                %572 = vst [vmem:[%s202 + $0x5c0] sm:%s194] %v571
                %v573 = vld [vmem:[%s201 + $0xb90] sm:%s194]
                %574 = vst [vmem:[%s202 + $0x5c8] sm:%s194] %v573
                %v575 = vld [vmem:[%s201 + $0xba0] sm:%s194]
                %576 = vst [vmem:[%s202 + $0x5d0] sm:%s194] %v575
                %v577 = vld [vmem:[%s201 + $0xbb0] sm:%s194]
                %578 = vst [vmem:[%s202 + $0x5d8] sm:%s194] %v577
                %v579 = vld [vmem:[%s201 + $0xbc0] sm:%s194]
                %580 = vst [vmem:[%s202 + $0x5e0] sm:%s194] %v579
                %v581 = vld [vmem:[%s201 + $0xbd0] sm:%s194]
                %582 = vst [vmem:[%s202 + $0x5e8] sm:%s194] %v581
                %v583 = vld [vmem:[%s201 + $0xbe0] sm:%s194]
                %584 = vst [vmem:[%s202 + $0x5f0] sm:%s194] %v583
                %v585 = vld [vmem:[%s201 + $0xbf0] sm:%s194]
                %586 = vst [vmem:[%s202 + $0x5f8] sm:%s194] %v585
              $region53: #{pointnet_encoder_forward.4} parent=47 // loop_footer
                %s200 = sadd.s32 1, %s196
              $region54: #{pointnet_encoder_forward.4} parent=47 // loop_footer_branch
                %195 = sbr.rel target = $region50
              $region55: #{pointnet_encoder_forward.4} parent=47 // loop_exit
                _
            $region48: #{pointnet_encoder_forward.4} parent=39 // pred_fallthru
              _
          $region40: #{pointnet_encoder_forward.4} parent=35 // pred_fallthru
            _
          %983 = vnop
        $region36: #{pointnet_encoder_forward.4} parent=31 // pred_fallthru
          _
      $region32: #{pointnet_encoder_forward.4} parent=5 // pred_fallthru
        _
      %p984 = scmp.le.s32.totalorder 1, %s11
      %p985 = scmp.lt.s32.totalorder %s11, 3
      %p986 = pnand %p984, %p985
      %p987 = pneg %p986
      // Predicated region
      $region71: #{pointnet_encoder_forward.4} parent=5 // pred_check
        _
      $region72: #{pointnet_encoder_forward.4} parent=5 // pred_check_branch
        %989 = sbr.rel (%p986) target = $region74
      $region73: #{pointnet_encoder_forward.4} parent=5 // pred_region
        %s990 = ssub.s32 %s11, 1
        %s991 = sand.u32 %s24, 1
        %s992 = sand.u32 %s24, 1
        %s993 = smul.addr %s992, 1536
        %s994 = scalar_lea.vmem [#allocation2], %s993
        // Predicated region
        $region75: #{pointnet_encoder_forward.4} parent=73 // pred_check
          %p995 = pneg %p37
        $region76: #{pointnet_encoder_forward.4} parent=73 // pred_check_branch
          %997 = sbr.rel (%p995) target = $region78
        $region77: #{pointnet_encoder_forward.4} parent=73 // pred_region
          _
        $region78: #{pointnet_encoder_forward.4} parent=73 // pred_fallthru
          _
        %s998 = sand.u32 %s24, 1
        %s999 = sand.u32 %s24, 1
        %s1000 = smul.addr %s999, 1536
        %s1001 = scalar_lea.vmem [#allocation2], %s1000
        %p1002 = pneg %p37
        %p1003 = pneg %p34
        %p1004 = pneg %p58
        %p1005 = pneg %p55
        %p1006 = pneg %p79
        %p1007 = pneg %p76
        %p1008 = pneg %p100
        %p1009 = pneg %p97
        %p1010 = pneg %p121
        %p1011 = pneg %p118
        %p1012 = pneg %p147
        %p1013 = pneg %p144
        %s1014 = sand.u32 %s134, 1
        %s1015 = sand.u32 %s134, 1
        %s1016 = smul.addr %s1015, 32
        %s1017 = scalar_lea.vmem [#allocation3], %s1016
        %v1018 = vld [vmem:[%s1] sm:$0xff]
        %v1019 = vld [vmem:[%s1 + $0x8] sm:$0xff]
        %v1020 = vld [vmem:[%s2] sm:$0xff]
        %v1021 = vld [vmem:[%s2 + $0x8] sm:$0xff]
        %v1022 = vld [vmem:[%s3] sm:$0xff]
        %v1023 = vld [vmem:[%s3 + $0x8] sm:$0xff]
        %v1024 = vld [vmem:[%s3 + $0x10] sm:$0xff]
        %v1025 = vld [vmem:[%s3 + $0x18] sm:$0xff]
        %v1026 = vld [vmem:[%s4] sm:$0xff]
        %v1027 = vld [vmem:[%s4 + $0x8] sm:$0xff]
        %v1028 = vld [vmem:[%s4 + $0x10] sm:$0xff]
        %v1029 = vld [vmem:[%s4 + $0x18] sm:$0xff]
        loop: start=0, step=1, limit=64
        $region79: #{pointnet_encoder_forward.4} parent=73 // loop_pre_header
          _
        $region80: #{pointnet_encoder_forward.4} parent=73 // loop_header
          %s1031 = sphi 0, %s1035
          %p1032 = scmp.ge.s32.totalorder %s1031, 64
          %v1036 = vphi 0.0, %v1157
          %v1037 = vphi 0.0, %v1158
          %v1038 = vphi 0.0, %v1159
          %v1039 = vphi 0.0, %v1160
        $region81: #{pointnet_encoder_forward.4} parent=73 // loop_header_branch
          %1034 = sbr.rel (%p1032) target = $region85
        $region82: #{pointnet_encoder_forward.4} parent=73 // loop_body
          %s1040 = smul.u32 %s1031, 24
          %s1041 = scalar_lea.vmem %s994, %s1040 [#allocation2]
          %v1042 = vld [vmem:[%s1041] sm:$0xff]
          %v1043 = vld [vmem:[%s1041 + $0x8] sm:$0xff]
          %v1044 = vld [vmem:[%s1041 + $0x10] sm:$0x7]
          %1046 = vset.pattern.permute.xlu0 0
          %1047 = vperm.xlu0 %1046, %v1020
          %v1048 = vpop.permute.xlu0 %1047
          %1051 = vset.pattern.permute.xlu0 0
          %1052 = vperm.xlu0 %1051, %v1021
          %v1053 = vpop.permute.xlu0 %1052
          %vm1055 = vcmask 154624
          %v1057 = vsel %vm1055, %v1018, 0
          %v1060 = vsel %vm1055, %v1019, 0
          %vm1062 = vcmask 1042432
          %v1064 = vsel %vm1062, %v1044, 0
          %1066 = vmatpush.msra.mxu0 0.0
          %1067 = vmatpush.msra.mxu0 0.0
          %1068 = vmatpush.msra.mxu0 0.0
          %1069 = vmatpush.msra.mxu0 0.0
          %1070 = vmatpush.msra.mxu0 0.0
          %1071 = vmatpush.msra.mxu0 0.0
          %1072 = vmatpush.msra.mxu0 0.0
          %1073 = vmatpush.msra.mxu0 0.0
          %1074 = vmatpush.msra.mxu0 0.0
          %1075 = vmatpush.msra.mxu0 0.0
          %1076 = vmatpush.msra.mxu0 0.0
          %1077 = vmatpush.msra.mxu0 0.0
          %1078 = vmatpush.msra.mxu0 0.0
          %1079 = vmatpush.msra.mxu0 %v1064
          %1080 = vmatpush.msra.mxu0 %v1043
          %1081 = vmatpush.msra.mxu0 %v1042
          %1082 = vmatmul.f32.gmra.mxu0 %v1057
          %v1083 = vpop.f32.mrf.mxu0
          %v1084 = vadd.f32 %v1048, %v1083
          %1085 = vmatmul.f32.gmra.mxu0 %v1060
          %v1086 = vpop.f32.mrf.mxu0
          %v1087 = vadd.f32 %v1053, %v1086
          %1088 = vdwg.mxu0
          %v1089 = vmax.f32 %v1084, 0.0
          %v1090 = vmax.f32 %v1087, 0.0
          %1092 = vset.pattern.permute.xlu0 0
          %1093 = vperm.xlu0 %1092, %v1026
          %v1094 = vpop.permute.xlu0 %1093
          %1097 = vset.pattern.permute.xlu0 0
          %1098 = vperm.xlu0 %1097, %v1027
          %v1099 = vpop.permute.xlu0 %1098
          %1102 = vset.pattern.permute.xlu0 0
          %1103 = vperm.xlu0 %1102, %v1028
          %v1104 = vpop.permute.xlu0 %1103
          %1107 = vset.pattern.permute.xlu0 0
          %1108 = vperm.xlu0 %1107, %v1029
          %v1109 = vpop.permute.xlu0 %1108
          %vm1111 = vcmask 130048
          %v1113 = vsel %vm1111, %v1022, 0
          %v1116 = vsel %vm1111, %v1023, 0
          %v1119 = vsel %vm1111, %v1024, 0
          %v1122 = vsel %vm1111, %v1025, 0
          %1124 = vmatpush.msra.mxu0 0.0
          %1125 = vmatpush.msra.mxu0 0.0
          %1126 = vmatpush.msra.mxu0 0.0
          %1127 = vmatpush.msra.mxu0 0.0
          %1128 = vmatpush.msra.mxu0 0.0
          %1129 = vmatpush.msra.mxu0 0.0
          %1130 = vmatpush.msra.mxu0 0.0
          %1131 = vmatpush.msra.mxu0 0.0
          %1132 = vmatpush.msra.mxu0 0.0
          %1133 = vmatpush.msra.mxu0 0.0
          %1134 = vmatpush.msra.mxu0 0.0
          %1135 = vmatpush.msra.mxu0 0.0
          %1136 = vmatpush.msra.mxu0 0.0
          %1137 = vmatpush.msra.mxu0 0.0
          %1138 = vmatpush.msra.mxu0 %v1090
          %1139 = vmatpush.msra.mxu0 %v1089
          %1140 = vmatmul.f32.gmra.mxu0 %v1113
          %v1141 = vpop.f32.mrf.mxu0
          %v1142 = vadd.f32 %v1094, %v1141
          %1143 = vmatmul.f32.gmra.mxu0 %v1116
          %v1144 = vpop.f32.mrf.mxu0
          %v1145 = vadd.f32 %v1099, %v1144
          %1146 = vmatmul.f32.gmra.mxu0 %v1119
          %v1147 = vpop.f32.mrf.mxu0
          %v1148 = vadd.f32 %v1104, %v1147
          %1149 = vmatmul.f32.gmra.mxu0 %v1122
          %v1150 = vpop.f32.mrf.mxu0
          %v1151 = vadd.f32 %v1109, %v1150
          %1152 = vdwg.mxu0
          %v1153 = vmax.f32 %v1142, 0.0
          %v1154 = vmax.f32 %v1145, 0.0
          %v1155 = vmax.f32 %v1148, 0.0
          %v1156 = vmax.f32 %v1151, 0.0
          %v1157 = vmax.f32 %v1036, %v1153
          %v1158 = vmax.f32 %v1037, %v1154
          %v1159 = vmax.f32 %v1038, %v1155
          %v1160 = vmax.f32 %v1039, %v1156
        $region83: #{pointnet_encoder_forward.4} parent=73 // loop_footer
          %s1035 = sadd.s32 1, %s1031
        $region84: #{pointnet_encoder_forward.4} parent=73 // loop_footer_branch
          %1030 = sbr.rel target = $region80
        $region85: #{pointnet_encoder_forward.4} parent=73 // loop_exit
          _
        %1161 = vst [vmem:[%s1017] sm:$0xff] %v1036
        %1162 = vst [vmem:[%s1017 + $0x8] sm:$0xff] %v1037
        %1163 = vst [vmem:[%s1017 + $0x10] sm:$0xff] %v1038
        %1164 = vst [vmem:[%s1017 + $0x18] sm:$0xff] %v1039
        %s1165 = sand.u32 %s134, 1
        %s1166 = sand.u32 %s134, 1
        %s1167 = smul.addr %s1166, 32
        %s1168 = scalar_lea.vmem [#allocation3], %s1167
        // Predicated region
        $region86: #{pointnet_encoder_forward.4} parent=73 // pred_check
          %p1169 = pneg %p144
        $region87: #{pointnet_encoder_forward.4} parent=73 // pred_check_branch
          %1171 = sbr.rel (%p1169) target = $region89
        $region88: #{pointnet_encoder_forward.4} parent=73 // pred_region
          %s1172 = smul.addr %s16, 8
          %s1173 = scalar_lea.vmem %s5, %s1172
          // Predicated region
          $region90: #{pointnet_encoder_forward.4} parent=88 // pred_check
            _
          $region91: #{pointnet_encoder_forward.4} parent=88 // pred_check_branch
            %1175 = sbr.rel (0) target = $region93
          $region92: #{pointnet_encoder_forward.4} parent=88 // pred_region
            // Predicated region
            $region94: #{pointnet_encoder_forward.4} parent=92 // pred_check
              _
            $region95: #{pointnet_encoder_forward.4} parent=92 // pred_check_branch
              %1177 = sbr.rel (0) target = $region97
            $region96: #{pointnet_encoder_forward.4} parent=92 // pred_region
              // Predicated region
              $region109: #{pointnet_encoder_forward.4} parent=96 // pred_check
                _
              $region110: #{pointnet_encoder_forward.4} parent=96 // pred_check_branch
                %1199 = sbr.rel (0) target = $region112
              $region111: #{pointnet_encoder_forward.4} parent=96 // pred_region
                loop: start=0, step=1, limit=1
                $region113: #{pointnet_encoder_forward.4} parent=111 // loop_pre_header
                  _
                $region114: #{pointnet_encoder_forward.4} parent=111 // loop_header
                  %s1201 = sphi 0, %s1205
                  %p1202 = scmp.ge.s32.totalorder %s1201, 1
                  %s1206 = sphi %s1168, %s1168
                  %s1207 = sphi %s1173, %s1173
                $region115: #{pointnet_encoder_forward.4} parent=111 // loop_header_branch
                  %1204 = sbr.rel (%p1202) target = $region119
                $region116: #{pointnet_encoder_forward.4} parent=111 // loop_body
                  %v1208 = vld [vmem:[%s1206] sm:$0xff]
                  %1209 = vst [vmem:[%s1207] sm:$0xff] %v1208
                  %v1210 = vld [vmem:[%s1206 + $0x8] sm:$0xff]
                  %1211 = vst [vmem:[%s1207 + $0x10] sm:$0xff] %v1210
                  %v1212 = vld [vmem:[%s1206 + $0x10] sm:$0xff]
                  %1213 = vst [vmem:[%s1207 + $0x20] sm:$0xff] %v1212
                  %v1214 = vld [vmem:[%s1206 + $0x18] sm:$0xff]
                  %1215 = vst [vmem:[%s1207 + $0x30] sm:$0xff] %v1214
                $region117: #{pointnet_encoder_forward.4} parent=111 // loop_footer
                  %s1205 = sadd.s32 1, %s1201
                $region118: #{pointnet_encoder_forward.4} parent=111 // loop_footer_branch
                  %1200 = sbr.rel target = $region114
                $region119: #{pointnet_encoder_forward.4} parent=111 // loop_exit
                  _
              $region112: #{pointnet_encoder_forward.4} parent=96 // pred_fallthru
                _
              // Predicated region
              $region120: #{pointnet_encoder_forward.4} parent=96 // pred_check
                _
              $region121: #{pointnet_encoder_forward.4} parent=96 // pred_check_branch
                %1217 = sbr.rel target = $region123
              $region122: #{pointnet_encoder_forward.4} parent=96 // pred_region
                _
              $region123: #{pointnet_encoder_forward.4} parent=96 // pred_fallthru
                _
            $region97: #{pointnet_encoder_forward.4} parent=92 // pred_fallthru
              _
            // Predicated region
            $region98: #{pointnet_encoder_forward.4} parent=92 // pred_check
              _
            $region99: #{pointnet_encoder_forward.4} parent=92 // pred_check_branch
              %1179 = sbr.rel target = $region101
            $region100: #{pointnet_encoder_forward.4} parent=92 // pred_region
              %s1181 = ssub.s32 256, 1
              loop: start=0, step=1, limit=1
              $region102: #{pointnet_encoder_forward.4} parent=100 // loop_pre_header
                _
              $region103: #{pointnet_encoder_forward.4} parent=100 // loop_header
                %s1183 = sphi 0, %s1187
                %p1184 = scmp.ge.s32.totalorder %s1183, 1
                %s1188 = sphi %s1168, %s1168
                %s1189 = sphi %s1173, %s1173
              $region104: #{pointnet_encoder_forward.4} parent=100 // loop_header_branch
                %1186 = sbr.rel (%p1184) target = $region108
              $region105: #{pointnet_encoder_forward.4} parent=100 // loop_body
                %v1190 = vld [vmem:[%s1188] sm:%s1181]
                %1191 = vst [vmem:[%s1189] sm:%s1181] %v1190
                %v1192 = vld [vmem:[%s1188 + $0x8] sm:%s1181]
                %1193 = vst [vmem:[%s1189 + $0x10] sm:%s1181] %v1192
                %v1194 = vld [vmem:[%s1188 + $0x10] sm:%s1181]
                %1195 = vst [vmem:[%s1189 + $0x20] sm:%s1181] %v1194
                %v1196 = vld [vmem:[%s1188 + $0x18] sm:%s1181]
                %1197 = vst [vmem:[%s1189 + $0x30] sm:%s1181] %v1196
              $region106: #{pointnet_encoder_forward.4} parent=100 // loop_footer
                %s1187 = sadd.s32 1, %s1183
              $region107: #{pointnet_encoder_forward.4} parent=100 // loop_footer_branch
                %1182 = sbr.rel target = $region103
              $region108: #{pointnet_encoder_forward.4} parent=100 // loop_exit
                _
            $region101: #{pointnet_encoder_forward.4} parent=92 // pred_fallthru
              _
          $region93: #{pointnet_encoder_forward.4} parent=88 // pred_fallthru
            _
          %1218 = vnop
        $region89: #{pointnet_encoder_forward.4} parent=73 // pred_fallthru
          _
      $region74: #{pointnet_encoder_forward.4} parent=5 // pred_fallthru
        _
      %p1219 = scmp.le.s32.totalorder 2, %s11
      // Predicated region
      $region124: #{pointnet_encoder_forward.4} parent=5 // pred_check
        %p1220 = pneg %p1219
      $region125: #{pointnet_encoder_forward.4} parent=5 // pred_check_branch
        %1222 = sbr.rel (%p1220) target = $region127
      $region126: #{pointnet_encoder_forward.4} parent=5 // pred_region
        %s1223 = ssub.s32 %s11, 2
        // Predicated region
        $region128: #{pointnet_encoder_forward.4} parent=126 // pred_check
          %p1224 = pneg %p150
        $region129: #{pointnet_encoder_forward.4} parent=126 // pred_check_branch
          %1226 = sbr.rel (%p1224) target = $region131
        $region130: #{pointnet_encoder_forward.4} parent=126 // pred_region
          %s1227 = sand.u32 %s135, 1
          %s1228 = sand.u32 %s135, 1
          %s1229 = smul.addr %s1228, 32
          %s1230 = scalar_lea.vmem [#allocation3], %s1229
        $region131: #{pointnet_encoder_forward.4} parent=126 // pred_fallthru
          _
      $region127: #{pointnet_encoder_forward.4} parent=5 // pred_fallthru
        _
    $region6: #{pointnet_encoder_forward.4} parent=1 // loop_footer
      %s15 = sadd.s32 1, %s11
    $region7: #{pointnet_encoder_forward.4} parent=1 // loop_footer_branch
      %10 = sbr.rel target = $region3
    $region8: #{pointnet_encoder_forward.4} parent=1 // loop_exit
      _

// kernel: pointnet_encoder_forward.5
$region0: #{pointnet_encoder_forward.5}
  #allocation0 [shape = 'u32[]', space=smem, size = 0x4, offset = 0x4, fixed_abs, tag = 'smem constant byte address 0x4 - core index']
  #allocation1 [shape = 'u32[72,128]{1,0:T(1,128)}', space=vmem, size = 0x9000, scoped, tag = 'internal scratch']
  %s0 = inlined_call_operand.vmem [shape: f32[2,35,128], index: 0, kind: input, shape index: {}]
  %s1 = inlined_call_operand.vmem [shape: f32[32,35], index: 1, kind: input, shape index: {}]
  %s2 = inlined_call_operand.vmem [shape: f32[32,1], index: 2, kind: input, shape index: {}]
  %s3 = inlined_call_operand.vmem [shape: f32[64,32], index: 3, kind: input, shape index: {}]
  %s4 = inlined_call_operand.vmem [shape: f32[64,1], index: 4, kind: input, shape index: {}]
  %s5 = inlined_call_operand.vmem [shape: f32[2,64,1], index: 5, kind: output, shape index: {}]
  %s6 = sld [smem:[#allocation0]]
  $region53: #{pointnet_encoder_forward.5} parent=0
    _
  %s8 = ssub.s32 1, %s6
  %s9 = scalar_select 0, %s8, %s6
  loop: start=0, step=1, limit=4
  $region2: #{pointnet_encoder_forward.5} parent=0 // loop_pre_header
    _
  $region3: #{pointnet_encoder_forward.5} parent=0 // loop_header
    %s11 = sphi 0, %s15
    %p12 = scmp.ge.s32.totalorder %s11, 4
    %s21 = sphi 0, %s23
    %s24 = sphi 0, %s21
    %s25 = sphi 0, %s24
    %s41 = sphi 0, %s25
    %s45 = sphi 0, %s45
    %s47 = sphi 0, %s45
    %s48 = sphi 0, %s47
    %s62 = sphi 0, %s48
    %s66 = sphi 0, %s66
    %s68 = sphi 0, %s66
    %s69 = sphi 0, %s68
    %s83 = sphi 0, %s69
    %s87 = sphi 0, %s87
    %s89 = sphi 0, %s87
    %s90 = sphi 0, %s89
    %s104 = sphi 0, %s90
    %s108 = sphi 0, %s108
    %s110 = sphi 0, %s108
    %s111 = sphi 0, %s110
    %s125 = sphi 0, %s111
    %s131 = sphi 0, %s133
    %s134 = sphi 0, %s131
    %s135 = sphi 0, %s134
    %s151 = sphi 0, %s135
  $region4: #{pointnet_encoder_forward.5} parent=0 // loop_header_branch
    %14 = sbr.rel (%p12) target = $region8
  $region5: #{pointnet_encoder_forward.5} parent=0 // loop_body
    %s16 = ssub.s32 %s11, 1
    %s17 = ssub.s32 %s11, 2
    %s18 = sadd.s32 %s11, 1
    %s19 = ssub.s32 %s11, %s18
    %p20 = scmp.eq.s32.totalorder %s19, 0
    %s22 = sadd.s32 %s21, 1
    %s23 = scalar_select %p20, %s21, %s22
    %p26 = pneg %p20
    %p27 = scmp.eq.s32.totalorder %s11, 1
    %p28 = por %p26, %p27
    %p29 = scmp.ne.s32.totalorder %s21, %s24
    %p30 = scmp.eq.s32.totalorder %s11, 0
    %p31 = por %p29, %p30
    %p32 = scmp.ne.s32.totalorder %s21, %s24
    %p33 = scmp.eq.s32.totalorder %s16, 1
    %p34 = por %p32, %p33
    %p35 = scmp.ne.s32.totalorder %s24, %s25
    %p36 = scmp.eq.s32.totalorder %s16, 0
    %p37 = por %p35, %p36
    %p38 = scmp.ne.s32.totalorder %s24, %s25
    %p39 = scmp.eq.s32.totalorder %s17, 1
    %p40 = por %p38, %p39
    %p42 = scmp.ne.s32.totalorder %s25, %s41
    %p43 = scmp.eq.s32.totalorder %s17, 0
    %p44 = por %p42, %p43
    %s46 = sadd.s32 %s45, 1
    %p49 = scmp.eq.s32.totalorder %s11, 1
    %p50 = scmp.ne.s32.totalorder %s45, %s47
    %p51 = scmp.eq.s32.totalorder %s11, 0
    %p52 = por %p50, %p51
    %p53 = scmp.ne.s32.totalorder %s45, %s47
    %p54 = scmp.eq.s32.totalorder %s16, 1
    %p55 = por %p53, %p54
    %p56 = scmp.ne.s32.totalorder %s47, %s48
    %p57 = scmp.eq.s32.totalorder %s16, 0
    %p58 = por %p56, %p57
    %p59 = scmp.ne.s32.totalorder %s47, %s48
    %p60 = scmp.eq.s32.totalorder %s17, 1
    %p61 = por %p59, %p60
    %p63 = scmp.ne.s32.totalorder %s48, %s62
    %p64 = scmp.eq.s32.totalorder %s17, 0
    %p65 = por %p63, %p64
    %s67 = sadd.s32 %s66, 1
    %p70 = scmp.eq.s32.totalorder %s11, 1
    %p71 = scmp.ne.s32.totalorder %s66, %s68
    %p72 = scmp.eq.s32.totalorder %s11, 0
    %p73 = por %p71, %p72
    %p74 = scmp.ne.s32.totalorder %s66, %s68
    %p75 = scmp.eq.s32.totalorder %s16, 1
    %p76 = por %p74, %p75
    %p77 = scmp.ne.s32.totalorder %s68, %s69
    %p78 = scmp.eq.s32.totalorder %s16, 0
    %p79 = por %p77, %p78
    %p80 = scmp.ne.s32.totalorder %s68, %s69
    %p81 = scmp.eq.s32.totalorder %s17, 1
    %p82 = por %p80, %p81
    %p84 = scmp.ne.s32.totalorder %s69, %s83
    %p85 = scmp.eq.s32.totalorder %s17, 0
    %p86 = por %p84, %p85
    %s88 = sadd.s32 %s87, 1
    %p91 = scmp.eq.s32.totalorder %s11, 1
    %p92 = scmp.ne.s32.totalorder %s87, %s89
    %p93 = scmp.eq.s32.totalorder %s11, 0
    %p94 = por %p92, %p93
    %p95 = scmp.ne.s32.totalorder %s87, %s89
    %p96 = scmp.eq.s32.totalorder %s16, 1
    %p97 = por %p95, %p96
    %p98 = scmp.ne.s32.totalorder %s89, %s90
    %p99 = scmp.eq.s32.totalorder %s16, 0
    %p100 = por %p98, %p99
    %p101 = scmp.ne.s32.totalorder %s89, %s90
    %p102 = scmp.eq.s32.totalorder %s17, 1
    %p103 = por %p101, %p102
    %p105 = scmp.ne.s32.totalorder %s90, %s104
    %p106 = scmp.eq.s32.totalorder %s17, 0
    %p107 = por %p105, %p106
    %s109 = sadd.s32 %s108, 1
    %p112 = scmp.eq.s32.totalorder %s11, 1
    %p113 = scmp.ne.s32.totalorder %s108, %s110
    %p114 = scmp.eq.s32.totalorder %s11, 0
    %p115 = por %p113, %p114
    %p116 = scmp.ne.s32.totalorder %s108, %s110
    %p117 = scmp.eq.s32.totalorder %s16, 1
    %p118 = por %p116, %p117
    %p119 = scmp.ne.s32.totalorder %s110, %s111
    %p120 = scmp.eq.s32.totalorder %s16, 0
    %p121 = por %p119, %p120
    %p122 = scmp.ne.s32.totalorder %s110, %s111
    %p123 = scmp.eq.s32.totalorder %s17, 1
    %p124 = por %p122, %p123
    %p126 = scmp.ne.s32.totalorder %s111, %s125
    %p127 = scmp.eq.s32.totalorder %s17, 0
    %p128 = por %p126, %p127
    %s129 = ssub.s32 %s11, %s18
    %p130 = scmp.eq.s32.totalorder %s129, 0
    %s132 = sadd.s32 %s131, 1
    %s133 = scalar_select %p130, %s131, %s132
    %p136 = pneg %p130
    %p137 = scmp.eq.s32.totalorder %s11, 1
    %p138 = por %p136, %p137
    %p139 = scmp.ne.s32.totalorder %s131, %s134
    %p140 = scmp.eq.s32.totalorder %s11, 0
    %p141 = por %p139, %p140
    %p142 = scmp.ne.s32.totalorder %s131, %s134
    %p143 = scmp.eq.s32.totalorder %s16, 1
    %p144 = por %p142, %p143
    %p145 = scmp.ne.s32.totalorder %s134, %s135
    %p146 = scmp.eq.s32.totalorder %s16, 0
    %p147 = por %p145, %p146
    %p148 = scmp.ne.s32.totalorder %s134, %s135
    %p149 = scmp.eq.s32.totalorder %s17, 1
    %p150 = por %p148, %p149
    %p152 = scmp.ne.s32.totalorder %s135, %s151
    %p153 = scmp.eq.s32.totalorder %s17, 0
    %p154 = por %p152, %p153
    %p155 = scmp.le.s32.totalorder 1, %s11
    %p156 = scmp.lt.s32.totalorder %s11, 3
    %p157 = pnand %p155, %p156
    %p158 = pneg %p157
    // Predicated region
    $region9: #{pointnet_encoder_forward.5} parent=5 // pred_check
      _
    $region10: #{pointnet_encoder_forward.5} parent=5 // pred_check_branch
      %160 = sbr.rel (%p157) target = $region12
    $region11: #{pointnet_encoder_forward.5} parent=5 // pred_region
      %s161 = ssub.s32 %s11, 1
      // Predicated region
      $region13: #{pointnet_encoder_forward.5} parent=11 // pred_check
        %p162 = pneg %p58
      $region14: #{pointnet_encoder_forward.5} parent=11 // pred_check_branch
        %164 = sbr.rel (%p162) target = $region16
      $region15: #{pointnet_encoder_forward.5} parent=11 // pred_region
        _
      $region16: #{pointnet_encoder_forward.5} parent=11 // pred_fallthru
        _
      // Predicated region
      $region17: #{pointnet_encoder_forward.5} parent=11 // pred_check
        %p165 = pneg %p79
      $region18: #{pointnet_encoder_forward.5} parent=11 // pred_check_branch
        %167 = sbr.rel (%p165) target = $region20
      $region19: #{pointnet_encoder_forward.5} parent=11 // pred_region
        _
      $region20: #{pointnet_encoder_forward.5} parent=11 // pred_fallthru
        _
      // Predicated region
      $region21: #{pointnet_encoder_forward.5} parent=11 // pred_check
        %p168 = pneg %p100
      $region22: #{pointnet_encoder_forward.5} parent=11 // pred_check_branch
        %170 = sbr.rel (%p168) target = $region24
      $region23: #{pointnet_encoder_forward.5} parent=11 // pred_region
        _
      $region24: #{pointnet_encoder_forward.5} parent=11 // pred_fallthru
        _
      // Predicated region
      $region25: #{pointnet_encoder_forward.5} parent=11 // pred_check
        %p171 = pneg %p121
      $region26: #{pointnet_encoder_forward.5} parent=11 // pred_check_branch
        %173 = sbr.rel (%p171) target = $region28
      $region27: #{pointnet_encoder_forward.5} parent=11 // pred_region
        _
      $region28: #{pointnet_encoder_forward.5} parent=11 // pred_fallthru
        _
    $region12: #{pointnet_encoder_forward.5} parent=5 // pred_fallthru
      _
    %p174 = scmp.lt.s32.totalorder %s11, 2
    // Predicated region
    $region29: #{pointnet_encoder_forward.5} parent=5 // pred_check
      %p175 = pneg %p174
    $region30: #{pointnet_encoder_forward.5} parent=5 // pred_check_branch
      %177 = sbr.rel (%p175) target = $region32
    $region31: #{pointnet_encoder_forward.5} parent=5 // pred_region
      // Predicated region
      $region33: #{pointnet_encoder_forward.5} parent=31 // pred_check
        %p178 = pneg %p31
      $region34: #{pointnet_encoder_forward.5} parent=31 // pred_check_branch
        %180 = sbr.rel (%p178) target = $region36
      $region35: #{pointnet_encoder_forward.5} parent=31 // pred_region
        %p181 = scmp.lt.s32.totalorder %s11, 1
        %s182 = scalar_select %p181, %s11, 1
        %s183 = smul.addr %s182, 5
        %s184 = smul.addr %s183, 8
        %s185 = scalar_lea.vmem %s0, %s184
      $region36: #{pointnet_encoder_forward.5} parent=31 // pred_fallthru
        _
    $region32: #{pointnet_encoder_forward.5} parent=5 // pred_fallthru
      _
    %p186 = scmp.le.s32.totalorder 1, %s11
    %p187 = scmp.lt.s32.totalorder %s11, 3
    %p188 = pnand %p186, %p187
    %p189 = pneg %p188
    // Predicated region
    $region37: #{pointnet_encoder_forward.5} parent=5 // pred_check
      _
    $region38: #{pointnet_encoder_forward.5} parent=5 // pred_check_branch
      %191 = sbr.rel (%p188) target = $region40
    $region39: #{pointnet_encoder_forward.5} parent=5 // pred_region
      %s192 = ssub.s32 %s11, 1
      %p193 = scmp.lt.s32.totalorder %s16, 1
      %s194 = scalar_select %p193, %s16, 1
      %s195 = smul.addr %s194, 5
      %s196 = smul.addr %s195, 8
      %s197 = scalar_lea.vmem %s0, %s196
      %p198 = pneg %p37
      %p199 = pneg %p34
      %p200 = pneg %p58
      %p201 = pneg %p55
      %p202 = pneg %p79
      %p203 = pneg %p76
      %p204 = pneg %p100
      %p205 = pneg %p97
      %p206 = pneg %p121
      %p207 = pneg %p118
      %p208 = pneg %p147
      %p209 = pneg %p144
      %p210 = scmp.lt.s32.totalorder %s16, 1
      %s211 = scalar_select %p210, %s16, 1
      %s212 = smul.addr %s211, 8
      %s213 = smul.addr %s212, 8
      %s214 = scalar_lea.vmem %s5, %s213
      %p215 = scmp.lt.s32.totalorder %s16, 1
      %s216 = scalar_select %p215, %s16, 1
      %s217 = smul.addr %s216, 5
      %s218 = smul.addr %s217, 8
      %s219 = scalar_lea.vmem %s0, %s218
      %p220 = scmp.lt.s32.totalorder %s16, 1
      %s221 = scalar_select %p220, %s16, 1
      %s222 = smul.addr %s221, 8
      %s223 = smul.addr %s222, 8
      %s224 = scalar_lea.vmem %s5, %s223
      %v225 = vld [vmem:[%s219] sm:$0xff]
      %v226 = vld [vmem:[%s219 + $0x8] sm:$0xff]
      %v227 = vld [vmem:[%s219 + $0x10] sm:$0xff]
      %v228 = vld [vmem:[%s219 + $0x18] sm:$0xff]
      %v229 = vld [vmem:[%s219 + $0x20] sm:$0x7]
      %v230 = vld [vmem:[%s1] sm:$0xff]
      %v231 = vld [vmem:[%s1 + $0x8] sm:$0xff]
      %v232 = vld [vmem:[%s1 + $0x10] sm:$0xff]
      %v233 = vld [vmem:[%s1 + $0x18] sm:$0xff]
      %v234 = vld [vmem:[%s2] sm:$0xff]
      %v235 = vld [vmem:[%s2 + $0x8] sm:$0xff]
      %v236 = vld [vmem:[%s2 + $0x10] sm:$0xff]
      %v237 = vld [vmem:[%s2 + $0x18] sm:$0xff]
      %239 = vset.pattern.permute.xlu0 0
      %240 = vperm.xlu0 %239, %v234
      %v241 = vpop.permute.xlu0 %240
      %244 = vset.pattern.permute.xlu0 0
      %245 = vperm.xlu0 %244, %v235
      %v246 = vpop.permute.xlu0 %245
      %249 = vset.pattern.permute.xlu0 0
      %250 = vperm.xlu0 %249, %v236
      %v251 = vpop.permute.xlu0 %250
      %254 = vset.pattern.permute.xlu0 0
      %255 = vperm.xlu0 %254, %v237
      %v256 = vpop.permute.xlu0 %255
      %vm258 = vcmask 285696
      %v260 = vsel %vm258, %v230, 0
      %v263 = vsel %vm258, %v231, 0
      %v266 = vsel %vm258, %v232, 0
      %v269 = vsel %vm258, %v233, 0
      %vm271 = vcmask 1042432
      %v273 = vsel %vm271, %v229, 0
      %275 = vmatpush.msra.mxu0 0.0
      %276 = vmatpush.msra.mxu0 0.0
      %277 = vmatpush.msra.mxu0 0.0
      %278 = vmatpush.msra.mxu0 0.0
      %279 = vmatpush.msra.mxu0 0.0
      %280 = vmatpush.msra.mxu0 0.0
      %281 = vmatpush.msra.mxu0 0.0
      %282 = vmatpush.msra.mxu0 0.0
      %283 = vmatpush.msra.mxu0 0.0
      %284 = vmatpush.msra.mxu0 0.0
      %285 = vmatpush.msra.mxu0 0.0
      %286 = vmatpush.msra.mxu0 %v273
      %287 = vmatpush.msra.mxu0 %v228
      %288 = vmatpush.msra.mxu0 %v227
      %289 = vmatpush.msra.mxu0 %v226
      %290 = vmatpush.msra.mxu0 %v225
      %291 = vmatmul.f32.gmra.mxu0 %v260
      %v292 = vpop.f32.mrf.mxu0
      %v293 = vadd.f32 %v241, %v292
      %294 = vmatmul.f32.gmra.mxu0 %v263
      %v295 = vpop.f32.mrf.mxu0
      %v296 = vadd.f32 %v246, %v295
      %297 = vmatmul.f32.gmra.mxu0 %v266
      %v298 = vpop.f32.mrf.mxu0
      %v299 = vadd.f32 %v251, %v298
      %300 = vmatmul.f32.gmra.mxu0 %v269
      %v301 = vpop.f32.mrf.mxu0
      %v302 = vadd.f32 %v256, %v301
      %303 = vdwg.mxu0
      %v304 = vmax.f32 %v293, 0.0
      %v305 = vmax.f32 %v296, 0.0
      %v306 = vmax.f32 %v299, 0.0
      %v307 = vmax.f32 %v302, 0.0
      %v308 = vld [vmem:[%s3] sm:$0xff]
      %v309 = vld [vmem:[%s3 + $0x8] sm:$0xff]
      %v310 = vld [vmem:[%s3 + $0x10] sm:$0xff]
      %v311 = vld [vmem:[%s3 + $0x18] sm:$0xff]
      %v312 = vld [vmem:[%s3 + $0x20] sm:$0xff]
      %v313 = vld [vmem:[%s3 + $0x28] sm:$0xff]
      %v314 = vld [vmem:[%s3 + $0x30] sm:$0xff]
      %v315 = vld [vmem:[%s3 + $0x38] sm:$0xff]
      %v316 = vld [vmem:[%s4] sm:$0xff]
      %v317 = vld [vmem:[%s4 + $0x8] sm:$0xff]
      %v318 = vld [vmem:[%s4 + $0x10] sm:$0xff]
      %v319 = vld [vmem:[%s4 + $0x18] sm:$0xff]
      %v320 = vld [vmem:[%s4 + $0x20] sm:$0xff]
      %v321 = vld [vmem:[%s4 + $0x28] sm:$0xff]
      %v322 = vld [vmem:[%s4 + $0x30] sm:$0xff]
      %v323 = vld [vmem:[%s4 + $0x38] sm:$0xff]
      %325 = vset.pattern.permute.xlu0 0
      %326 = vperm.xlu0 %325, %v316
      %v327 = vpop.permute.xlu0 %326
      %330 = vset.pattern.permute.xlu0 0
      %331 = vperm.xlu0 %330, %v317
      %v332 = vpop.permute.xlu0 %331
      %335 = vset.pattern.permute.xlu0 0
      %336 = vperm.xlu0 %335, %v318
      %v337 = vpop.permute.xlu0 %336
      %340 = vset.pattern.permute.xlu0 0
      %341 = vperm.xlu0 %340, %v319
      %v342 = vpop.permute.xlu0 %341
      %345 = vset.pattern.permute.xlu0 0
      %346 = vperm.xlu0 %345, %v320
      %v347 = vpop.permute.xlu0 %346
      %350 = vset.pattern.permute.xlu0 0
      %351 = vperm.xlu0 %350, %v321
      %v352 = vpop.permute.xlu0 %351
      %355 = vset.pattern.permute.xlu0 0
      %356 = vperm.xlu0 %355, %v322
      %v357 = vpop.permute.xlu0 %356
      %360 = vset.pattern.permute.xlu0 0
      %361 = vperm.xlu0 %360, %v323
      %v362 = vpop.permute.xlu0 %361
      %vm364 = vcmask 261120
      %v366 = vsel %vm364, %v308, 0
      %v369 = vsel %vm364, %v309, 0
      %v372 = vsel %vm364, %v310, 0
      %v375 = vsel %vm364, %v311, 0
      %v378 = vsel %vm364, %v312, 0
      %v381 = vsel %vm364, %v313, 0
      %v384 = vsel %vm364, %v314, 0
      %v387 = vsel %vm364, %v315, 0
      %389 = vmatpush.msra.mxu0 0.0
      %390 = vmatpush.msra.mxu0 0.0
      %391 = vmatpush.msra.mxu0 0.0
      %392 = vmatpush.msra.mxu0 0.0
      %393 = vmatpush.msra.mxu0 0.0
      %394 = vmatpush.msra.mxu0 0.0
      %395 = vmatpush.msra.mxu0 0.0
      %396 = vmatpush.msra.mxu0 0.0
      %397 = vmatpush.msra.mxu0 0.0
      %398 = vmatpush.msra.mxu0 0.0
      %399 = vmatpush.msra.mxu0 0.0
      %400 = vmatpush.msra.mxu0 0.0
      %401 = vmatpush.msra.mxu0 %v307
      %402 = vmatpush.msra.mxu0 %v306
      %403 = vmatpush.msra.mxu0 %v305
      %404 = vmatpush.msra.mxu0 %v304
      %405 = vmatmul.f32.gmra.mxu0 %v366
      %v406 = vpop.f32.mrf.mxu0
      %v407 = vadd.f32 %v327, %v406
      %408 = vmatmul.f32.gmra.mxu0 %v369
      %v409 = vpop.f32.mrf.mxu0
      %v410 = vadd.f32 %v332, %v409
      %411 = vmatmul.f32.gmra.mxu0 %v372
      %v412 = vpop.f32.mrf.mxu0
      %v413 = vadd.f32 %v337, %v412
      %414 = vmatmul.f32.gmra.mxu0 %v375
      %v415 = vpop.f32.mrf.mxu0
      %v416 = vadd.f32 %v342, %v415
      %417 = vmatmul.f32.gmra.mxu0 %v378
      %v418 = vpop.f32.mrf.mxu0
      %v419 = vadd.f32 %v347, %v418
      %420 = vmatmul.f32.gmra.mxu0 %v381
      %v421 = vpop.f32.mrf.mxu0
      %v422 = vadd.f32 %v352, %v421
      %423 = vmatmul.f32.gmra.mxu0 %v384
      %v424 = vpop.f32.mrf.mxu0
      %v425 = vadd.f32 %v357, %v424
      %426 = vmatmul.f32.gmra.mxu0 %v387
      %v427 = vpop.f32.mrf.mxu0
      %v428 = vadd.f32 %v362, %v427
      %429 = vdwg.mxu0
      %v430 = vmax.f32 %v407, 0.0
      %v431 = vmax.f32 %v410, 0.0
      %v432 = vmax.f32 %v413, 0.0
      %v433 = vmax.f32 %v416, 0.0
      %v434 = vmax.f32 %v419, 0.0
      %v435 = vmax.f32 %v422, 0.0
      %v436 = vmax.f32 %v425, 0.0
      %v437 = vmax.f32 %v428, 0.0
      %438 = vmax.xlane.f32.xlu0 %v430
      %v439 = vpop.xlane.xlu0 %438
      %440 = vmax.xlane.f32.xlu0 %v431
      %v441 = vpop.xlane.xlu0 %440
      %442 = vmax.xlane.f32.xlu0 %v432
      %v443 = vpop.xlane.xlu0 %442
      %444 = vmax.xlane.f32.xlu0 %v433
      %v445 = vpop.xlane.xlu0 %444
      %446 = vmax.xlane.f32.xlu0 %v434
      %v447 = vpop.xlane.xlu0 %446
      %448 = vmax.xlane.f32.xlu0 %v435
      %v449 = vpop.xlane.xlu0 %448
      %450 = vmax.xlane.f32.xlu0 %v436
      %v451 = vpop.xlane.xlu0 %450
      %452 = vmax.xlane.f32.xlu0 %v437
      %v453 = vpop.xlane.xlu0 %452
      %vm454 = vcmask 7168
      %455 = vst.msk [vmem:[%s224] sm:$0xff] %vm454, %v439
      %456 = vst.msk [vmem:[%s224 + $0x8] sm:$0xff] %vm454, %v441
      %457 = vst.msk [vmem:[%s224 + $0x10] sm:$0xff] %vm454, %v443
      %458 = vst.msk [vmem:[%s224 + $0x18] sm:$0xff] %vm454, %v445
      %459 = vst.msk [vmem:[%s224 + $0x20] sm:$0xff] %vm454, %v447
      %460 = vst.msk [vmem:[%s224 + $0x28] sm:$0xff] %vm454, %v449
      %461 = vst.msk [vmem:[%s224 + $0x30] sm:$0xff] %vm454, %v451
      %462 = vst.msk [vmem:[%s224 + $0x38] sm:$0xff] %vm454, %v453
      %p463 = scmp.lt.s32.totalorder %s16, 1
      %s464 = scalar_select %p463, %s16, 1
      %s465 = smul.addr %s464, 8
      %s466 = smul.addr %s465, 8
      %s467 = scalar_lea.vmem %s5, %s466
      // Predicated region
      $region41: #{pointnet_encoder_forward.5} parent=39 // pred_check
        %p468 = pneg %p144
      $region42: #{pointnet_encoder_forward.5} parent=39 // pred_check_branch
        %470 = sbr.rel (%p468) target = $region44
      $region43: #{pointnet_encoder_forward.5} parent=39 // pred_region
        _
      $region44: #{pointnet_encoder_forward.5} parent=39 // pred_fallthru
        _
    $region40: #{pointnet_encoder_forward.5} parent=5 // pred_fallthru
      _
    %p471 = scmp.le.s32.totalorder 2, %s11
    // Predicated region
    $region45: #{pointnet_encoder_forward.5} parent=5 // pred_check
      %p472 = pneg %p471
    $region46: #{pointnet_encoder_forward.5} parent=5 // pred_check_branch
      %474 = sbr.rel (%p472) target = $region48
    $region47: #{pointnet_encoder_forward.5} parent=5 // pred_region
      %s475 = ssub.s32 %s11, 2
      // Predicated region
      $region49: #{pointnet_encoder_forward.5} parent=47 // pred_check
        %p476 = pneg %p150
      $region50: #{pointnet_encoder_forward.5} parent=47 // pred_check_branch
        %478 = sbr.rel (%p476) target = $region52
      $region51: #{pointnet_encoder_forward.5} parent=47 // pred_region
        %p479 = scmp.lt.s32.totalorder %s17, 1
        %s480 = scalar_select %p479, %s17, 1
        %s481 = smul.addr %s480, 8
        %s482 = smul.addr %s481, 8
        %s483 = scalar_lea.vmem %s5, %s482
      $region52: #{pointnet_encoder_forward.5} parent=47 // pred_fallthru
        _
    $region48: #{pointnet_encoder_forward.5} parent=5 // pred_fallthru
      _
  $region6: #{pointnet_encoder_forward.5} parent=0 // loop_footer
    %s15 = sadd.s32 1, %s11
  $region7: #{pointnet_encoder_forward.5} parent=0 // loop_footer_branch
    %10 = sbr.rel target = $region3
  $region8: #{pointnet_encoder_forward.5} parent=0 // loop_exit
    _

</llo_original>
